<compile_context>
chip_gen: v7x
topology: tpu7x:2x2x1
jax: 0.10.0
libtpu: 0.0.40
codegen_flags: <defaults>
</compile_context>

<pallas_src>
import functools

import jax
import jax.numpy as jnp
import numpy as np
from jax import lax
from jax.experimental import pallas as pl
from jax.experimental.pallas import tpu as pltpu


# ----------------------------------------------------------------------------
# One-time parameter preparation (hoisted out of the per-call forward).
#
# Index conventions (all derived once here and used consistently below):
#   conv1 GEMM : rows m = (b, q=pr*2+ps, ar)           [32 rows / sample]
#                K    k = u*32 + v                      (u in 0..4, v in 0..31)
#                N    n = g*128 + as*16 + co            (g = di*2+dj pool phase)
#                value of p1: x_pad[4*ar + 2*pr + u, 2*ps + v]
#                value of W1: w1[co, 0, u-di, v-4*as-dj]  (0 outside the 3x3 tap)
#   conv2 GEMM : rows m = (b, R)  (R padded to 8)       [8 rows / sample]
#                K    k = ((Dr*2+ps)*8 + as)*16 + ci    (Dr in 0..4 union window)
#                N    n = g2*160 + S*32 + co2           (g2 = du*2+dv pool phase)
#   conv3 GEMM : K    k = R*160 + S*32 + ci             (matches y2 layout)
# ----------------------------------------------------------------------------
def prepare_params(p):
    w1 = np.asarray(p["w1"], np.float32)       # (16, 1, 3, 3)
    w2 = np.asarray(p["w2"], np.float32)       # (32, 16, 4, 4)
    w3 = np.asarray(p["w3"], np.float32)       # (64, 32, 5, 5)
    b1 = np.asarray(p["b1"], np.float32)
    b2 = np.asarray(p["b2"], np.float32)
    b3 = np.asarray(p["b3"], np.float32)
    fc1w = np.asarray(p["fc1w"], np.float32)   # (32, 64)
    fc1b = np.asarray(p["fc1b"], np.float32)
    fc2w = np.asarray(p["fc2w"], np.float32)   # (10, 32)
    fc2b = np.asarray(p["fc2b"], np.float32)

    # conv1 + maxpool phases, "as-in-lanes" folding.
    W1 = np.zeros((5, 32, 4, 8, 16), np.float32)            # (u, v, g, as, co)
    for di in range(2):
        for dj in range(2):
            g = di * 2 + dj
            for kh in range(3):
                for kw in range(3):
                    u = di + kh
                    for a in range(8):
                        v = 4 * a + dj + kw
                        W1[u, v, g, a, :] = w1[:, 0, kh, kw]
    W1 = W1.reshape(160, 512)
    b1t = np.tile(b1, 8)[None, :]                            # (1, 128) lane=as*16+co

    # conv2 + avgpool phases.  ds = 2*(as - S) + ps - dv ; dr = Dr - du.
    W2 = np.zeros((5, 2, 8, 16, 4, 5, 32), np.float32)       # (Dr, ps, as, ci, g2, S, co)
    for du in range(2):
        for dv in range(2):
            g2 = du * 2 + dv
            for dr in range(4):
                for ds in range(4):
                    Dr = du + dr
                    ps = (dv + ds) % 2
                    off = (dv + ds) // 2
                    for S in range(5):
                        W2[Dr, ps, S + off, :, g2, S, :] = w2[:, :, dr, ds].T
    W2 = W2.reshape(1280, 640)
    b2t = np.tile(b2, 20)[None, :]                           # (1, 640) lane=(g2,S,co)

    # conv3: rows of W3 ordered (R, S, ci) to match y2's natural layout.
    W3 = np.transpose(w3, (2, 3, 1, 0)).reshape(800, 64)
    b3t = b3[None, :]

    W4 = fc1w.T                                              # (64, 32)
    b4t = fc1b[None, :]

    # fc2 padded to 128 lanes; pad-lane bias = -1e30 so softmax over 128 lanes
    # equals softmax over the 10 real logits (exp underflows to exactly 0).
    W5 = np.zeros((32, 128), np.float32)
    W5[:, :10] = fc2w.T
    b5t = np.full((1, 128), -1e30, np.float32)
    b5t[0, :10] = fc2b

    to = lambda a: jnp.asarray(a, jnp.float32)
    return {"w1": to(W1), "b1": to(b1t), "w2": to(W2), "b2": to(b2t),
            "w3": to(W3), "b3": to(b3t), "w4": to(W4), "b4": to(b4t),
            "w5": to(W5), "b5": to(b5t)}


# ----------------------------------------------------------------------------
# Wrapper glue (plain XLA, outside the kernel): conv1 union-window patches.
#   p1[b, (pr*2+ps)*8 + ar, u*32 + v] = x_pad[b, 4*ar + 2*pr + u, 2*ps + v]
# ----------------------------------------------------------------------------
def _conv1_patches(x):                                       # x: (B, 28, 28)
    B = x.shape[0]
    xp = jnp.pad(x, ((0, 0), (0, 8), (0, 8)))                # (B, 36, 36), zeros
    ar = jnp.arange(8)[:, None, None]
    pr = jnp.arange(2)[None, :, None]
    u = jnp.arange(5)[None, None, :]
    rows = 4 * ar + 2 * pr + u                               # (8, 2, 5)
    ps = jnp.arange(2)[:, None]
    v = jnp.arange(32)[None, :]
    cols = 2 * ps + v                                        # (2, 32)
    pat = xp[:, rows[:, :, :, None, None], cols[None, None, None, :, :]]
    pat = jnp.transpose(pat, (0, 2, 4, 1, 3, 5))             # (B, pr, ps, ar, u, v)
    return pat.reshape(B, 32, 160)


# ----------------------------------------------------------------------------
# Fused Pallas kernel: whole Net1 forward for one batch tile (fully batched).
# ----------------------------------------------------------------------------
def net1_kernel(p1_ref, w1_ref, b1_ref, w2_ref, b2_ref, w3_ref, b3_ref,
                w4_ref, b4_ref, w5_ref, b5_ref, o_ref):
    bt = p1_ref.shape[0]
    f32 = jnp.float32

    # ---- conv1 (+ 2x2 maxpool folded as 4 aligned 128-lane phase slabs) ------
    p1 = p1_ref[...].reshape(bt * 32, 160)
    h1 = jnp.dot(p1, w1_ref[...], preferred_element_type=f32)        # (bt*32, 512)
    h1 = jnp.maximum(jnp.maximum(h1[:, 0:128], h1[:, 128:256]),
                     jnp.maximum(h1[:, 256:384], h1[:, 384:512]))    # (bt*32, 128)
    y1 = jnp.maximum(h1 + b1_ref[...], 0.0)
    y1 = y1.reshape(bt, 4, 8, 128)            # (b, q=pr*2+ps, ar, as*16+ci)

    # ---- conv2 im2col: 10 pieces, each a full 128-lane tile of y1 ------------
    # piece (Dr, ps): row R holds y1[b, q, R + Dr//2, :]; rows R>=5 are garbage
    # and never used (zero weight columns / discarded below).
    pieces = []
    for Dr in range(5):
        t = Dr // 2
        for ps in range(2):
            q = (Dr % 2) * 2 + ps
            blk = y1[:, q]                                            # (bt, 8, 128)
            if t > 0:
                blk = jnp.concatenate(
                    [blk[:, t:, :], jnp.zeros((bt, t, 128), blk.dtype)], axis=1)
            pieces.append(blk)
    p2 = jnp.concatenate(pieces, axis=-1)                             # (bt, 8, 1280)
    p2 = p2.reshape(bt * 8, 1280)

    # ---- conv2 (+ 2x2 avgpool folded as 4 x 160-lane phase slabs) ------------
    h2 = jnp.dot(p2, w2_ref[...], preferred_element_type=f32)         # (bt*8, 640)
    h2 = jnp.maximum(h2 + b2_ref[...], 0.0)
    y2 = 0.25 * (h2[:, 0:160] + h2[:, 160:320] +
                 h2[:, 320:480] + h2[:, 480:640])                     # (bt*8, 160)

    # ---- conv3 (1x1 spatial output) ------------------------------------------
    y2 = y2.reshape(bt, 8, 160)
    p3 = jnp.concatenate([y2[:, R, :] for R in range(5)], axis=-1)    # (bt, 800)
    h3 = jnp.maximum(jnp.dot(p3, w3_ref[...], preferred_element_type=f32)
                     + b3_ref[...], 0.0)                              # (bt, 64)

    # ---- fc1 + tanh, fc2 (lane-padded to 128), softmax (dropouts = identity) -
    h4 = jnp.tanh(jnp.dot(h3, w4_ref[...], preferred_element_type=f32)
                  + b4_ref[...])                                      # (bt, 32)
    lg = jnp.dot(h4, w5_ref[...], preferred_element_type=f32) + b5_ref[...]  # (bt,128)
    m = jnp.max(lg, axis=-1, keepdims=True)
    e = jnp.exp(lg - m)
    s = jnp.sum(e, axis=-1, keepdims=True)
    o_ref[...] = (e / s).astype(o_ref.dtype)[None]


def _pick_block_b(B, cap=32):
    divs = [d for d in range(1, B + 1) if B % d == 0 and d <= cap]
    pref = [d for d in divs if B // d >= 2]     # keep >= 2 grid steps (v7x megacore)
    return max(pref) if pref else max(divs)


@functools.partial(jax.jit, static_argnames=("block_b",))
def net1_forward(x_nchw, prep, block_b=1):
    x = x_nchw[:, 0, :, :]                                   # (B, 28, 28)
    B = x.shape[0]
    assert B % block_b == 0
    nb = B // block_b
    p1 = _conv1_patches(x)                                   # (B, 32, 160)

    out = pl.pallas_call(
        net1_kernel,
        out_shape=jax.ShapeDtypeStruct((nb, block_b, 128), jnp.float32),
        grid=(nb,),
        in_specs=[
            pl.BlockSpec((block_b, 32, 160), lambda i: (i, 0, 0)),
            pl.BlockSpec((160, 512), lambda i: (0, 0)),
            pl.BlockSpec((1, 128), lambda i: (0, 0)),
            pl.BlockSpec((1280, 640), lambda i: (0, 0)),
            pl.BlockSpec((1, 640), lambda i: (0, 0)),
            pl.BlockSpec((800, 64), lambda i: (0, 0)),
            pl.BlockSpec((1, 64), lambda i: (0, 0)),
            pl.BlockSpec((64, 32), lambda i: (0, 0)),
            pl.BlockSpec((1, 32), lambda i: (0, 0)),
            pl.BlockSpec((32, 128), lambda i: (0, 0)),
            pl.BlockSpec((1, 128), lambda i: (0, 0)),
        ],
        out_specs=pl.BlockSpec((1, block_b, 128), lambda i: (i, 0, 0)),
        compiler_params=pltpu.CompilerParams(
            dimension_semantics=("parallel",),
            vmem_limit_bytes=48 * 1024 * 1024),
    )(p1, prep["w1"], prep["b1"], prep["w2"], prep["b2"],
      prep["w3"], prep["b3"], prep["w4"], prep["b4"], prep["w5"], prep["b5"])
    return out.reshape(B, 128)[:, :10]


# ----------------------------------------------------------------------------
# Pure-JAX reference (correctness check only).
# ----------------------------------------------------------------------------
def net1_reference(x_nchw, params):
    dn = ("NCHW", "OIHW", "NCHW")
    hp = lax.Precision.HIGHEST

    def conv(x, w, b):
        y = lax.conv_general_dilated(x, w, (1, 1), "VALID",
                                     dimension_numbers=dn, precision=hp)
        return y + b[None, :, None, None]

    y = jnp.maximum(conv(x_nchw, params["w1"], params["b1"]), 0.0)
    y = lax.reduce_window(y, -jnp.inf, lax.max, (1, 1, 2, 2), (1, 1, 2, 2), "VALID")
    y = jnp.maximum(conv(y, params["w2"], params["b2"]), 0.0)
    y = lax.reduce_window(y, 0.0, lax.add, (1, 1, 2, 2), (1, 1, 2, 2), "VALID") / 4.0
    y = jnp.maximum(conv(y, params["w3"], params["b3"]), 0.0)
    y = y.reshape(y.shape[0], 64)
    y = jnp.tanh(jnp.dot(y, params["fc1w"].T, precision=hp) + params["fc1b"])
    y = jnp.dot(y, params["fc2w"].T, precision=hp) + params["fc2b"]
    return jax.nn.softmax(y, axis=1)


def init_params(key):
    ks = jax.random.split(key, 10)

    def u(k, shape, fan_in):
        bound = 1.0 / float(fan_in) ** 0.5
        return jax.random.uniform(k, shape, jnp.float32, -bound, bound)

    return {
        "w1": u(ks[0], (16, 1, 3, 3), 9),    "b1": u(ks[1], (16,), 9),
        "w2": u(ks[2], (32, 16, 4, 4), 256), "b2": u(ks[3], (32,), 256),
        "w3": u(ks[4], (64, 32, 5, 5), 800), "b3": u(ks[5], (64,), 800),
        "fc1w": u(ks[6], (32, 64), 64),      "fc1b": u(ks[7], (32,), 64),
        "fc2w": u(ks[8], (10, 32), 32),      "fc2b": u(ks[9], (10,), 32),
    }


if __name__ == "__main__":
    key = jax.random.PRNGKey(0)
    k_params, k_x = jax.random.split(key)
    params = init_params(k_params)
    # Input shape implied by the module (flatten -> Linear(64, 32) forces 28x28).
    x = jax.random.normal(k_x, (2, 1, 28, 28), jnp.float32)

    prep = prepare_params(params)            # one-time weight refolding (hoisted)
    block_b = _pick_block_b(x.shape[0])

    out = net1_forward(x, prep, block_b=block_b)
    out = jax.block_until_ready(out)

    ref = net1_reference(x, params)
    if out.shape != (2, 10):
        raise SystemExit(f"unexpected output shape {out.shape}")
    if not jnp.allclose(out, ref, atol=2e-3, rtol=2e-3):
        err = float(jnp.max(jnp.abs(out - ref)))
        raise SystemExit(f"Pallas output does not match reference (max err {err})")
    print("KERNEL_OK")
</pallas_src>

<mosaic_0001>
module attributes {stable_mosaic.version = 11 : i64} {
  func.func @net1_kernel(%arg0: i32, %arg1: memref<1x32x160xf32, #tpu.memory_space<vmem>>, %arg2: memref<160x512xf32, #tpu.memory_space<vmem>>, %arg3: memref<1x128xf32, #tpu.memory_space<vmem>>, %arg4: memref<1280x640xf32, #tpu.memory_space<vmem>>, %arg5: memref<1x640xf32, #tpu.memory_space<vmem>>, %arg6: memref<800x64xf32, #tpu.memory_space<vmem>>, %arg7: memref<1x64xf32, #tpu.memory_space<vmem>>, %arg8: memref<64x32xf32, #tpu.memory_space<vmem>>, %arg9: memref<1x32xf32, #tpu.memory_space<vmem>>, %arg10: memref<32x128xf32, #tpu.memory_space<vmem>>, %arg11: memref<1x128xf32, #tpu.memory_space<vmem>>, %arg12: memref<1x1x128xf32, #tpu.memory_space<vmem>>) attributes {dimension_semantics = [#tpu.dimension_semantics<parallel>], iteration_bounds = array<i64: 2>, scalar_prefetch = 0 : i64, scratch_operands = 0 : i64, tpu.core_type = #tpu.core_type<tc>, window_params = [{transform_indices = @transform_0, window_bounds = array<i64: 1, 32, 160>}, {pipeline_mode = #tpu.pipeline_mode<synchronous>, transform_indices = @transform_1, window_bounds = array<i64: 160, 512>}, {pipeline_mode = #tpu.pipeline_mode<synchronous>, transform_indices = @transform_2, window_bounds = array<i64: 1, 128>}, {pipeline_mode = #tpu.pipeline_mode<synchronous>, transform_indices = @transform_3, window_bounds = array<i64: 1280, 640>}, {pipeline_mode = #tpu.pipeline_mode<synchronous>, transform_indices = @transform_4, window_bounds = array<i64: 1, 640>}, {pipeline_mode = #tpu.pipeline_mode<synchronous>, transform_indices = @transform_5, window_bounds = array<i64: 800, 64>}, {pipeline_mode = #tpu.pipeline_mode<synchronous>, transform_indices = @transform_6, window_bounds = array<i64: 1, 64>}, {pipeline_mode = #tpu.pipeline_mode<synchronous>, transform_indices = @transform_7, window_bounds = array<i64: 64, 32>}, {pipeline_mode = #tpu.pipeline_mode<synchronous>, transform_indices = @transform_8, window_bounds = array<i64: 1, 32>}, {pipeline_mode = #tpu.pipeline_mode<synchronous>, transform_indices = @transform_9, window_bounds = array<i64: 32, 128>}, {pipeline_mode = #tpu.pipeline_mode<synchronous>, transform_indices = @transform_10, window_bounds = array<i64: 1, 128>}, {transform_indices = @transform_11, window_bounds = array<i64: 1, 1, 128>}]} {
    %c0 = arith.constant 0 : index
    %c0_0 = arith.constant 0 : index
    %c0_1 = arith.constant 0 : index
    %0 = vector.load %arg1[%c0, %c0_0, %c0_1] : memref<1x32x160xf32, #tpu.memory_space<vmem>>, vector<1x32x160xf32>
    %1 = vector.shape_cast %0 : vector<1x32x160xf32> to vector<32x160xf32>
    %c0_2 = arith.constant 0 : index
    %c0_3 = arith.constant 0 : index
    %2 = vector.load %arg2[%c0_2, %c0_3] : memref<160x512xf32, #tpu.memory_space<vmem>>, vector<160x512xf32>
    %cst = arith.constant dense<0.000000e+00> : vector<32x512xf32>
    %3 = tpu.matmul %1, %2, %cst {dimension_numbers = #tpu.dot_dimension_numbers<[1], [0], [0], [1], [0, 0, 1, 1], [], []>} : vector<32x160xf32>, vector<160x512xf32>, vector<32x512xf32> -> vector<32x512xf32>
    %4 = vector.extract_strided_slice %3 {offsets = [0, 0], sizes = [32, 128], strides = [1, 1]} : vector<32x512xf32> to vector<32x128xf32>
    %5 = vector.extract_strided_slice %3 {offsets = [0, 128], sizes = [32, 128], strides = [1, 1]} : vector<32x512xf32> to vector<32x128xf32>
    %6 = arith.maximumf %4, %5 : vector<32x128xf32>
    %7 = vector.extract_strided_slice %3 {offsets = [0, 256], sizes = [32, 128], strides = [1, 1]} : vector<32x512xf32> to vector<32x128xf32>
    %8 = vector.extract_strided_slice %3 {offsets = [0, 384], sizes = [32, 128], strides = [1, 1]} : vector<32x512xf32> to vector<32x128xf32>
    %9 = arith.maximumf %7, %8 : vector<32x128xf32>
    %10 = arith.maximumf %6, %9 : vector<32x128xf32>
    %c0_4 = arith.constant 0 : index
    %c0_5 = arith.constant 0 : index
    %11 = vector.load %arg3[%c0_4, %c0_5] : memref<1x128xf32, #tpu.memory_space<vmem>>, vector<1x128xf32>
    %12 = vector.broadcast %11 : vector<1x128xf32> to vector<32x128xf32>
    %13 = arith.addf %10, %12 : vector<32x128xf32>
    %cst_6 = arith.constant 0.000000e+00 : f32
    %14 = vector.broadcast %cst_6 : f32 to vector<32x128xf32>
    %15 = arith.maximumf %13, %14 : vector<32x128xf32>
    %16 = vector.shape_cast %15 : vector<32x128xf32> to vector<1x4x8x128xf32>
    %17 = vector.extract_strided_slice %16 {offsets = [0, 0, 0, 0], sizes = [1, 1, 8, 128], strides = [1, 1, 1, 1]} : vector<1x4x8x128xf32> to vector<1x1x8x128xf32>
    %18 = vector.shape_cast %17 : vector<1x1x8x128xf32> to vector<1x8x128xf32>
    %19 = vector.extract_strided_slice %16 {offsets = [0, 1, 0, 0], sizes = [1, 1, 8, 128], strides = [1, 1, 1, 1]} : vector<1x4x8x128xf32> to vector<1x1x8x128xf32>
    %20 = vector.shape_cast %19 : vector<1x1x8x128xf32> to vector<1x8x128xf32>
    %21 = vector.extract_strided_slice %16 {offsets = [0, 2, 0, 0], sizes = [1, 1, 8, 128], strides = [1, 1, 1, 1]} : vector<1x4x8x128xf32> to vector<1x1x8x128xf32>
    %22 = vector.shape_cast %21 : vector<1x1x8x128xf32> to vector<1x8x128xf32>
    %23 = vector.extract_strided_slice %16 {offsets = [0, 3, 0, 0], sizes = [1, 1, 8, 128], strides = [1, 1, 1, 1]} : vector<1x4x8x128xf32> to vector<1x1x8x128xf32>
    %24 = vector.shape_cast %23 : vector<1x1x8x128xf32> to vector<1x8x128xf32>
    %25 = vector.extract_strided_slice %16 {offsets = [0, 0, 0, 0], sizes = [1, 1, 8, 128], strides = [1, 1, 1, 1]} : vector<1x4x8x128xf32> to vector<1x1x8x128xf32>
    %26 = vector.shape_cast %25 : vector<1x1x8x128xf32> to vector<1x8x128xf32>
    %27 = vector.extract_strided_slice %26 {offsets = [0, 1, 0], sizes = [1, 7, 128], strides = [1, 1, 1]} : vector<1x8x128xf32> to vector<1x7x128xf32>
    %cst_7 = arith.constant 0.000000e+00 : f32
    %28 = vector.broadcast %cst_7 : f32 to vector<1x1x128xf32>
    %29 = tpu.concatenate %27, %28 in 1 : vector<1x7x128xf32>, vector<1x1x128xf32> -> vector<1x8x128xf32>
    %30 = vector.extract_strided_slice %16 {offsets = [0, 1, 0, 0], sizes = [1, 1, 8, 128], strides = [1, 1, 1, 1]} : vector<1x4x8x128xf32> to vector<1x1x8x128xf32>
    %31 = vector.shape_cast %30 : vector<1x1x8x128xf32> to vector<1x8x128xf32>
    %32 = vector.extract_strided_slice %31 {offsets = [0, 1, 0], sizes = [1, 7, 128], strides = [1, 1, 1]} : vector<1x8x128xf32> to vector<1x7x128xf32>
    %cst_8 = arith.constant 0.000000e+00 : f32
    %33 = vector.broadcast %cst_8 : f32 to vector<1x1x128xf32>
    %34 = tpu.concatenate %32, %33 in 1 : vector<1x7x128xf32>, vector<1x1x128xf32> -> vector<1x8x128xf32>
    %35 = vector.extract_strided_slice %16 {offsets = [0, 2, 0, 0], sizes = [1, 1, 8, 128], strides = [1, 1, 1, 1]} : vector<1x4x8x128xf32> to vector<1x1x8x128xf32>
    %36 = vector.shape_cast %35 : vector<1x1x8x128xf32> to vector<1x8x128xf32>
    %37 = vector.extract_strided_slice %36 {offsets = [0, 1, 0], sizes = [1, 7, 128], strides = [1, 1, 1]} : vector<1x8x128xf32> to vector<1x7x128xf32>
    %cst_9 = arith.constant 0.000000e+00 : f32
    %38 = vector.broadcast %cst_9 : f32 to vector<1x1x128xf32>
    %39 = tpu.concatenate %37, %38 in 1 : vector<1x7x128xf32>, vector<1x1x128xf32> -> vector<1x8x128xf32>
    %40 = vector.extract_strided_slice %16 {offsets = [0, 3, 0, 0], sizes = [1, 1, 8, 128], strides = [1, 1, 1, 1]} : vector<1x4x8x128xf32> to vector<1x1x8x128xf32>
    %41 = vector.shape_cast %40 : vector<1x1x8x128xf32> to vector<1x8x128xf32>
    %42 = vector.extract_strided_slice %41 {offsets = [0, 1, 0], sizes = [1, 7, 128], strides = [1, 1, 1]} : vector<1x8x128xf32> to vector<1x7x128xf32>
    %cst_10 = arith.constant 0.000000e+00 : f32
    %43 = vector.broadcast %cst_10 : f32 to vector<1x1x128xf32>
    %44 = tpu.concatenate %42, %43 in 1 : vector<1x7x128xf32>, vector<1x1x128xf32> -> vector<1x8x128xf32>
    %45 = vector.extract_strided_slice %16 {offsets = [0, 0, 0, 0], sizes = [1, 1, 8, 128], strides = [1, 1, 1, 1]} : vector<1x4x8x128xf32> to vector<1x1x8x128xf32>
    %46 = vector.shape_cast %45 : vector<1x1x8x128xf32> to vector<1x8x128xf32>
    %47 = vector.extract_strided_slice %46 {offsets = [0, 2, 0], sizes = [1, 6, 128], strides = [1, 1, 1]} : vector<1x8x128xf32> to vector<1x6x128xf32>
    %cst_11 = arith.constant 0.000000e+00 : f32
    %48 = vector.broadcast %cst_11 : f32 to vector<1x2x128xf32>
    %49 = tpu.concatenate %47, %48 in 1 : vector<1x6x128xf32>, vector<1x2x128xf32> -> vector<1x8x128xf32>
    %50 = vector.extract_strided_slice %16 {offsets = [0, 1, 0, 0], sizes = [1, 1, 8, 128], strides = [1, 1, 1, 1]} : vector<1x4x8x128xf32> to vector<1x1x8x128xf32>
    %51 = vector.shape_cast %50 : vector<1x1x8x128xf32> to vector<1x8x128xf32>
    %52 = vector.extract_strided_slice %51 {offsets = [0, 2, 0], sizes = [1, 6, 128], strides = [1, 1, 1]} : vector<1x8x128xf32> to vector<1x6x128xf32>
    %cst_12 = arith.constant 0.000000e+00 : f32
    %53 = vector.broadcast %cst_12 : f32 to vector<1x2x128xf32>
    %54 = tpu.concatenate %52, %53 in 1 : vector<1x6x128xf32>, vector<1x2x128xf32> -> vector<1x8x128xf32>
    %55 = tpu.concatenate %18, %20, %22, %24, %29, %34, %39, %44, %49, %54 in 2 : vector<1x8x128xf32>, vector<1x8x128xf32>, vector<1x8x128xf32>, vector<1x8x128xf32>, vector<1x8x128xf32>, vector<1x8x128xf32>, vector<1x8x128xf32>, vector<1x8x128xf32>, vector<1x8x128xf32>, vector<1x8x128xf32> -> vector<1x8x1280xf32>
    %56 = vector.shape_cast %55 : vector<1x8x1280xf32> to vector<8x1280xf32>
    %c0_13 = arith.constant 0 : index
    %c0_14 = arith.constant 0 : index
    %57 = vector.load %arg4[%c0_13, %c0_14] : memref<1280x640xf32, #tpu.memory_space<vmem>>, vector<1280x640xf32>
    %cst_15 = arith.constant dense<0.000000e+00> : vector<8x640xf32>
    %58 = tpu.matmul %56, %57, %cst_15 {dimension_numbers = #tpu.dot_dimension_numbers<[1], [0], [0], [1], [0, 0, 1, 1], [], []>} : vector<8x1280xf32>, vector<1280x640xf32>, vector<8x640xf32> -> vector<8x640xf32>
    %c0_16 = arith.constant 0 : index
    %c0_17 = arith.constant 0 : index
    %59 = vector.load %arg5[%c0_16, %c0_17] : memref<1x640xf32, #tpu.memory_space<vmem>>, vector<1x640xf32>
    %60 = vector.broadcast %59 : vector<1x640xf32> to vector<8x640xf32>
    %61 = arith.addf %58, %60 : vector<8x640xf32>
    %cst_18 = arith.constant 0.000000e+00 : f32
    %62 = vector.broadcast %cst_18 : f32 to vector<8x640xf32>
    %63 = arith.maximumf %61, %62 : vector<8x640xf32>
    %64 = vector.extract_strided_slice %63 {offsets = [0, 0], sizes = [8, 160], strides = [1, 1]} : vector<8x640xf32> to vector<8x160xf32>
    %65 = vector.extract_strided_slice %63 {offsets = [0, 160], sizes = [8, 160], strides = [1, 1]} : vector<8x640xf32> to vector<8x160xf32>
    %66 = arith.addf %64, %65 : vector<8x160xf32>
    %67 = vector.extract_strided_slice %63 {offsets = [0, 320], sizes = [8, 160], strides = [1, 1]} : vector<8x640xf32> to vector<8x160xf32>
    %68 = arith.addf %66, %67 : vector<8x160xf32>
    %69 = vector.extract_strided_slice %63 {offsets = [0, 480], sizes = [8, 160], strides = [1, 1]} : vector<8x640xf32> to vector<8x160xf32>
    %70 = arith.addf %68, %69 : vector<8x160xf32>
    %cst_19 = arith.constant 2.500000e-01 : f32
    %71 = vector.broadcast %cst_19 : f32 to vector<8x160xf32>
    %72 = arith.mulf %71, %70 : vector<8x160xf32>
    %73 = vector.shape_cast %72 : vector<8x160xf32> to vector<1x8x160xf32>
    %74 = vector.extract_strided_slice %73 {offsets = [0, 0, 0], sizes = [1, 1, 160], strides = [1, 1, 1]} : vector<1x8x160xf32> to vector<1x1x160xf32>
    %75 = vector.shape_cast %74 : vector<1x1x160xf32> to vector<1x160xf32>
    %76 = vector.extract_strided_slice %73 {offsets = [0, 1, 0], sizes = [1, 1, 160], strides = [1, 1, 1]} : vector<1x8x160xf32> to vector<1x1x160xf32>
    %77 = vector.shape_cast %76 : vector<1x1x160xf32> to vector<1x160xf32>
    %78 = vector.extract_strided_slice %73 {offsets = [0, 2, 0], sizes = [1, 1, 160], strides = [1, 1, 1]} : vector<1x8x160xf32> to vector<1x1x160xf32>
    %79 = vector.shape_cast %78 : vector<1x1x160xf32> to vector<1x160xf32>
    %80 = vector.extract_strided_slice %73 {offsets = [0, 3, 0], sizes = [1, 1, 160], strides = [1, 1, 1]} : vector<1x8x160xf32> to vector<1x1x160xf32>
    %81 = vector.shape_cast %80 : vector<1x1x160xf32> to vector<1x160xf32>
    %82 = vector.extract_strided_slice %73 {offsets = [0, 4, 0], sizes = [1, 1, 160], strides = [1, 1, 1]} : vector<1x8x160xf32> to vector<1x1x160xf32>
    %83 = vector.shape_cast %82 : vector<1x1x160xf32> to vector<1x160xf32>
    %84 = tpu.concatenate %75, %77, %79, %81, %83 in 1 : vector<1x160xf32>, vector<1x160xf32>, vector<1x160xf32>, vector<1x160xf32>, vector<1x160xf32> -> vector<1x800xf32>
    %c0_20 = arith.constant 0 : index
    %c0_21 = arith.constant 0 : index
    %85 = vector.load %arg6[%c0_20, %c0_21] : memref<800x64xf32, #tpu.memory_space<vmem>>, vector<800x64xf32>
    %cst_22 = arith.constant dense<0.000000e+00> : vector<1x64xf32>
    %86 = tpu.matmul %84, %85, %cst_22 {dimension_numbers = #tpu.dot_dimension_numbers<[1], [0], [0], [1], [0, 0, 1, 1], [], []>} : vector<1x800xf32>, vector<800x64xf32>, vector<1x64xf32> -> vector<1x64xf32>
    %c0_23 = arith.constant 0 : index
    %c0_24 = arith.constant 0 : index
    %87 = vector.load %arg7[%c0_23, %c0_24] : memref<1x64xf32, #tpu.memory_space<vmem>>, vector<1x64xf32>
    %88 = arith.addf %86, %87 : vector<1x64xf32>
    %cst_25 = arith.constant 0.000000e+00 : f32
    %89 = vector.broadcast %cst_25 : f32 to vector<1x64xf32>
    %90 = arith.maximumf %88, %89 : vector<1x64xf32>
    %c0_26 = arith.constant 0 : index
    %c0_27 = arith.constant 0 : index
    %91 = vector.load %arg8[%c0_26, %c0_27] : memref<64x32xf32, #tpu.memory_space<vmem>>, vector<64x32xf32>
    %cst_28 = arith.constant dense<0.000000e+00> : vector<1x32xf32>
    %92 = tpu.matmul %90, %91, %cst_28 {dimension_numbers = #tpu.dot_dimension_numbers<[1], [0], [0], [1], [0, 0, 1, 1], [], []>} : vector<1x64xf32>, vector<64x32xf32>, vector<1x32xf32> -> vector<1x32xf32>
    %c0_29 = arith.constant 0 : index
    %c0_30 = arith.constant 0 : index
    %93 = vector.load %arg9[%c0_29, %c0_30] : memref<1x32xf32, #tpu.memory_space<vmem>>, vector<1x32xf32>
    %94 = arith.addf %92, %93 : vector<1x32xf32>
    %95 = math.tanh %94 : vector<1x32xf32>
    %c0_31 = arith.constant 0 : index
    %c0_32 = arith.constant 0 : index
    %96 = vector.load %arg10[%c0_31, %c0_32] : memref<32x128xf32, #tpu.memory_space<vmem>>, vector<32x128xf32>
    %cst_33 = arith.constant dense<0.000000e+00> : vector<1x128xf32>
    %97 = tpu.matmul %95, %96, %cst_33 {dimension_numbers = #tpu.dot_dimension_numbers<[1], [0], [0], [1], [0, 0, 1, 1], [], []>} : vector<1x32xf32>, vector<32x128xf32>, vector<1x128xf32> -> vector<1x128xf32>
    %c0_34 = arith.constant 0 : index
    %c0_35 = arith.constant 0 : index
    %98 = vector.load %arg11[%c0_34, %c0_35] : memref<1x128xf32, #tpu.memory_space<vmem>>, vector<1x128xf32>
    %99 = arith.addf %97, %98 : vector<1x128xf32>
    %cst_36 = arith.constant dense<0xFF800000> : vector<1xf32>
    %100 = vector.multi_reduction <maximumf>, %99, %cst_36 [1] : vector<1x128xf32> to vector<1xf32>
    %101 = vector.shape_cast %100 : vector<1xf32> to vector<1x1xf32>
    %102 = vector.broadcast %101 : vector<1x1xf32> to vector<1x128xf32>
    %103 = arith.subf %99, %102 : vector<1x128xf32>
    %104 = math.exp %103 : vector<1x128xf32>
    %cst_37 = arith.constant dense<0.000000e+00> : vector<1xf32>
    %105 = vector.multi_reduction <add>, %104, %cst_37 [1] : vector<1x128xf32> to vector<1xf32>
    %106 = vector.shape_cast %105 : vector<1xf32> to vector<1x1xf32>
    %107 = vector.broadcast %106 : vector<1x1xf32> to vector<1x128xf32>
    %108 = arith.divf %104, %107 : vector<1x128xf32>
    %109 = vector.shape_cast %108 : vector<1x128xf32> to vector<1x1x128xf32>
    %c0_38 = arith.constant 0 : index
    %c0_39 = arith.constant 0 : index
    %c0_40 = arith.constant 0 : index
    %110 = vector.load %arg12[%c0_38, %c0_39, %c0_40] : memref<1x1x128xf32, #tpu.memory_space<vmem>>, vector<1x1x128xf32>
    tpu.vector_store %arg12[%c0_38, %c0_39, %c0_40], %109 {strides = array<i32>} : memref<1x1x128xf32, #tpu.memory_space<vmem>>, vector<1x1x128xf32>,
    return
  }
  func.func @transform_0(%arg0: i32) -> (i32, i32, i32) {
    %c0_i32 = arith.constant 0 : i32
    %c0_i32_0 = arith.constant 0 : i32
    %c0_i32_1 = arith.constant 0 : i32
    return %arg0, %c0_i32, %c0_i32_0 : i32, i32, i32
  }
  func.func @transform_1(%arg0: i32) -> (i32, i32) {
    %c0_i32 = arith.constant 0 : i32
    %c0_i32_0 = arith.constant 0 : i32
    %c0_i32_1 = arith.constant 0 : i32
    return %c0_i32, %c0_i32_0 : i32, i32
  }
  func.func @transform_2(%arg0: i32) -> (i32, i32) {
    %c0_i32 = arith.constant 0 : i32
    %c0_i32_0 = arith.constant 0 : i32
    %c0_i32_1 = arith.constant 0 : i32
    return %c0_i32, %c0_i32_0 : i32, i32
  }
  func.func @transform_3(%arg0: i32) -> (i32, i32) {
    %c0_i32 = arith.constant 0 : i32
    %c0_i32_0 = arith.constant 0 : i32
    %c0_i32_1 = arith.constant 0 : i32
    return %c0_i32, %c0_i32_0 : i32, i32
  }
  func.func @transform_4(%arg0: i32) -> (i32, i32) {
    %c0_i32 = arith.constant 0 : i32
    %c0_i32_0 = arith.constant 0 : i32
    %c0_i32_1 = arith.constant 0 : i32
    return %c0_i32, %c0_i32_0 : i32, i32
  }
  func.func @transform_5(%arg0: i32) -> (i32, i32) {
    %c0_i32 = arith.constant 0 : i32
    %c0_i32_0 = arith.constant 0 : i32
    %c0_i32_1 = arith.constant 0 : i32
    return %c0_i32, %c0_i32_0 : i32, i32
  }
  func.func @transform_6(%arg0: i32) -> (i32, i32) {
    %c0_i32 = arith.constant 0 : i32
    %c0_i32_0 = arith.constant 0 : i32
    %c0_i32_1 = arith.constant 0 : i32
    return %c0_i32, %c0_i32_0 : i32, i32
  }
  func.func @transform_7(%arg0: i32) -> (i32, i32) {
    %c0_i32 = arith.constant 0 : i32
    %c0_i32_0 = arith.constant 0 : i32
    %c0_i32_1 = arith.constant 0 : i32
    return %c0_i32, %c0_i32_0 : i32, i32
  }
  func.func @transform_8(%arg0: i32) -> (i32, i32) {
    %c0_i32 = arith.constant 0 : i32
    %c0_i32_0 = arith.constant 0 : i32
    %c0_i32_1 = arith.constant 0 : i32
    return %c0_i32, %c0_i32_0 : i32, i32
  }
  func.func @transform_9(%arg0: i32) -> (i32, i32) {
    %c0_i32 = arith.constant 0 : i32
    %c0_i32_0 = arith.constant 0 : i32
    %c0_i32_1 = arith.constant 0 : i32
    return %c0_i32, %c0_i32_0 : i32, i32
  }
  func.func @transform_10(%arg0: i32) -> (i32, i32) {
    %c0_i32 = arith.constant 0 : i32
    %c0_i32_0 = arith.constant 0 : i32
    %c0_i32_1 = arith.constant 0 : i32
    return %c0_i32, %c0_i32_0 : i32, i32
  }
  func.func @transform_11(%arg0: i32) -> (i32, i32, i32) {
    %c0_i32 = arith.constant 0 : i32
    %c0_i32_0 = arith.constant 0 : i32
    %c0_i32_1 = arith.constant 0 : i32
    return %arg0, %c0_i32, %c0_i32_0 : i32, i32, i32
  }
}

</mosaic_0001>

<llo_original>
// kernel: net1_forward.1
$region0: #{net1_forward.1}
  #allocation0 [shape = 'u32[]', space=smem, size = 0x4, offset = 0x4, fixed_abs, tag = 'smem constant byte address 0x4 - core index']
  #allocation1 [shape = 'u32[144,128]{1,0:T(1,128)}', space=vmem, size = 0x12000, scoped, tag = 'internal scratch']
  %s0 = inlined_call_operand.vmem [shape: f32[2,32,160], index: 0, kind: input, shape index: {}]
  %s1 = inlined_call_operand.vmem [shape: f32[160,512], index: 1, kind: input, shape index: {}]
  %s2 = inlined_call_operand.vmem [shape: f32[1,128], index: 2, kind: input, shape index: {}]
  %s3 = inlined_call_operand.vmem [shape: f32[1280,640], index: 3, kind: input, shape index: {}]
  %s4 = inlined_call_operand.vmem [shape: f32[1,640], index: 4, kind: input, shape index: {}]
  %s5 = inlined_call_operand.vmem [shape: f32[800,64], index: 5, kind: input, shape index: {}]
  %s6 = inlined_call_operand.vmem [shape: f32[1,64], index: 6, kind: input, shape index: {}]
  %s7 = inlined_call_operand.vmem [shape: f32[64,32], index: 7, kind: input, shape index: {}]
  %s8 = inlined_call_operand.vmem [shape: f32[1,32], index: 8, kind: input, shape index: {}]
  %s9 = inlined_call_operand.vmem [shape: f32[32,128], index: 9, kind: input, shape index: {}]
  %s10 = inlined_call_operand.vmem [shape: f32[1,128], index: 10, kind: input, shape index: {}]
  %s11 = inlined_call_operand.hbm [shape: f32[2,1,128], index: 11, kind: output, shape index: {}]
  %s12 = sld [smem:[#allocation0]]
  $region77: #{net1_forward.1} parent=0
    _
  %s14 = ssub.s32 1, %s12
  %s15 = scalar_select 0, %s14, %s12
  $region1: #{net1_forward.1} parent=0
    #allocation2 [shape = 'u8[1024]{0}', space=vmem, size = 0x400, scoped, tag = 'output window, operand 0']
    #allocation3 [shape = 's32[2]{0}', space=sflag, size = 0x8, scoped, tag = 'scoped memory for net1_forward.1']
    %16 = vsyncpa [#allocation3], 0
    %s17 = scalar_lea.sflag [#allocation3], 1
    %18 = vsyncpa %s17, 0
    loop: start=0, step=1, limit=4
    $region2: #{net1_forward.1} parent=1 // loop_pre_header
      _
    $region3: #{net1_forward.1} parent=1 // loop_header
      %s20 = sphi 0, %s24
      %p21 = scmp.ge.s32.totalorder %s20, 4
      %s30 = sphi 0, %s32
      %s33 = sphi 0, %s30
      %s34 = sphi 0, %s33
      %s50 = sphi 0, %s34
      %s54 = sphi 0, %s54
      %s56 = sphi 0, %s54
      %s57 = sphi 0, %s56
      %s71 = sphi 0, %s57
      %s75 = sphi 0, %s75
      %s77 = sphi 0, %s75
      %s78 = sphi 0, %s77
      %s92 = sphi 0, %s78
      %s96 = sphi 0, %s96
      %s98 = sphi 0, %s96
      %s99 = sphi 0, %s98
      %s113 = sphi 0, %s99
      %s117 = sphi 0, %s117
      %s119 = sphi 0, %s117
      %s120 = sphi 0, %s119
      %s134 = sphi 0, %s120
      %s138 = sphi 0, %s138
      %s140 = sphi 0, %s138
      %s141 = sphi 0, %s140
      %s155 = sphi 0, %s141
      %s159 = sphi 0, %s159
      %s161 = sphi 0, %s159
      %s162 = sphi 0, %s161
      %s176 = sphi 0, %s162
      %s180 = sphi 0, %s180
      %s182 = sphi 0, %s180
      %s183 = sphi 0, %s182
      %s197 = sphi 0, %s183
      %s201 = sphi 0, %s201
      %s203 = sphi 0, %s201
      %s204 = sphi 0, %s203
      %s218 = sphi 0, %s204
      %s222 = sphi 0, %s222
      %s224 = sphi 0, %s222
      %s225 = sphi 0, %s224
      %s239 = sphi 0, %s225
      %s243 = sphi 0, %s243
      %s245 = sphi 0, %s243
      %s246 = sphi 0, %s245
      %s260 = sphi 0, %s246
      %s266 = sphi 0, %s268
      %s269 = sphi 0, %s266
      %s270 = sphi 0, %s269
      %s286 = sphi 0, %s270
    $region4: #{net1_forward.1} parent=1 // loop_header_branch
      %23 = sbr.rel (%p21) target = $region8
    $region5: #{net1_forward.1} parent=1 // loop_body
      %s25 = ssub.s32 %s20, 1
      %s26 = ssub.s32 %s20, 2
      %s27 = sadd.s32 %s20, 1
      %s28 = ssub.s32 %s20, %s27
      %p29 = scmp.eq.s32.totalorder %s28, 0
      %s31 = sadd.s32 %s30, 1
      %s32 = scalar_select %p29, %s30, %s31
      %p35 = pneg %p29
      %p36 = scmp.eq.s32.totalorder %s20, 1
      %p37 = por %p35, %p36
      %p38 = scmp.ne.s32.totalorder %s30, %s33
      %p39 = scmp.eq.s32.totalorder %s20, 0
      %p40 = por %p38, %p39
      %p41 = scmp.ne.s32.totalorder %s30, %s33
      %p42 = scmp.eq.s32.totalorder %s25, 1
      %p43 = por %p41, %p42
      %p44 = scmp.ne.s32.totalorder %s33, %s34
      %p45 = scmp.eq.s32.totalorder %s25, 0
      %p46 = por %p44, %p45
      %p47 = scmp.ne.s32.totalorder %s33, %s34
      %p48 = scmp.eq.s32.totalorder %s26, 1
      %p49 = por %p47, %p48
      %p51 = scmp.ne.s32.totalorder %s34, %s50
      %p52 = scmp.eq.s32.totalorder %s26, 0
      %p53 = por %p51, %p52
      %s55 = sadd.s32 %s54, 1
      %p58 = scmp.eq.s32.totalorder %s20, 1
      %p59 = scmp.ne.s32.totalorder %s54, %s56
      %p60 = scmp.eq.s32.totalorder %s20, 0
      %p61 = por %p59, %p60
      %p62 = scmp.ne.s32.totalorder %s54, %s56
      %p63 = scmp.eq.s32.totalorder %s25, 1
      %p64 = por %p62, %p63
      %p65 = scmp.ne.s32.totalorder %s56, %s57
      %p66 = scmp.eq.s32.totalorder %s25, 0
      %p67 = por %p65, %p66
      %p68 = scmp.ne.s32.totalorder %s56, %s57
      %p69 = scmp.eq.s32.totalorder %s26, 1
      %p70 = por %p68, %p69
      %p72 = scmp.ne.s32.totalorder %s57, %s71
      %p73 = scmp.eq.s32.totalorder %s26, 0
      %p74 = por %p72, %p73
      %s76 = sadd.s32 %s75, 1
      %p79 = scmp.eq.s32.totalorder %s20, 1
      %p80 = scmp.ne.s32.totalorder %s75, %s77
      %p81 = scmp.eq.s32.totalorder %s20, 0
      %p82 = por %p80, %p81
      %p83 = scmp.ne.s32.totalorder %s75, %s77
      %p84 = scmp.eq.s32.totalorder %s25, 1
      %p85 = por %p83, %p84
      %p86 = scmp.ne.s32.totalorder %s77, %s78
      %p87 = scmp.eq.s32.totalorder %s25, 0
      %p88 = por %p86, %p87
      %p89 = scmp.ne.s32.totalorder %s77, %s78
      %p90 = scmp.eq.s32.totalorder %s26, 1
      %p91 = por %p89, %p90
      %p93 = scmp.ne.s32.totalorder %s78, %s92
      %p94 = scmp.eq.s32.totalorder %s26, 0
      %p95 = por %p93, %p94
      %s97 = sadd.s32 %s96, 1
      %p100 = scmp.eq.s32.totalorder %s20, 1
      %p101 = scmp.ne.s32.totalorder %s96, %s98
      %p102 = scmp.eq.s32.totalorder %s20, 0
      %p103 = por %p101, %p102
      %p104 = scmp.ne.s32.totalorder %s96, %s98
      %p105 = scmp.eq.s32.totalorder %s25, 1
      %p106 = por %p104, %p105
      %p107 = scmp.ne.s32.totalorder %s98, %s99
      %p108 = scmp.eq.s32.totalorder %s25, 0
      %p109 = por %p107, %p108
      %p110 = scmp.ne.s32.totalorder %s98, %s99
      %p111 = scmp.eq.s32.totalorder %s26, 1
      %p112 = por %p110, %p111
      %p114 = scmp.ne.s32.totalorder %s99, %s113
      %p115 = scmp.eq.s32.totalorder %s26, 0
      %p116 = por %p114, %p115
      %s118 = sadd.s32 %s117, 1
      %p121 = scmp.eq.s32.totalorder %s20, 1
      %p122 = scmp.ne.s32.totalorder %s117, %s119
      %p123 = scmp.eq.s32.totalorder %s20, 0
      %p124 = por %p122, %p123
      %p125 = scmp.ne.s32.totalorder %s117, %s119
      %p126 = scmp.eq.s32.totalorder %s25, 1
      %p127 = por %p125, %p126
      %p128 = scmp.ne.s32.totalorder %s119, %s120
      %p129 = scmp.eq.s32.totalorder %s25, 0
      %p130 = por %p128, %p129
      %p131 = scmp.ne.s32.totalorder %s119, %s120
      %p132 = scmp.eq.s32.totalorder %s26, 1
      %p133 = por %p131, %p132
      %p135 = scmp.ne.s32.totalorder %s120, %s134
      %p136 = scmp.eq.s32.totalorder %s26, 0
      %p137 = por %p135, %p136
      %s139 = sadd.s32 %s138, 1
      %p142 = scmp.eq.s32.totalorder %s20, 1
      %p143 = scmp.ne.s32.totalorder %s138, %s140
      %p144 = scmp.eq.s32.totalorder %s20, 0
      %p145 = por %p143, %p144
      %p146 = scmp.ne.s32.totalorder %s138, %s140
      %p147 = scmp.eq.s32.totalorder %s25, 1
      %p148 = por %p146, %p147
      %p149 = scmp.ne.s32.totalorder %s140, %s141
      %p150 = scmp.eq.s32.totalorder %s25, 0
      %p151 = por %p149, %p150
      %p152 = scmp.ne.s32.totalorder %s140, %s141
      %p153 = scmp.eq.s32.totalorder %s26, 1
      %p154 = por %p152, %p153
      %p156 = scmp.ne.s32.totalorder %s141, %s155
      %p157 = scmp.eq.s32.totalorder %s26, 0
      %p158 = por %p156, %p157
      %s160 = sadd.s32 %s159, 1
      %p163 = scmp.eq.s32.totalorder %s20, 1
      %p164 = scmp.ne.s32.totalorder %s159, %s161
      %p165 = scmp.eq.s32.totalorder %s20, 0
      %p166 = por %p164, %p165
      %p167 = scmp.ne.s32.totalorder %s159, %s161
      %p168 = scmp.eq.s32.totalorder %s25, 1
      %p169 = por %p167, %p168
      %p170 = scmp.ne.s32.totalorder %s161, %s162
      %p171 = scmp.eq.s32.totalorder %s25, 0
      %p172 = por %p170, %p171
      %p173 = scmp.ne.s32.totalorder %s161, %s162
      %p174 = scmp.eq.s32.totalorder %s26, 1
      %p175 = por %p173, %p174
      %p177 = scmp.ne.s32.totalorder %s162, %s176
      %p178 = scmp.eq.s32.totalorder %s26, 0
      %p179 = por %p177, %p178
      %s181 = sadd.s32 %s180, 1
      %p184 = scmp.eq.s32.totalorder %s20, 1
      %p185 = scmp.ne.s32.totalorder %s180, %s182
      %p186 = scmp.eq.s32.totalorder %s20, 0
      %p187 = por %p185, %p186
      %p188 = scmp.ne.s32.totalorder %s180, %s182
      %p189 = scmp.eq.s32.totalorder %s25, 1
      %p190 = por %p188, %p189
      %p191 = scmp.ne.s32.totalorder %s182, %s183
      %p192 = scmp.eq.s32.totalorder %s25, 0
      %p193 = por %p191, %p192
      %p194 = scmp.ne.s32.totalorder %s182, %s183
      %p195 = scmp.eq.s32.totalorder %s26, 1
      %p196 = por %p194, %p195
      %p198 = scmp.ne.s32.totalorder %s183, %s197
      %p199 = scmp.eq.s32.totalorder %s26, 0
      %p200 = por %p198, %p199
      %s202 = sadd.s32 %s201, 1
      %p205 = scmp.eq.s32.totalorder %s20, 1
      %p206 = scmp.ne.s32.totalorder %s201, %s203
      %p207 = scmp.eq.s32.totalorder %s20, 0
      %p208 = por %p206, %p207
      %p209 = scmp.ne.s32.totalorder %s201, %s203
      %p210 = scmp.eq.s32.totalorder %s25, 1
      %p211 = por %p209, %p210
      %p212 = scmp.ne.s32.totalorder %s203, %s204
      %p213 = scmp.eq.s32.totalorder %s25, 0
      %p214 = por %p212, %p213
      %p215 = scmp.ne.s32.totalorder %s203, %s204
      %p216 = scmp.eq.s32.totalorder %s26, 1
      %p217 = por %p215, %p216
      %p219 = scmp.ne.s32.totalorder %s204, %s218
      %p220 = scmp.eq.s32.totalorder %s26, 0
      %p221 = por %p219, %p220
      %s223 = sadd.s32 %s222, 1
      %p226 = scmp.eq.s32.totalorder %s20, 1
      %p227 = scmp.ne.s32.totalorder %s222, %s224
      %p228 = scmp.eq.s32.totalorder %s20, 0
      %p229 = por %p227, %p228
      %p230 = scmp.ne.s32.totalorder %s222, %s224
      %p231 = scmp.eq.s32.totalorder %s25, 1
      %p232 = por %p230, %p231
      %p233 = scmp.ne.s32.totalorder %s224, %s225
      %p234 = scmp.eq.s32.totalorder %s25, 0
      %p235 = por %p233, %p234
      %p236 = scmp.ne.s32.totalorder %s224, %s225
      %p237 = scmp.eq.s32.totalorder %s26, 1
      %p238 = por %p236, %p237
      %p240 = scmp.ne.s32.totalorder %s225, %s239
      %p241 = scmp.eq.s32.totalorder %s26, 0
      %p242 = por %p240, %p241
      %s244 = sadd.s32 %s243, 1
      %p247 = scmp.eq.s32.totalorder %s20, 1
      %p248 = scmp.ne.s32.totalorder %s243, %s245
      %p249 = scmp.eq.s32.totalorder %s20, 0
      %p250 = por %p248, %p249
      %p251 = scmp.ne.s32.totalorder %s243, %s245
      %p252 = scmp.eq.s32.totalorder %s25, 1
      %p253 = por %p251, %p252
      %p254 = scmp.ne.s32.totalorder %s245, %s246
      %p255 = scmp.eq.s32.totalorder %s25, 0
      %p256 = por %p254, %p255
      %p257 = scmp.ne.s32.totalorder %s245, %s246
      %p258 = scmp.eq.s32.totalorder %s26, 1
      %p259 = por %p257, %p258
      %p261 = scmp.ne.s32.totalorder %s246, %s260
      %p262 = scmp.eq.s32.totalorder %s26, 0
      %p263 = por %p261, %p262
      %s264 = ssub.s32 %s20, %s27
      %p265 = scmp.eq.s32.totalorder %s264, 0
      %s267 = sadd.s32 %s266, 1
      %s268 = scalar_select %p265, %s266, %s267
      %p271 = pneg %p265
      %p272 = scmp.eq.s32.totalorder %s20, 1
      %p273 = por %p271, %p272
      %p274 = scmp.ne.s32.totalorder %s266, %s269
      %p275 = scmp.eq.s32.totalorder %s20, 0
      %p276 = por %p274, %p275
      %p277 = scmp.ne.s32.totalorder %s266, %s269
      %p278 = scmp.eq.s32.totalorder %s25, 1
      %p279 = por %p277, %p278
      %p280 = scmp.ne.s32.totalorder %s269, %s270
      %p281 = scmp.eq.s32.totalorder %s25, 0
      %p282 = por %p280, %p281
      %p283 = scmp.ne.s32.totalorder %s269, %s270
      %p284 = scmp.eq.s32.totalorder %s26, 1
      %p285 = por %p283, %p284
      %p287 = scmp.ne.s32.totalorder %s270, %s286
      %p288 = scmp.eq.s32.totalorder %s26, 0
      %p289 = por %p287, %p288
      %p290 = scmp.le.s32.totalorder 1, %s20
      %p291 = scmp.lt.s32.totalorder %s20, 3
      %p292 = pnand %p290, %p291
      %p293 = pneg %p292
      // Predicated region
      $region9: #{net1_forward.1} parent=5 // pred_check
        _
      $region10: #{net1_forward.1} parent=5 // pred_check_branch
        %295 = sbr.rel (%p292) target = $region12
      $region11: #{net1_forward.1} parent=5 // pred_region
        %s296 = ssub.s32 %s20, 1
        // Predicated region
        $region13: #{net1_forward.1} parent=11 // pred_check
          %p297 = pneg %p67
        $region14: #{net1_forward.1} parent=11 // pred_check_branch
          %299 = sbr.rel (%p297) target = $region16
        $region15: #{net1_forward.1} parent=11 // pred_region
          _
        $region16: #{net1_forward.1} parent=11 // pred_fallthru
          _
        // Predicated region
        $region17: #{net1_forward.1} parent=11 // pred_check
          %p300 = pneg %p88
        $region18: #{net1_forward.1} parent=11 // pred_check_branch
          %302 = sbr.rel (%p300) target = $region20
        $region19: #{net1_forward.1} parent=11 // pred_region
          _
        $region20: #{net1_forward.1} parent=11 // pred_fallthru
          _
        // Predicated region
        $region21: #{net1_forward.1} parent=11 // pred_check
          %p303 = pneg %p109
        $region22: #{net1_forward.1} parent=11 // pred_check_branch
          %305 = sbr.rel (%p303) target = $region24
        $region23: #{net1_forward.1} parent=11 // pred_region
          _
        $region24: #{net1_forward.1} parent=11 // pred_fallthru
          _
        // Predicated region
        $region25: #{net1_forward.1} parent=11 // pred_check
          %p306 = pneg %p130
        $region26: #{net1_forward.1} parent=11 // pred_check_branch
          %308 = sbr.rel (%p306) target = $region28
        $region27: #{net1_forward.1} parent=11 // pred_region
          _
        $region28: #{net1_forward.1} parent=11 // pred_fallthru
          _
        // Predicated region
        $region29: #{net1_forward.1} parent=11 // pred_check
          %p309 = pneg %p151
        $region30: #{net1_forward.1} parent=11 // pred_check_branch
          %311 = sbr.rel (%p309) target = $region32
        $region31: #{net1_forward.1} parent=11 // pred_region
          _
        $region32: #{net1_forward.1} parent=11 // pred_fallthru
          _
        // Predicated region
        $region33: #{net1_forward.1} parent=11 // pred_check
          %p312 = pneg %p172
        $region34: #{net1_forward.1} parent=11 // pred_check_branch
          %314 = sbr.rel (%p312) target = $region36
        $region35: #{net1_forward.1} parent=11 // pred_region
          _
        $region36: #{net1_forward.1} parent=11 // pred_fallthru
          _
        // Predicated region
        $region37: #{net1_forward.1} parent=11 // pred_check
          %p315 = pneg %p193
        $region38: #{net1_forward.1} parent=11 // pred_check_branch
          %317 = sbr.rel (%p315) target = $region40
        $region39: #{net1_forward.1} parent=11 // pred_region
          _
        $region40: #{net1_forward.1} parent=11 // pred_fallthru
          _
        // Predicated region
        $region41: #{net1_forward.1} parent=11 // pred_check
          %p318 = pneg %p214
        $region42: #{net1_forward.1} parent=11 // pred_check_branch
          %320 = sbr.rel (%p318) target = $region44
        $region43: #{net1_forward.1} parent=11 // pred_region
          _
        $region44: #{net1_forward.1} parent=11 // pred_fallthru
          _
        // Predicated region
        $region45: #{net1_forward.1} parent=11 // pred_check
          %p321 = pneg %p235
        $region46: #{net1_forward.1} parent=11 // pred_check_branch
          %323 = sbr.rel (%p321) target = $region48
        $region47: #{net1_forward.1} parent=11 // pred_region
          _
        $region48: #{net1_forward.1} parent=11 // pred_fallthru
          _
        // Predicated region
        $region49: #{net1_forward.1} parent=11 // pred_check
          %p324 = pneg %p256
        $region50: #{net1_forward.1} parent=11 // pred_check_branch
          %326 = sbr.rel (%p324) target = $region52
        $region51: #{net1_forward.1} parent=11 // pred_region
          _
        $region52: #{net1_forward.1} parent=11 // pred_fallthru
          _
      $region12: #{net1_forward.1} parent=5 // pred_fallthru
        _
      %p327 = scmp.lt.s32.totalorder %s20, 2
      // Predicated region
      $region53: #{net1_forward.1} parent=5 // pred_check
        %p328 = pneg %p327
      $region54: #{net1_forward.1} parent=5 // pred_check_branch
        %330 = sbr.rel (%p328) target = $region56
      $region55: #{net1_forward.1} parent=5 // pred_region
        // Predicated region
        $region57: #{net1_forward.1} parent=55 // pred_check
          %p331 = pneg %p40
        $region58: #{net1_forward.1} parent=55 // pred_check_branch
          %333 = sbr.rel (%p331) target = $region60
        $region59: #{net1_forward.1} parent=55 // pred_region
          %p334 = scmp.lt.s32.totalorder %s20, 1
          %s335 = scalar_select %p334, %s20, 1
          %s336 = smul.addr %s335, 8
          %s337 = smul.addr %s336, 8
          %s338 = scalar_lea.vmem %s0, %s337
        $region60: #{net1_forward.1} parent=55 // pred_fallthru
          _
      $region56: #{net1_forward.1} parent=5 // pred_fallthru
        _
      %p339 = scmp.le.s32.totalorder 1, %s20
      %p340 = scmp.lt.s32.totalorder %s20, 3
      %p341 = pnand %p339, %p340
      %p342 = pneg %p341
      // Predicated region
      $region61: #{net1_forward.1} parent=5 // pred_check
        _
      $region62: #{net1_forward.1} parent=5 // pred_check_branch
        %344 = sbr.rel (%p341) target = $region64
      $region63: #{net1_forward.1} parent=5 // pred_region
        %s345 = ssub.s32 %s20, 1
        %p346 = scmp.lt.s32.totalorder %s25, 1
        %s347 = scalar_select %p346, %s25, 1
        %s348 = smul.addr %s347, 8
        %s349 = smul.addr %s348, 8
        %s350 = scalar_lea.vmem %s0, %s349
        %p351 = pneg %p46
        %p352 = pneg %p43
        %p353 = pneg %p67
        %p354 = pneg %p64
        %p355 = pneg %p88
        %p356 = pneg %p85
        %p357 = pneg %p109
        %p358 = pneg %p106
        %p359 = pneg %p130
        %p360 = pneg %p127
        %p361 = pneg %p151
        %p362 = pneg %p148
        %p363 = pneg %p172
        %p364 = pneg %p169
        %p365 = pneg %p193
        %p366 = pneg %p190
        %p367 = pneg %p214
        %p368 = pneg %p211
        %p369 = pneg %p235
        %p370 = pneg %p232
        %p371 = pneg %p256
        %p372 = pneg %p253
        %p373 = pneg %p282
        %p374 = pneg %p279
        %s375 = sand.u32 %s269, 1
        %s376 = scalar_lea.sflag [#allocation3], %s375
        %s377 = sand.u32 %s269, 1
        %s378 = scalar_lea.vmem [#allocation2], %s377
        %p379 = scmp.lt.s32.totalorder %s25, 1
        %s380 = scalar_select %p379, %s25, 1
        %s381 = smul.addr %s380, 8
        %s382 = smul.addr %s381, 8
        %s383 = scalar_lea.vmem %s0, %s382
        %v384 = vld [vmem:[%s383] sm:$0xff]
        %v385 = vld [vmem:[%s383 + $0x8] sm:$0xff]
        %v386 = vld [vmem:[%s383 + $0x10] sm:$0xff]
        %v387 = vld [vmem:[%s383 + $0x18] sm:$0xff]
        %v388 = vld [vmem:[%s383 + $0x20] sm:$0xff]
        %v389 = vld [vmem:[%s383 + $0x28] sm:$0xff]
        %v390 = vld [vmem:[%s383 + $0x30] sm:$0xff]
        %v391 = vld [vmem:[%s383 + $0x38] sm:$0xff]
        %v392 = vld [vmem:[%s1] sm:$0xff]
        %v393 = vld [vmem:[%s1 + $0x8] sm:$0xff]
        %v394 = vld [vmem:[%s1 + $0x10] sm:$0xff]
        %v395 = vld [vmem:[%s1 + $0x18] sm:$0xff]
        %v396 = vld [vmem:[%s1 + $0x20] sm:$0xff]
        %v397 = vld [vmem:[%s1 + $0x28] sm:$0xff]
        %v398 = vld [vmem:[%s1 + $0x30] sm:$0xff]
        %v399 = vld [vmem:[%s1 + $0x38] sm:$0xff]
        %v400 = vld [vmem:[%s1 + $0x40] sm:$0xff]
        %v401 = vld [vmem:[%s1 + $0x48] sm:$0xff]
        %v402 = vld [vmem:[%s1 + $0x50] sm:$0xff]
        %v403 = vld [vmem:[%s1 + $0x58] sm:$0xff]
        %v404 = vld [vmem:[%s1 + $0x60] sm:$0xff]
        %v405 = vld [vmem:[%s1 + $0x68] sm:$0xff]
        %v406 = vld [vmem:[%s1 + $0x70] sm:$0xff]
        %v407 = vld [vmem:[%s1 + $0x78] sm:$0xff]
        %v408 = vld [vmem:[%s1 + $0x80] sm:$0xff]
        %v409 = vld [vmem:[%s1 + $0x88] sm:$0xff]
        %v410 = vld [vmem:[%s1 + $0x90] sm:$0xff]
        %v411 = vld [vmem:[%s1 + $0x98] sm:$0xff]
        %v412 = vld [vmem:[%s1 + $0xa0] sm:$0xff]
        %v413 = vld [vmem:[%s1 + $0xa8] sm:$0xff]
        %v414 = vld [vmem:[%s1 + $0xb0] sm:$0xff]
        %v415 = vld [vmem:[%s1 + $0xb8] sm:$0xff]
        %v416 = vld [vmem:[%s1 + $0xc0] sm:$0xff]
        %v417 = vld [vmem:[%s1 + $0xc8] sm:$0xff]
        %v418 = vld [vmem:[%s1 + $0xd0] sm:$0xff]
        %v419 = vld [vmem:[%s1 + $0xd8] sm:$0xff]
        %v420 = vld [vmem:[%s1 + $0xe0] sm:$0xff]
        %v421 = vld [vmem:[%s1 + $0xe8] sm:$0xff]
        %v422 = vld [vmem:[%s1 + $0xf0] sm:$0xff]
        %v423 = vld [vmem:[%s1 + $0xf8] sm:$0xff]
        %v424 = vld [vmem:[%s1 + $0x100] sm:$0xff]
        %v425 = vld [vmem:[%s1 + $0x108] sm:$0xff]
        %v426 = vld [vmem:[%s1 + $0x110] sm:$0xff]
        %v427 = vld [vmem:[%s1 + $0x118] sm:$0xff]
        %v428 = vld [vmem:[%s1 + $0x120] sm:$0xff]
        %v429 = vld [vmem:[%s1 + $0x128] sm:$0xff]
        %v430 = vld [vmem:[%s1 + $0x130] sm:$0xff]
        %v431 = vld [vmem:[%s1 + $0x138] sm:$0xff]
        %v432 = vld [vmem:[%s1 + $0x140] sm:$0xff]
        %v433 = vld [vmem:[%s1 + $0x148] sm:$0xff]
        %v434 = vld [vmem:[%s1 + $0x150] sm:$0xff]
        %v435 = vld [vmem:[%s1 + $0x158] sm:$0xff]
        %v436 = vld [vmem:[%s1 + $0x160] sm:$0xff]
        %v437 = vld [vmem:[%s1 + $0x168] sm:$0xff]
        %v438 = vld [vmem:[%s1 + $0x170] sm:$0xff]
        %v439 = vld [vmem:[%s1 + $0x178] sm:$0xff]
        %v440 = vld [vmem:[%s1 + $0x180] sm:$0xff]
        %v441 = vld [vmem:[%s1 + $0x188] sm:$0xff]
        %v442 = vld [vmem:[%s1 + $0x190] sm:$0xff]
        %v443 = vld [vmem:[%s1 + $0x198] sm:$0xff]
        %v444 = vld [vmem:[%s1 + $0x1a0] sm:$0xff]
        %v445 = vld [vmem:[%s1 + $0x1a8] sm:$0xff]
        %v446 = vld [vmem:[%s1 + $0x1b0] sm:$0xff]
        %v447 = vld [vmem:[%s1 + $0x1b8] sm:$0xff]
        %v448 = vld [vmem:[%s1 + $0x1c0] sm:$0xff]
        %v449 = vld [vmem:[%s1 + $0x1c8] sm:$0xff]
        %v450 = vld [vmem:[%s1 + $0x1d0] sm:$0xff]
        %v451 = vld [vmem:[%s1 + $0x1d8] sm:$0xff]
        %v452 = vld [vmem:[%s1 + $0x1e0] sm:$0xff]
        %v453 = vld [vmem:[%s1 + $0x1e8] sm:$0xff]
        %v454 = vld [vmem:[%s1 + $0x1f0] sm:$0xff]
        %v455 = vld [vmem:[%s1 + $0x1f8] sm:$0xff]
        %v456 = vld [vmem:[%s1 + $0x200] sm:$0xff]
        %v457 = vld [vmem:[%s1 + $0x208] sm:$0xff]
        %v458 = vld [vmem:[%s1 + $0x210] sm:$0xff]
        %v459 = vld [vmem:[%s1 + $0x218] sm:$0xff]
        %v460 = vld [vmem:[%s1 + $0x220] sm:$0xff]
        %v461 = vld [vmem:[%s1 + $0x228] sm:$0xff]
        %v462 = vld [vmem:[%s1 + $0x230] sm:$0xff]
        %v463 = vld [vmem:[%s1 + $0x238] sm:$0xff]
        %v464 = vld [vmem:[%s1 + $0x240] sm:$0xff]
        %v465 = vld [vmem:[%s1 + $0x248] sm:$0xff]
        %v466 = vld [vmem:[%s1 + $0x250] sm:$0xff]
        %v467 = vld [vmem:[%s1 + $0x258] sm:$0xff]
        %v468 = vld [vmem:[%s1 + $0x260] sm:$0xff]
        %v469 = vld [vmem:[%s1 + $0x268] sm:$0xff]
        %v470 = vld [vmem:[%s1 + $0x270] sm:$0xff]
        %v471 = vld [vmem:[%s1 + $0x278] sm:$0xff]
        %vm472 = vcmask 261120
        %v474 = vsel %vm472, %v385, 0
        %v477 = vsel %vm472, %v387, 0
        %v480 = vsel %vm472, %v389, 0
        %v483 = vsel %vm472, %v391, 0
        %485 = vmatprep.subr.mxu0 %v393
        %486 = vmatpush1.msra.mxu0 %v392
        %487 = vmatprep.subr.mxu0 %v397
        %488 = vmatpush1.msra.mxu0 %v396
        %489 = vmatprep.subr.mxu0 %v401
        %490 = vmatpush1.msra.mxu0 %v400
        %491 = vmatprep.subr.mxu0 %v405
        %492 = vmatpush1.msra.mxu0 %v404
        %493 = vmatprep.subr.mxu0 %v409
        %494 = vmatpush1.msra.mxu0 %v408
        %495 = vmatprep.subr.mxu0 %v413
        %496 = vmatpush1.msra.mxu0 %v412
        %497 = vmatprep.subr.mxu0 %v417
        %498 = vmatpush1.msra.mxu0 %v416
        %499 = vmatprep.subr.mxu0 %v421
        %500 = vmatpush1.msra.mxu0 %v420
        %501 = vmatprep.subr.mxu0 %v425
        %502 = vmatpush1.msra.mxu0 %v424
        %503 = vmatprep.subr.mxu0 %v429
        %504 = vmatpush1.msra.mxu0 %v428
        %505 = vmatprep.subr.mxu0 %v433
        %506 = vmatpush1.msra.mxu0 %v432
        %507 = vmatprep.subr.mxu0 %v437
        %508 = vmatpush1.msra.mxu0 %v436
        %509 = vmatprep.subr.mxu0 %v441
        %510 = vmatpush1.msra.mxu0 %v440
        %511 = vmatprep.subr.mxu0 %v445
        %512 = vmatpush1.msra.mxu0 %v444
        %513 = vmatprep.subr.mxu0 %v449
        %514 = vmatpush1.msra.mxu0 %v448
        %515 = vmatprep.subr.mxu0 %v453
        %516 = vmatpush1.msra.mxu0 %v452
        %517 = vmatprep.subr.mxu0 %v457
        %518 = vmatpush1.msra.mxu0 %v456
        %519 = vmatprep.subr.mxu0 %v461
        %520 = vmatpush1.msra.mxu0 %v460
        %521 = vmatprep.subr.mxu0 %v465
        %522 = vmatpush1.msra.mxu0 %v464
        %523 = vmatprep.subr.mxu0 %v469
        %524 = vmatpush1.msra.mxu0 %v468
        %525 = vmatprep.subr.mxu0 0.0
        %526 = vmatpush1.msra.mxu0 0.0
        %527 = vmatprep.subr.mxu0 0.0
        %528 = vmatpush1.msra.mxu0 0.0
        %529 = vmatprep.subr.mxu0 0.0
        %530 = vmatpush1.msra.mxu0 0.0
        %531 = vmatprep.subr.mxu0 0.0
        %532 = vmatpush1.msra.mxu0 0.0
        %533 = vmatprep.subr.mxu0 0.0
        %534 = vmatpush1.msra.mxu0 0.0
        %535 = vmatprep.subr.mxu0 0.0
        %536 = vmatpush1.msra.mxu0 0.0
        %537 = vmatprep.subr.mxu0 0.0
        %538 = vmatpush1.msra.mxu0 0.0
        %539 = vmatprep.subr.mxu0 0.0
        %540 = vmatpush1.msra.mxu0 0.0
        %541 = vmatprep.subr.mxu0 0.0
        %542 = vmatpush1.msra.mxu0 0.0
        %543 = vmatprep.subr.mxu0 0.0
        %544 = vmatpush1.msra.mxu0 0.0
        %545 = vmatprep.subr.mxu0 0.0
        %546 = vmatpush1.msra.mxu0 0.0
        %547 = vmatprep.subr.mxu0 0.0
        %548 = vmatpush1.msra.mxu0 0.0
        %549 = vmatprep.mubr.f32.mxu0 %v474
        %550 = vmatmul.mubr.f32.gmra.mrb[0].mxu0 %v384
        %v551 = vpop.f32.mrb[0].mxu0
        %v552 = vadd.f32 0.0, %v551
        %v553 = vpop.f32.mrb[0].mxu0
        %v554 = vadd.f32 0.0, %v553
        %555 = vmatprep.mubr.f32.mxu0 %v477
        %556 = vmatmul.mubr.f32.gmra.mrb[0].mxu0 %v386
        %v557 = vpop.f32.mrb[0].mxu0
        %v558 = vadd.f32 0.0, %v557
        %v559 = vpop.f32.mrb[0].mxu0
        %v560 = vadd.f32 0.0, %v559
        %561 = vmatprep.mubr.f32.mxu0 %v480
        %562 = vmatmul.mubr.f32.gmra.mrb[0].mxu0 %v388
        %v563 = vpop.f32.mrb[0].mxu0
        %v564 = vadd.f32 0.0, %v563
        %v565 = vpop.f32.mrb[0].mxu0
        %v566 = vadd.f32 0.0, %v565
        %567 = vmatprep.mubr.f32.mxu0 %v483
        %568 = vmatmul.mubr.f32.gmra.mrb[0].mxu0 %v390
        %v569 = vpop.f32.mrb[0].mxu0
        %v570 = vadd.f32 0.0, %v569
        %v571 = vpop.f32.mrb[0].mxu0
        %v572 = vadd.f32 0.0, %v571
        %573 = vdwg.mxu0
        %574 = vmatprep.subr.mxu0 %v395
        %575 = vmatpush1.msra.mxu0 %v394
        %576 = vmatprep.subr.mxu0 %v399
        %577 = vmatpush1.msra.mxu0 %v398
        %578 = vmatprep.subr.mxu0 %v403
        %579 = vmatpush1.msra.mxu0 %v402
        %580 = vmatprep.subr.mxu0 %v407
        %581 = vmatpush1.msra.mxu0 %v406
        %582 = vmatprep.subr.mxu0 %v411
        %583 = vmatpush1.msra.mxu0 %v410
        %584 = vmatprep.subr.mxu0 %v415
        %585 = vmatpush1.msra.mxu0 %v414
        %586 = vmatprep.subr.mxu0 %v419
        %587 = vmatpush1.msra.mxu0 %v418
        %588 = vmatprep.subr.mxu0 %v423
        %589 = vmatpush1.msra.mxu0 %v422
        %590 = vmatprep.subr.mxu0 %v427
        %591 = vmatpush1.msra.mxu0 %v426
        %592 = vmatprep.subr.mxu0 %v431
        %593 = vmatpush1.msra.mxu0 %v430
        %594 = vmatprep.subr.mxu0 %v435
        %595 = vmatpush1.msra.mxu0 %v434
        %596 = vmatprep.subr.mxu0 %v439
        %597 = vmatpush1.msra.mxu0 %v438
        %598 = vmatprep.subr.mxu0 %v443
        %599 = vmatpush1.msra.mxu0 %v442
        %600 = vmatprep.subr.mxu0 %v447
        %601 = vmatpush1.msra.mxu0 %v446
        %602 = vmatprep.subr.mxu0 %v451
        %603 = vmatpush1.msra.mxu0 %v450
        %604 = vmatprep.subr.mxu0 %v455
        %605 = vmatpush1.msra.mxu0 %v454
        %606 = vmatprep.subr.mxu0 %v459
        %607 = vmatpush1.msra.mxu0 %v458
        %608 = vmatprep.subr.mxu0 %v463
        %609 = vmatpush1.msra.mxu0 %v462
        %610 = vmatprep.subr.mxu0 %v467
        %611 = vmatpush1.msra.mxu0 %v466
        %612 = vmatprep.subr.mxu0 %v471
        %613 = vmatpush1.msra.mxu0 %v470
        %614 = vmatprep.subr.mxu0 0.0
        %615 = vmatpush1.msra.mxu0 0.0
        %616 = vmatprep.subr.mxu0 0.0
        %617 = vmatpush1.msra.mxu0 0.0
        %618 = vmatprep.subr.mxu0 0.0
        %619 = vmatpush1.msra.mxu0 0.0
        %620 = vmatprep.subr.mxu0 0.0
        %621 = vmatpush1.msra.mxu0 0.0
        %622 = vmatprep.subr.mxu0 0.0
        %623 = vmatpush1.msra.mxu0 0.0
        %624 = vmatprep.subr.mxu0 0.0
        %625 = vmatpush1.msra.mxu0 0.0
        %626 = vmatprep.subr.mxu0 0.0
        %627 = vmatpush1.msra.mxu0 0.0
        %628 = vmatprep.subr.mxu0 0.0
        %629 = vmatpush1.msra.mxu0 0.0
        %630 = vmatprep.subr.mxu0 0.0
        %631 = vmatpush1.msra.mxu0 0.0
        %632 = vmatprep.subr.mxu0 0.0
        %633 = vmatpush1.msra.mxu0 0.0
        %634 = vmatprep.subr.mxu0 0.0
        %635 = vmatpush1.msra.mxu0 0.0
        %636 = vmatprep.subr.mxu0 0.0
        %637 = vmatpush1.msra.mxu0 0.0
        %638 = vmatprep.mubr.f32.mxu0 %v474
        %639 = vmatmul.mubr.f32.gmra.mrb[0].mxu0 %v384
        %v640 = vpop.f32.mrb[0].mxu0
        %v641 = vadd.f32 0.0, %v640
        %v642 = vpop.f32.mrb[0].mxu0
        %v643 = vadd.f32 0.0, %v642
        %644 = vmatprep.mubr.f32.mxu0 %v477
        %645 = vmatmul.mubr.f32.gmra.mrb[0].mxu0 %v386
        %v646 = vpop.f32.mrb[0].mxu0
        %v647 = vadd.f32 0.0, %v646
        %v648 = vpop.f32.mrb[0].mxu0
        %v649 = vadd.f32 0.0, %v648
        %650 = vmatprep.mubr.f32.mxu0 %v480
        %651 = vmatmul.mubr.f32.gmra.mrb[0].mxu0 %v388
        %v652 = vpop.f32.mrb[0].mxu0
        %v653 = vadd.f32 0.0, %v652
        %v654 = vpop.f32.mrb[0].mxu0
        %v655 = vadd.f32 0.0, %v654
        %656 = vmatprep.mubr.f32.mxu0 %v483
        %657 = vmatmul.mubr.f32.gmra.mrb[0].mxu0 %v390
        %v658 = vpop.f32.mrb[0].mxu0
        %v659 = vadd.f32 0.0, %v658
        %v660 = vpop.f32.mrb[0].mxu0
        %v661 = vadd.f32 0.0, %v660
        %662 = vdwg.mxu0
        %v663 = vmax.f32 %v552, %v554
        %v664 = vmax.f32 %v558, %v560
        %v665 = vmax.f32 %v564, %v566
        %v666 = vmax.f32 %v570, %v572
        %v667 = vmax.f32 %v641, %v643
        %v668 = vmax.f32 %v647, %v649
        %v669 = vmax.f32 %v653, %v655
        %v670 = vmax.f32 %v659, %v661
        %v671 = vmax.f32 %v663, %v667
        %v672 = vmax.f32 %v664, %v668
        %v673 = vmax.f32 %v665, %v669
        %v674 = vmax.f32 %v666, %v670
        %v675 = vld [vmem:[%s2] sm:$0x1]
        %v677 = vlaneseq
        %v678 = vshrl.u32 %v677, 7
        %v679 = vsub.s32 0, %v678
        %v680 = vrot.slane %v675, %v679
        %v682 = vadd.f32 %v671, %v680
        %v683 = vadd.f32 %v672, %v680
        %v684 = vadd.f32 %v673, %v680
        %v685 = vadd.f32 %v674, %v680
        %v686 = vmax.f32 %v682, 0.0
        %v687 = vmax.f32 %v683, 0.0
        %v688 = vmax.f32 %v684, 0.0
        %v689 = vmax.f32 %v685, 0.0
        %v691 = vrot.slane %v686, 1
        %vm693 = vcmask 1046528
        %v694 = vsel %vm693, %v691, 0.0
        %v696 = vrot.slane %v687, 1
        %v698 = vsel %vm693, %v696, 0.0
        %v700 = vrot.slane %v688, 1
        %v702 = vsel %vm693, %v700, 0.0
        %v704 = vrot.slane %v689, 1
        %v706 = vsel %vm693, %v704, 0.0
        %v707 = vrot.slane %v686, 2
        %vm709 = vcmask 1045504
        %v710 = vsel %vm709, %v707, 0.0
        %v711 = vrot.slane %v687, 2
        %v713 = vsel %vm709, %v711, 0.0
        %v714 = vld [vmem:[%s3] sm:$0xff]
        %v715 = vld [vmem:[%s3 + $0x8] sm:$0xff]
        %v716 = vld [vmem:[%s3 + $0x10] sm:$0xff]
        %v717 = vld [vmem:[%s3 + $0x18] sm:$0xff]
        %v718 = vld [vmem:[%s3 + $0x20] sm:$0xff]
        %v719 = vld [vmem:[%s3 + $0x28] sm:$0xff]
        %v720 = vld [vmem:[%s3 + $0x30] sm:$0xff]
        %v721 = vld [vmem:[%s3 + $0x38] sm:$0xff]
        %v722 = vld [vmem:[%s3 + $0x40] sm:$0xff]
        %v723 = vld [vmem:[%s3 + $0x48] sm:$0xff]
        %v724 = vld [vmem:[%s3 + $0x50] sm:$0xff]
        %v725 = vld [vmem:[%s3 + $0x58] sm:$0xff]
        %v726 = vld [vmem:[%s3 + $0x60] sm:$0xff]
        %v727 = vld [vmem:[%s3 + $0x68] sm:$0xff]
        %v728 = vld [vmem:[%s3 + $0x70] sm:$0xff]
        %v729 = vld [vmem:[%s3 + $0x78] sm:$0xff]
        %v730 = vld [vmem:[%s3 + $0x80] sm:$0xff]
        %v731 = vld [vmem:[%s3 + $0x88] sm:$0xff]
        %v732 = vld [vmem:[%s3 + $0x90] sm:$0xff]
        %v733 = vld [vmem:[%s3 + $0x98] sm:$0xff]
        %v734 = vld [vmem:[%s3 + $0xa0] sm:$0xff]
        %v735 = vld [vmem:[%s3 + $0xa8] sm:$0xff]
        %v736 = vld [vmem:[%s3 + $0xb0] sm:$0xff]
        %v737 = vld [vmem:[%s3 + $0xb8] sm:$0xff]
        %v738 = vld [vmem:[%s3 + $0xc0] sm:$0xff]
        %v739 = vld [vmem:[%s3 + $0xc8] sm:$0xff]
        %v740 = vld [vmem:[%s3 + $0xd0] sm:$0xff]
        %v741 = vld [vmem:[%s3 + $0xd8] sm:$0xff]
        %v742 = vld [vmem:[%s3 + $0xe0] sm:$0xff]
        %v743 = vld [vmem:[%s3 + $0xe8] sm:$0xff]
        %v744 = vld [vmem:[%s3 + $0xf0] sm:$0xff]
        %v745 = vld [vmem:[%s3 + $0xf8] sm:$0xff]
        %v746 = vld [vmem:[%s3 + $0x100] sm:$0xff]
        %v747 = vld [vmem:[%s3 + $0x108] sm:$0xff]
        %v748 = vld [vmem:[%s3 + $0x110] sm:$0xff]
        %v749 = vld [vmem:[%s3 + $0x118] sm:$0xff]
        %v750 = vld [vmem:[%s3 + $0x120] sm:$0xff]
        %v751 = vld [vmem:[%s3 + $0x128] sm:$0xff]
        %v752 = vld [vmem:[%s3 + $0x130] sm:$0xff]
        %v753 = vld [vmem:[%s3 + $0x138] sm:$0xff]
        %v754 = vld [vmem:[%s3 + $0x140] sm:$0xff]
        %v755 = vld [vmem:[%s3 + $0x148] sm:$0xff]
        %v756 = vld [vmem:[%s3 + $0x150] sm:$0xff]
        %v757 = vld [vmem:[%s3 + $0x158] sm:$0xff]
        %v758 = vld [vmem:[%s3 + $0x160] sm:$0xff]
        %v759 = vld [vmem:[%s3 + $0x168] sm:$0xff]
        %v760 = vld [vmem:[%s3 + $0x170] sm:$0xff]
        %v761 = vld [vmem:[%s3 + $0x178] sm:$0xff]
        %v762 = vld [vmem:[%s3 + $0x180] sm:$0xff]
        %v763 = vld [vmem:[%s3 + $0x188] sm:$0xff]
        %v764 = vld [vmem:[%s3 + $0x190] sm:$0xff]
        %v765 = vld [vmem:[%s3 + $0x198] sm:$0xff]
        %v766 = vld [vmem:[%s3 + $0x1a0] sm:$0xff]
        %v767 = vld [vmem:[%s3 + $0x1a8] sm:$0xff]
        %v768 = vld [vmem:[%s3 + $0x1b0] sm:$0xff]
        %v769 = vld [vmem:[%s3 + $0x1b8] sm:$0xff]
        %v770 = vld [vmem:[%s3 + $0x1c0] sm:$0xff]
        %v771 = vld [vmem:[%s3 + $0x1c8] sm:$0xff]
        %v772 = vld [vmem:[%s3 + $0x1d0] sm:$0xff]
        %v773 = vld [vmem:[%s3 + $0x1d8] sm:$0xff]
        %v774 = vld [vmem:[%s3 + $0x1e0] sm:$0xff]
        %v775 = vld [vmem:[%s3 + $0x1e8] sm:$0xff]
        %v776 = vld [vmem:[%s3 + $0x1f0] sm:$0xff]
        %v777 = vld [vmem:[%s3 + $0x1f8] sm:$0xff]
        %v778 = vld [vmem:[%s3 + $0x200] sm:$0xff]
        %v779 = vld [vmem:[%s3 + $0x208] sm:$0xff]
        %v780 = vld [vmem:[%s3 + $0x210] sm:$0xff]
        %v781 = vld [vmem:[%s3 + $0x218] sm:$0xff]
        %v782 = vld [vmem:[%s3 + $0x220] sm:$0xff]
        %v783 = vld [vmem:[%s3 + $0x228] sm:$0xff]
        %v784 = vld [vmem:[%s3 + $0x230] sm:$0xff]
        %v785 = vld [vmem:[%s3 + $0x238] sm:$0xff]
        %v786 = vld [vmem:[%s3 + $0x240] sm:$0xff]
        %v787 = vld [vmem:[%s3 + $0x248] sm:$0xff]
        %v788 = vld [vmem:[%s3 + $0x250] sm:$0xff]
        %v789 = vld [vmem:[%s3 + $0x258] sm:$0xff]
        %v790 = vld [vmem:[%s3 + $0x260] sm:$0xff]
        %v791 = vld [vmem:[%s3 + $0x268] sm:$0xff]
        %v792 = vld [vmem:[%s3 + $0x270] sm:$0xff]
        %v793 = vld [vmem:[%s3 + $0x278] sm:$0xff]
        %v794 = vld [vmem:[%s3 + $0x280] sm:$0xff]
        %v795 = vld [vmem:[%s3 + $0x288] sm:$0xff]
        %v796 = vld [vmem:[%s3 + $0x290] sm:$0xff]
        %v797 = vld [vmem:[%s3 + $0x298] sm:$0xff]
        %v798 = vld [vmem:[%s3 + $0x2a0] sm:$0xff]
        %v799 = vld [vmem:[%s3 + $0x2a8] sm:$0xff]
        %v800 = vld [vmem:[%s3 + $0x2b0] sm:$0xff]
        %v801 = vld [vmem:[%s3 + $0x2b8] sm:$0xff]
        %v802 = vld [vmem:[%s3 + $0x2c0] sm:$0xff]
        %v803 = vld [vmem:[%s3 + $0x2c8] sm:$0xff]
        %v804 = vld [vmem:[%s3 + $0x2d0] sm:$0xff]
        %v805 = vld [vmem:[%s3 + $0x2d8] sm:$0xff]
        %v806 = vld [vmem:[%s3 + $0x2e0] sm:$0xff]
        %v807 = vld [vmem:[%s3 + $0x2e8] sm:$0xff]
        %v808 = vld [vmem:[%s3 + $0x2f0] sm:$0xff]
        %v809 = vld [vmem:[%s3 + $0x2f8] sm:$0xff]
        %v810 = vld [vmem:[%s3 + $0x300] sm:$0xff]
        %v811 = vld [vmem:[%s3 + $0x308] sm:$0xff]
        %v812 = vld [vmem:[%s3 + $0x310] sm:$0xff]
        %v813 = vld [vmem:[%s3 + $0x318] sm:$0xff]
        %v814 = vld [vmem:[%s3 + $0x320] sm:$0xff]
        %v815 = vld [vmem:[%s3 + $0x328] sm:$0xff]
        %v816 = vld [vmem:[%s3 + $0x330] sm:$0xff]
        %v817 = vld [vmem:[%s3 + $0x338] sm:$0xff]
        %v818 = vld [vmem:[%s3 + $0x340] sm:$0xff]
        %v819 = vld [vmem:[%s3 + $0x348] sm:$0xff]
        %v820 = vld [vmem:[%s3 + $0x350] sm:$0xff]
        %v821 = vld [vmem:[%s3 + $0x358] sm:$0xff]
        %v822 = vld [vmem:[%s3 + $0x360] sm:$0xff]
        %v823 = vld [vmem:[%s3 + $0x368] sm:$0xff]
        %v824 = vld [vmem:[%s3 + $0x370] sm:$0xff]
        %v825 = vld [vmem:[%s3 + $0x378] sm:$0xff]
        %v826 = vld [vmem:[%s3 + $0x380] sm:$0xff]
        %v827 = vld [vmem:[%s3 + $0x388] sm:$0xff]
        %v828 = vld [vmem:[%s3 + $0x390] sm:$0xff]
        %v829 = vld [vmem:[%s3 + $0x398] sm:$0xff]
        %v830 = vld [vmem:[%s3 + $0x3a0] sm:$0xff]
        %v831 = vld [vmem:[%s3 + $0x3a8] sm:$0xff]
        %v832 = vld [vmem:[%s3 + $0x3b0] sm:$0xff]
        %v833 = vld [vmem:[%s3 + $0x3b8] sm:$0xff]
        %v834 = vld [vmem:[%s3 + $0x3c0] sm:$0xff]
        %v835 = vld [vmem:[%s3 + $0x3c8] sm:$0xff]
        %v836 = vld [vmem:[%s3 + $0x3d0] sm:$0xff]
        %v837 = vld [vmem:[%s3 + $0x3d8] sm:$0xff]
        %v838 = vld [vmem:[%s3 + $0x3e0] sm:$0xff]
        %v839 = vld [vmem:[%s3 + $0x3e8] sm:$0xff]
        %v840 = vld [vmem:[%s3 + $0x3f0] sm:$0xff]
        %v841 = vld [vmem:[%s3 + $0x3f8] sm:$0xff]
        %v842 = vld [vmem:[%s3 + $0x400] sm:$0xff]
        %v843 = vld [vmem:[%s3 + $0x408] sm:$0xff]
        %v844 = vld [vmem:[%s3 + $0x410] sm:$0xff]
        %v845 = vld [vmem:[%s3 + $0x418] sm:$0xff]
        %v846 = vld [vmem:[%s3 + $0x420] sm:$0xff]
        %v847 = vld [vmem:[%s3 + $0x428] sm:$0xff]
        %v848 = vld [vmem:[%s3 + $0x430] sm:$0xff]
        %v849 = vld [vmem:[%s3 + $0x438] sm:$0xff]
        %v850 = vld [vmem:[%s3 + $0x440] sm:$0xff]
        %v851 = vld [vmem:[%s3 + $0x448] sm:$0xff]
        %v852 = vld [vmem:[%s3 + $0x450] sm:$0xff]
        %v853 = vld [vmem:[%s3 + $0x458] sm:$0xff]
        %v854 = vld [vmem:[%s3 + $0x460] sm:$0xff]
        %v855 = vld [vmem:[%s3 + $0x468] sm:$0xff]
        %v856 = vld [vmem:[%s3 + $0x470] sm:$0xff]
        %v857 = vld [vmem:[%s3 + $0x478] sm:$0xff]
        %v858 = vld [vmem:[%s3 + $0x480] sm:$0xff]
        %v859 = vld [vmem:[%s3 + $0x488] sm:$0xff]
        %v860 = vld [vmem:[%s3 + $0x490] sm:$0xff]
        %v861 = vld [vmem:[%s3 + $0x498] sm:$0xff]
        %v862 = vld [vmem:[%s3 + $0x4a0] sm:$0xff]
        %v863 = vld [vmem:[%s3 + $0x4a8] sm:$0xff]
        %v864 = vld [vmem:[%s3 + $0x4b0] sm:$0xff]
        %v865 = vld [vmem:[%s3 + $0x4b8] sm:$0xff]
        %v866 = vld [vmem:[%s3 + $0x4c0] sm:$0xff]
        %v867 = vld [vmem:[%s3 + $0x4c8] sm:$0xff]
        %v868 = vld [vmem:[%s3 + $0x4d0] sm:$0xff]
        %v869 = vld [vmem:[%s3 + $0x4d8] sm:$0xff]
        %v870 = vld [vmem:[%s3 + $0x4e0] sm:$0xff]
        %v871 = vld [vmem:[%s3 + $0x4e8] sm:$0xff]
        %v872 = vld [vmem:[%s3 + $0x4f0] sm:$0xff]
        %v873 = vld [vmem:[%s3 + $0x4f8] sm:$0xff]
        %v874 = vld [vmem:[%s3 + $0x500] sm:$0xff]
        %v875 = vld [vmem:[%s3 + $0x508] sm:$0xff]
        %v876 = vld [vmem:[%s3 + $0x510] sm:$0xff]
        %v877 = vld [vmem:[%s3 + $0x518] sm:$0xff]
        %v878 = vld [vmem:[%s3 + $0x520] sm:$0xff]
        %v879 = vld [vmem:[%s3 + $0x528] sm:$0xff]
        %v880 = vld [vmem:[%s3 + $0x530] sm:$0xff]
        %v881 = vld [vmem:[%s3 + $0x538] sm:$0xff]
        %v882 = vld [vmem:[%s3 + $0x540] sm:$0xff]
        %v883 = vld [vmem:[%s3 + $0x548] sm:$0xff]
        %v884 = vld [vmem:[%s3 + $0x550] sm:$0xff]
        %v885 = vld [vmem:[%s3 + $0x558] sm:$0xff]
        %v886 = vld [vmem:[%s3 + $0x560] sm:$0xff]
        %v887 = vld [vmem:[%s3 + $0x568] sm:$0xff]
        %v888 = vld [vmem:[%s3 + $0x570] sm:$0xff]
        %v889 = vld [vmem:[%s3 + $0x578] sm:$0xff]
        %v890 = vld [vmem:[%s3 + $0x580] sm:$0xff]
        %v891 = vld [vmem:[%s3 + $0x588] sm:$0xff]
        %v892 = vld [vmem:[%s3 + $0x590] sm:$0xff]
        %v893 = vld [vmem:[%s3 + $0x598] sm:$0xff]
        %v894 = vld [vmem:[%s3 + $0x5a0] sm:$0xff]
        %v895 = vld [vmem:[%s3 + $0x5a8] sm:$0xff]
        %v896 = vld [vmem:[%s3 + $0x5b0] sm:$0xff]
        %v897 = vld [vmem:[%s3 + $0x5b8] sm:$0xff]
        %v898 = vld [vmem:[%s3 + $0x5c0] sm:$0xff]
        %v899 = vld [vmem:[%s3 + $0x5c8] sm:$0xff]
        %v900 = vld [vmem:[%s3 + $0x5d0] sm:$0xff]
        %v901 = vld [vmem:[%s3 + $0x5d8] sm:$0xff]
        %v902 = vld [vmem:[%s3 + $0x5e0] sm:$0xff]
        %v903 = vld [vmem:[%s3 + $0x5e8] sm:$0xff]
        %v904 = vld [vmem:[%s3 + $0x5f0] sm:$0xff]
        %v905 = vld [vmem:[%s3 + $0x5f8] sm:$0xff]
        %v906 = vld [vmem:[%s3 + $0x600] sm:$0xff]
        %v907 = vld [vmem:[%s3 + $0x608] sm:$0xff]
        %v908 = vld [vmem:[%s3 + $0x610] sm:$0xff]
        %v909 = vld [vmem:[%s3 + $0x618] sm:$0xff]
        %v910 = vld [vmem:[%s3 + $0x620] sm:$0xff]
        %v911 = vld [vmem:[%s3 + $0x628] sm:$0xff]
        %v912 = vld [vmem:[%s3 + $0x630] sm:$0xff]
        %v913 = vld [vmem:[%s3 + $0x638] sm:$0xff]
        %v914 = vld [vmem:[%s3 + $0x640] sm:$0xff]
        %v915 = vld [vmem:[%s3 + $0x648] sm:$0xff]
        %v916 = vld [vmem:[%s3 + $0x650] sm:$0xff]
        %v917 = vld [vmem:[%s3 + $0x658] sm:$0xff]
        %v918 = vld [vmem:[%s3 + $0x660] sm:$0xff]
        %v919 = vld [vmem:[%s3 + $0x668] sm:$0xff]
        %v920 = vld [vmem:[%s3 + $0x670] sm:$0xff]
        %v921 = vld [vmem:[%s3 + $0x678] sm:$0xff]
        %v922 = vld [vmem:[%s3 + $0x680] sm:$0xff]
        %v923 = vld [vmem:[%s3 + $0x688] sm:$0xff]
        %v924 = vld [vmem:[%s3 + $0x690] sm:$0xff]
        %v925 = vld [vmem:[%s3 + $0x698] sm:$0xff]
        %v926 = vld [vmem:[%s3 + $0x6a0] sm:$0xff]
        %v927 = vld [vmem:[%s3 + $0x6a8] sm:$0xff]
        %v928 = vld [vmem:[%s3 + $0x6b0] sm:$0xff]
        %v929 = vld [vmem:[%s3 + $0x6b8] sm:$0xff]
        %v930 = vld [vmem:[%s3 + $0x6c0] sm:$0xff]
        %v931 = vld [vmem:[%s3 + $0x6c8] sm:$0xff]
        %v932 = vld [vmem:[%s3 + $0x6d0] sm:$0xff]
        %v933 = vld [vmem:[%s3 + $0x6d8] sm:$0xff]
        %v934 = vld [vmem:[%s3 + $0x6e0] sm:$0xff]
        %v935 = vld [vmem:[%s3 + $0x6e8] sm:$0xff]
        %v936 = vld [vmem:[%s3 + $0x6f0] sm:$0xff]
        %v937 = vld [vmem:[%s3 + $0x6f8] sm:$0xff]
        %v938 = vld [vmem:[%s3 + $0x700] sm:$0xff]
        %v939 = vld [vmem:[%s3 + $0x708] sm:$0xff]
        %v940 = vld [vmem:[%s3 + $0x710] sm:$0xff]
        %v941 = vld [vmem:[%s3 + $0x718] sm:$0xff]
        %v942 = vld [vmem:[%s3 + $0x720] sm:$0xff]
        %v943 = vld [vmem:[%s3 + $0x728] sm:$0xff]
        %v944 = vld [vmem:[%s3 + $0x730] sm:$0xff]
        %v945 = vld [vmem:[%s3 + $0x738] sm:$0xff]
        %v946 = vld [vmem:[%s3 + $0x740] sm:$0xff]
        %v947 = vld [vmem:[%s3 + $0x748] sm:$0xff]
        %v948 = vld [vmem:[%s3 + $0x750] sm:$0xff]
        %v949 = vld [vmem:[%s3 + $0x758] sm:$0xff]
        %v950 = vld [vmem:[%s3 + $0x760] sm:$0xff]
        %v951 = vld [vmem:[%s3 + $0x768] sm:$0xff]
        %v952 = vld [vmem:[%s3 + $0x770] sm:$0xff]
        %v953 = vld [vmem:[%s3 + $0x778] sm:$0xff]
        %v954 = vld [vmem:[%s3 + $0x780] sm:$0xff]
        %v955 = vld [vmem:[%s3 + $0x788] sm:$0xff]
        %v956 = vld [vmem:[%s3 + $0x790] sm:$0xff]
        %v957 = vld [vmem:[%s3 + $0x798] sm:$0xff]
        %v958 = vld [vmem:[%s3 + $0x7a0] sm:$0xff]
        %v959 = vld [vmem:[%s3 + $0x7a8] sm:$0xff]
        %v960 = vld [vmem:[%s3 + $0x7b0] sm:$0xff]
        %v961 = vld [vmem:[%s3 + $0x7b8] sm:$0xff]
        %v962 = vld [vmem:[%s3 + $0x7c0] sm:$0xff]
        %v963 = vld [vmem:[%s3 + $0x7c8] sm:$0xff]
        %v964 = vld [vmem:[%s3 + $0x7d0] sm:$0xff]
        %v965 = vld [vmem:[%s3 + $0x7d8] sm:$0xff]
        %v966 = vld [vmem:[%s3 + $0x7e0] sm:$0xff]
        %v967 = vld [vmem:[%s3 + $0x7e8] sm:$0xff]
        %v968 = vld [vmem:[%s3 + $0x7f0] sm:$0xff]
        %v969 = vld [vmem:[%s3 + $0x7f8] sm:$0xff]
        %v970 = vld [vmem:[%s3 + $0x800] sm:$0xff]
        %v971 = vld [vmem:[%s3 + $0x808] sm:$0xff]
        %v972 = vld [vmem:[%s3 + $0x810] sm:$0xff]
        %v973 = vld [vmem:[%s3 + $0x818] sm:$0xff]
        %v974 = vld [vmem:[%s3 + $0x820] sm:$0xff]
        %v975 = vld [vmem:[%s3 + $0x828] sm:$0xff]
        %v976 = vld [vmem:[%s3 + $0x830] sm:$0xff]
        %v977 = vld [vmem:[%s3 + $0x838] sm:$0xff]
        %v978 = vld [vmem:[%s3 + $0x840] sm:$0xff]
        %v979 = vld [vmem:[%s3 + $0x848] sm:$0xff]
        %v980 = vld [vmem:[%s3 + $0x850] sm:$0xff]
        %v981 = vld [vmem:[%s3 + $0x858] sm:$0xff]
        %v982 = vld [vmem:[%s3 + $0x860] sm:$0xff]
        %v983 = vld [vmem:[%s3 + $0x868] sm:$0xff]
        %v984 = vld [vmem:[%s3 + $0x870] sm:$0xff]
        %v985 = vld [vmem:[%s3 + $0x878] sm:$0xff]
        %v986 = vld [vmem:[%s3 + $0x880] sm:$0xff]
        %v987 = vld [vmem:[%s3 + $0x888] sm:$0xff]
        %v988 = vld [vmem:[%s3 + $0x890] sm:$0xff]
        %v989 = vld [vmem:[%s3 + $0x898] sm:$0xff]
        %v990 = vld [vmem:[%s3 + $0x8a0] sm:$0xff]
        %v991 = vld [vmem:[%s3 + $0x8a8] sm:$0xff]
        %v992 = vld [vmem:[%s3 + $0x8b0] sm:$0xff]
        %v993 = vld [vmem:[%s3 + $0x8b8] sm:$0xff]
        %v994 = vld [vmem:[%s3 + $0x8c0] sm:$0xff]
        %v995 = vld [vmem:[%s3 + $0x8c8] sm:$0xff]
        %v996 = vld [vmem:[%s3 + $0x8d0] sm:$0xff]
        %v997 = vld [vmem:[%s3 + $0x8d8] sm:$0xff]
        %v998 = vld [vmem:[%s3 + $0x8e0] sm:$0xff]
        %v999 = vld [vmem:[%s3 + $0x8e8] sm:$0xff]
        %v1000 = vld [vmem:[%s3 + $0x8f0] sm:$0xff]
        %v1001 = vld [vmem:[%s3 + $0x8f8] sm:$0xff]
        %v1002 = vld [vmem:[%s3 + $0x900] sm:$0xff]
        %v1003 = vld [vmem:[%s3 + $0x908] sm:$0xff]
        %v1004 = vld [vmem:[%s3 + $0x910] sm:$0xff]
        %v1005 = vld [vmem:[%s3 + $0x918] sm:$0xff]
        %v1006 = vld [vmem:[%s3 + $0x920] sm:$0xff]
        %v1007 = vld [vmem:[%s3 + $0x928] sm:$0xff]
        %v1008 = vld [vmem:[%s3 + $0x930] sm:$0xff]
        %v1009 = vld [vmem:[%s3 + $0x938] sm:$0xff]
        %v1010 = vld [vmem:[%s3 + $0x940] sm:$0xff]
        %v1011 = vld [vmem:[%s3 + $0x948] sm:$0xff]
        %v1012 = vld [vmem:[%s3 + $0x950] sm:$0xff]
        %v1013 = vld [vmem:[%s3 + $0x958] sm:$0xff]
        %v1014 = vld [vmem:[%s3 + $0x960] sm:$0xff]
        %v1015 = vld [vmem:[%s3 + $0x968] sm:$0xff]
        %v1016 = vld [vmem:[%s3 + $0x970] sm:$0xff]
        %v1017 = vld [vmem:[%s3 + $0x978] sm:$0xff]
        %v1018 = vld [vmem:[%s3 + $0x980] sm:$0xff]
        %v1019 = vld [vmem:[%s3 + $0x988] sm:$0xff]
        %v1020 = vld [vmem:[%s3 + $0x990] sm:$0xff]
        %v1021 = vld [vmem:[%s3 + $0x998] sm:$0xff]
        %v1022 = vld [vmem:[%s3 + $0x9a0] sm:$0xff]
        %v1023 = vld [vmem:[%s3 + $0x9a8] sm:$0xff]
        %v1024 = vld [vmem:[%s3 + $0x9b0] sm:$0xff]
        %v1025 = vld [vmem:[%s3 + $0x9b8] sm:$0xff]
        %v1026 = vld [vmem:[%s3 + $0x9c0] sm:$0xff]
        %v1027 = vld [vmem:[%s3 + $0x9c8] sm:$0xff]
        %v1028 = vld [vmem:[%s3 + $0x9d0] sm:$0xff]
        %v1029 = vld [vmem:[%s3 + $0x9d8] sm:$0xff]
        %v1030 = vld [vmem:[%s3 + $0x9e0] sm:$0xff]
        %v1031 = vld [vmem:[%s3 + $0x9e8] sm:$0xff]
        %v1032 = vld [vmem:[%s3 + $0x9f0] sm:$0xff]
        %v1033 = vld [vmem:[%s3 + $0x9f8] sm:$0xff]
        %v1034 = vld [vmem:[%s3 + $0xa00] sm:$0xff]
        %v1035 = vld [vmem:[%s3 + $0xa08] sm:$0xff]
        %v1036 = vld [vmem:[%s3 + $0xa10] sm:$0xff]
        %v1037 = vld [vmem:[%s3 + $0xa18] sm:$0xff]
        %v1038 = vld [vmem:[%s3 + $0xa20] sm:$0xff]
        %v1039 = vld [vmem:[%s3 + $0xa28] sm:$0xff]
        %v1040 = vld [vmem:[%s3 + $0xa30] sm:$0xff]
        %v1041 = vld [vmem:[%s3 + $0xa38] sm:$0xff]
        %v1042 = vld [vmem:[%s3 + $0xa40] sm:$0xff]
        %v1043 = vld [vmem:[%s3 + $0xa48] sm:$0xff]
        %v1044 = vld [vmem:[%s3 + $0xa50] sm:$0xff]
        %v1045 = vld [vmem:[%s3 + $0xa58] sm:$0xff]
        %v1046 = vld [vmem:[%s3 + $0xa60] sm:$0xff]
        %v1047 = vld [vmem:[%s3 + $0xa68] sm:$0xff]
        %v1048 = vld [vmem:[%s3 + $0xa70] sm:$0xff]
        %v1049 = vld [vmem:[%s3 + $0xa78] sm:$0xff]
        %v1050 = vld [vmem:[%s3 + $0xa80] sm:$0xff]
        %v1051 = vld [vmem:[%s3 + $0xa88] sm:$0xff]
        %v1052 = vld [vmem:[%s3 + $0xa90] sm:$0xff]
        %v1053 = vld [vmem:[%s3 + $0xa98] sm:$0xff]
        %v1054 = vld [vmem:[%s3 + $0xaa0] sm:$0xff]
        %v1055 = vld [vmem:[%s3 + $0xaa8] sm:$0xff]
        %v1056 = vld [vmem:[%s3 + $0xab0] sm:$0xff]
        %v1057 = vld [vmem:[%s3 + $0xab8] sm:$0xff]
        %v1058 = vld [vmem:[%s3 + $0xac0] sm:$0xff]
        %v1059 = vld [vmem:[%s3 + $0xac8] sm:$0xff]
        %v1060 = vld [vmem:[%s3 + $0xad0] sm:$0xff]
        %v1061 = vld [vmem:[%s3 + $0xad8] sm:$0xff]
        %v1062 = vld [vmem:[%s3 + $0xae0] sm:$0xff]
        %v1063 = vld [vmem:[%s3 + $0xae8] sm:$0xff]
        %v1064 = vld [vmem:[%s3 + $0xaf0] sm:$0xff]
        %v1065 = vld [vmem:[%s3 + $0xaf8] sm:$0xff]
        %v1066 = vld [vmem:[%s3 + $0xb00] sm:$0xff]
        %v1067 = vld [vmem:[%s3 + $0xb08] sm:$0xff]
        %v1068 = vld [vmem:[%s3 + $0xb10] sm:$0xff]
        %v1069 = vld [vmem:[%s3 + $0xb18] sm:$0xff]
        %v1070 = vld [vmem:[%s3 + $0xb20] sm:$0xff]
        %v1071 = vld [vmem:[%s3 + $0xb28] sm:$0xff]
        %v1072 = vld [vmem:[%s3 + $0xb30] sm:$0xff]
        %v1073 = vld [vmem:[%s3 + $0xb38] sm:$0xff]
        %v1074 = vld [vmem:[%s3 + $0xb40] sm:$0xff]
        %v1075 = vld [vmem:[%s3 + $0xb48] sm:$0xff]
        %v1076 = vld [vmem:[%s3 + $0xb50] sm:$0xff]
        %v1077 = vld [vmem:[%s3 + $0xb58] sm:$0xff]
        %v1078 = vld [vmem:[%s3 + $0xb60] sm:$0xff]
        %v1079 = vld [vmem:[%s3 + $0xb68] sm:$0xff]
        %v1080 = vld [vmem:[%s3 + $0xb70] sm:$0xff]
        %v1081 = vld [vmem:[%s3 + $0xb78] sm:$0xff]
        %v1082 = vld [vmem:[%s3 + $0xb80] sm:$0xff]
        %v1083 = vld [vmem:[%s3 + $0xb88] sm:$0xff]
        %v1084 = vld [vmem:[%s3 + $0xb90] sm:$0xff]
        %v1085 = vld [vmem:[%s3 + $0xb98] sm:$0xff]
        %v1086 = vld [vmem:[%s3 + $0xba0] sm:$0xff]
        %v1087 = vld [vmem:[%s3 + $0xba8] sm:$0xff]
        %v1088 = vld [vmem:[%s3 + $0xbb0] sm:$0xff]
        %v1089 = vld [vmem:[%s3 + $0xbb8] sm:$0xff]
        %v1090 = vld [vmem:[%s3 + $0xbc0] sm:$0xff]
        %v1091 = vld [vmem:[%s3 + $0xbc8] sm:$0xff]
        %v1092 = vld [vmem:[%s3 + $0xbd0] sm:$0xff]
        %v1093 = vld [vmem:[%s3 + $0xbd8] sm:$0xff]
        %v1094 = vld [vmem:[%s3 + $0xbe0] sm:$0xff]
        %v1095 = vld [vmem:[%s3 + $0xbe8] sm:$0xff]
        %v1096 = vld [vmem:[%s3 + $0xbf0] sm:$0xff]
        %v1097 = vld [vmem:[%s3 + $0xbf8] sm:$0xff]
        %v1098 = vld [vmem:[%s3 + $0xc00] sm:$0xff]
        %v1099 = vld [vmem:[%s3 + $0xc08] sm:$0xff]
        %v1100 = vld [vmem:[%s3 + $0xc10] sm:$0xff]
        %v1101 = vld [vmem:[%s3 + $0xc18] sm:$0xff]
        %v1102 = vld [vmem:[%s3 + $0xc20] sm:$0xff]
        %v1103 = vld [vmem:[%s3 + $0xc28] sm:$0xff]
        %v1104 = vld [vmem:[%s3 + $0xc30] sm:$0xff]
        %v1105 = vld [vmem:[%s3 + $0xc38] sm:$0xff]
        %v1106 = vld [vmem:[%s3 + $0xc40] sm:$0xff]
        %v1107 = vld [vmem:[%s3 + $0xc48] sm:$0xff]
        %v1108 = vld [vmem:[%s3 + $0xc50] sm:$0xff]
        %v1109 = vld [vmem:[%s3 + $0xc58] sm:$0xff]
        %v1110 = vld [vmem:[%s3 + $0xc60] sm:$0xff]
        %v1111 = vld [vmem:[%s3 + $0xc68] sm:$0xff]
        %v1112 = vld [vmem:[%s3 + $0xc70] sm:$0xff]
        %v1113 = vld [vmem:[%s3 + $0xc78] sm:$0xff]
        %v1114 = vld [vmem:[%s3 + $0xc80] sm:$0xff]
        %v1115 = vld [vmem:[%s3 + $0xc88] sm:$0xff]
        %v1116 = vld [vmem:[%s3 + $0xc90] sm:$0xff]
        %v1117 = vld [vmem:[%s3 + $0xc98] sm:$0xff]
        %v1118 = vld [vmem:[%s3 + $0xca0] sm:$0xff]
        %v1119 = vld [vmem:[%s3 + $0xca8] sm:$0xff]
        %v1120 = vld [vmem:[%s3 + $0xcb0] sm:$0xff]
        %v1121 = vld [vmem:[%s3 + $0xcb8] sm:$0xff]
        %v1122 = vld [vmem:[%s3 + $0xcc0] sm:$0xff]
        %v1123 = vld [vmem:[%s3 + $0xcc8] sm:$0xff]
        %v1124 = vld [vmem:[%s3 + $0xcd0] sm:$0xff]
        %v1125 = vld [vmem:[%s3 + $0xcd8] sm:$0xff]
        %v1126 = vld [vmem:[%s3 + $0xce0] sm:$0xff]
        %v1127 = vld [vmem:[%s3 + $0xce8] sm:$0xff]
        %v1128 = vld [vmem:[%s3 + $0xcf0] sm:$0xff]
        %v1129 = vld [vmem:[%s3 + $0xcf8] sm:$0xff]
        %v1130 = vld [vmem:[%s3 + $0xd00] sm:$0xff]
        %v1131 = vld [vmem:[%s3 + $0xd08] sm:$0xff]
        %v1132 = vld [vmem:[%s3 + $0xd10] sm:$0xff]
        %v1133 = vld [vmem:[%s3 + $0xd18] sm:$0xff]
        %v1134 = vld [vmem:[%s3 + $0xd20] sm:$0xff]
        %v1135 = vld [vmem:[%s3 + $0xd28] sm:$0xff]
        %v1136 = vld [vmem:[%s3 + $0xd30] sm:$0xff]
        %v1137 = vld [vmem:[%s3 + $0xd38] sm:$0xff]
        %v1138 = vld [vmem:[%s3 + $0xd40] sm:$0xff]
        %v1139 = vld [vmem:[%s3 + $0xd48] sm:$0xff]
        %v1140 = vld [vmem:[%s3 + $0xd50] sm:$0xff]
        %v1141 = vld [vmem:[%s3 + $0xd58] sm:$0xff]
        %v1142 = vld [vmem:[%s3 + $0xd60] sm:$0xff]
        %v1143 = vld [vmem:[%s3 + $0xd68] sm:$0xff]
        %v1144 = vld [vmem:[%s3 + $0xd70] sm:$0xff]
        %v1145 = vld [vmem:[%s3 + $0xd78] sm:$0xff]
        %v1146 = vld [vmem:[%s3 + $0xd80] sm:$0xff]
        %v1147 = vld [vmem:[%s3 + $0xd88] sm:$0xff]
        %v1148 = vld [vmem:[%s3 + $0xd90] sm:$0xff]
        %v1149 = vld [vmem:[%s3 + $0xd98] sm:$0xff]
        %v1150 = vld [vmem:[%s3 + $0xda0] sm:$0xff]
        %v1151 = vld [vmem:[%s3 + $0xda8] sm:$0xff]
        %v1152 = vld [vmem:[%s3 + $0xdb0] sm:$0xff]
        %v1153 = vld [vmem:[%s3 + $0xdb8] sm:$0xff]
        %v1154 = vld [vmem:[%s3 + $0xdc0] sm:$0xff]
        %v1155 = vld [vmem:[%s3 + $0xdc8] sm:$0xff]
        %v1156 = vld [vmem:[%s3 + $0xdd0] sm:$0xff]
        %v1157 = vld [vmem:[%s3 + $0xdd8] sm:$0xff]
        %v1158 = vld [vmem:[%s3 + $0xde0] sm:$0xff]
        %v1159 = vld [vmem:[%s3 + $0xde8] sm:$0xff]
        %v1160 = vld [vmem:[%s3 + $0xdf0] sm:$0xff]
        %v1161 = vld [vmem:[%s3 + $0xdf8] sm:$0xff]
        %v1162 = vld [vmem:[%s3 + $0xe00] sm:$0xff]
        %v1163 = vld [vmem:[%s3 + $0xe08] sm:$0xff]
        %v1164 = vld [vmem:[%s3 + $0xe10] sm:$0xff]
        %v1165 = vld [vmem:[%s3 + $0xe18] sm:$0xff]
        %v1166 = vld [vmem:[%s3 + $0xe20] sm:$0xff]
        %v1167 = vld [vmem:[%s3 + $0xe28] sm:$0xff]
        %v1168 = vld [vmem:[%s3 + $0xe30] sm:$0xff]
        %v1169 = vld [vmem:[%s3 + $0xe38] sm:$0xff]
        %v1170 = vld [vmem:[%s3 + $0xe40] sm:$0xff]
        %v1171 = vld [vmem:[%s3 + $0xe48] sm:$0xff]
        %v1172 = vld [vmem:[%s3 + $0xe50] sm:$0xff]
        %v1173 = vld [vmem:[%s3 + $0xe58] sm:$0xff]
        %v1174 = vld [vmem:[%s3 + $0xe60] sm:$0xff]
        %v1175 = vld [vmem:[%s3 + $0xe68] sm:$0xff]
        %v1176 = vld [vmem:[%s3 + $0xe70] sm:$0xff]
        %v1177 = vld [vmem:[%s3 + $0xe78] sm:$0xff]
        %v1178 = vld [vmem:[%s3 + $0xe80] sm:$0xff]
        %v1179 = vld [vmem:[%s3 + $0xe88] sm:$0xff]
        %v1180 = vld [vmem:[%s3 + $0xe90] sm:$0xff]
        %v1181 = vld [vmem:[%s3 + $0xe98] sm:$0xff]
        %v1182 = vld [vmem:[%s3 + $0xea0] sm:$0xff]
        %v1183 = vld [vmem:[%s3 + $0xea8] sm:$0xff]
        %v1184 = vld [vmem:[%s3 + $0xeb0] sm:$0xff]
        %v1185 = vld [vmem:[%s3 + $0xeb8] sm:$0xff]
        %v1186 = vld [vmem:[%s3 + $0xec0] sm:$0xff]
        %v1187 = vld [vmem:[%s3 + $0xec8] sm:$0xff]
        %v1188 = vld [vmem:[%s3 + $0xed0] sm:$0xff]
        %v1189 = vld [vmem:[%s3 + $0xed8] sm:$0xff]
        %v1190 = vld [vmem:[%s3 + $0xee0] sm:$0xff]
        %v1191 = vld [vmem:[%s3 + $0xee8] sm:$0xff]
        %v1192 = vld [vmem:[%s3 + $0xef0] sm:$0xff]
        %v1193 = vld [vmem:[%s3 + $0xef8] sm:$0xff]
        %v1194 = vld [vmem:[%s3 + $0xf00] sm:$0xff]
        %v1195 = vld [vmem:[%s3 + $0xf08] sm:$0xff]
        %v1196 = vld [vmem:[%s3 + $0xf10] sm:$0xff]
        %v1197 = vld [vmem:[%s3 + $0xf18] sm:$0xff]
        %v1198 = vld [vmem:[%s3 + $0xf20] sm:$0xff]
        %v1199 = vld [vmem:[%s3 + $0xf28] sm:$0xff]
        %v1200 = vld [vmem:[%s3 + $0xf30] sm:$0xff]
        %v1201 = vld [vmem:[%s3 + $0xf38] sm:$0xff]
        %v1202 = vld [vmem:[%s3 + $0xf40] sm:$0xff]
        %v1203 = vld [vmem:[%s3 + $0xf48] sm:$0xff]
        %v1204 = vld [vmem:[%s3 + $0xf50] sm:$0xff]
        %v1205 = vld [vmem:[%s3 + $0xf58] sm:$0xff]
        %v1206 = vld [vmem:[%s3 + $0xf60] sm:$0xff]
        %v1207 = vld [vmem:[%s3 + $0xf68] sm:$0xff]
        %v1208 = vld [vmem:[%s3 + $0xf70] sm:$0xff]
        %v1209 = vld [vmem:[%s3 + $0xf78] sm:$0xff]
        %v1210 = vld [vmem:[%s3 + $0xf80] sm:$0xff]
        %v1211 = vld [vmem:[%s3 + $0xf88] sm:$0xff]
        %v1212 = vld [vmem:[%s3 + $0xf90] sm:$0xff]
        %v1213 = vld [vmem:[%s3 + $0xf98] sm:$0xff]
        %v1214 = vld [vmem:[%s3 + $0xfa0] sm:$0xff]
        %v1215 = vld [vmem:[%s3 + $0xfa8] sm:$0xff]
        %v1216 = vld [vmem:[%s3 + $0xfb0] sm:$0xff]
        %v1217 = vld [vmem:[%s3 + $0xfb8] sm:$0xff]
        %v1218 = vld [vmem:[%s3 + $0xfc0] sm:$0xff]
        %v1219 = vld [vmem:[%s3 + $0xfc8] sm:$0xff]
        %v1220 = vld [vmem:[%s3 + $0xfd0] sm:$0xff]
        %v1221 = vld [vmem:[%s3 + $0xfd8] sm:$0xff]
        %v1222 = vld [vmem:[%s3 + $0xfe0] sm:$0xff]
        %v1223 = vld [vmem:[%s3 + $0xfe8] sm:$0xff]
        %v1224 = vld [vmem:[%s3 + $0xff0] sm:$0xff]
        %v1225 = vld [vmem:[%s3 + $0xff8] sm:$0xff]
        %v1226 = vld [vmem:[%s3 + $0x1000] sm:$0xff]
        %v1227 = vld [vmem:[%s3 + $0x1008] sm:$0xff]
        %v1228 = vld [vmem:[%s3 + $0x1010] sm:$0xff]
        %v1229 = vld [vmem:[%s3 + $0x1018] sm:$0xff]
        %v1230 = vld [vmem:[%s3 + $0x1020] sm:$0xff]
        %v1231 = vld [vmem:[%s3 + $0x1028] sm:$0xff]
        %v1232 = vld [vmem:[%s3 + $0x1030] sm:$0xff]
        %v1233 = vld [vmem:[%s3 + $0x1038] sm:$0xff]
        %v1234 = vld [vmem:[%s3 + $0x1040] sm:$0xff]
        %v1235 = vld [vmem:[%s3 + $0x1048] sm:$0xff]
        %v1236 = vld [vmem:[%s3 + $0x1050] sm:$0xff]
        %v1237 = vld [vmem:[%s3 + $0x1058] sm:$0xff]
        %v1238 = vld [vmem:[%s3 + $0x1060] sm:$0xff]
        %v1239 = vld [vmem:[%s3 + $0x1068] sm:$0xff]
        %v1240 = vld [vmem:[%s3 + $0x1070] sm:$0xff]
        %v1241 = vld [vmem:[%s3 + $0x1078] sm:$0xff]
        %v1242 = vld [vmem:[%s3 + $0x1080] sm:$0xff]
        %v1243 = vld [vmem:[%s3 + $0x1088] sm:$0xff]
        %v1244 = vld [vmem:[%s3 + $0x1090] sm:$0xff]
        %v1245 = vld [vmem:[%s3 + $0x1098] sm:$0xff]
        %v1246 = vld [vmem:[%s3 + $0x10a0] sm:$0xff]
        %v1247 = vld [vmem:[%s3 + $0x10a8] sm:$0xff]
        %v1248 = vld [vmem:[%s3 + $0x10b0] sm:$0xff]
        %v1249 = vld [vmem:[%s3 + $0x10b8] sm:$0xff]
        %v1250 = vld [vmem:[%s3 + $0x10c0] sm:$0xff]
        %v1251 = vld [vmem:[%s3 + $0x10c8] sm:$0xff]
        %v1252 = vld [vmem:[%s3 + $0x10d0] sm:$0xff]
        %v1253 = vld [vmem:[%s3 + $0x10d8] sm:$0xff]
        %v1254 = vld [vmem:[%s3 + $0x10e0] sm:$0xff]
        %v1255 = vld [vmem:[%s3 + $0x10e8] sm:$0xff]
        %v1256 = vld [vmem:[%s3 + $0x10f0] sm:$0xff]
        %v1257 = vld [vmem:[%s3 + $0x10f8] sm:$0xff]
        %v1258 = vld [vmem:[%s3 + $0x1100] sm:$0xff]
        %v1259 = vld [vmem:[%s3 + $0x1108] sm:$0xff]
        %v1260 = vld [vmem:[%s3 + $0x1110] sm:$0xff]
        %v1261 = vld [vmem:[%s3 + $0x1118] sm:$0xff]
        %v1262 = vld [vmem:[%s3 + $0x1120] sm:$0xff]
        %v1263 = vld [vmem:[%s3 + $0x1128] sm:$0xff]
        %v1264 = vld [vmem:[%s3 + $0x1130] sm:$0xff]
        %v1265 = vld [vmem:[%s3 + $0x1138] sm:$0xff]
        %v1266 = vld [vmem:[%s3 + $0x1140] sm:$0xff]
        %v1267 = vld [vmem:[%s3 + $0x1148] sm:$0xff]
        %v1268 = vld [vmem:[%s3 + $0x1150] sm:$0xff]
        %v1269 = vld [vmem:[%s3 + $0x1158] sm:$0xff]
        %v1270 = vld [vmem:[%s3 + $0x1160] sm:$0xff]
        %v1271 = vld [vmem:[%s3 + $0x1168] sm:$0xff]
        %v1272 = vld [vmem:[%s3 + $0x1170] sm:$0xff]
        %v1273 = vld [vmem:[%s3 + $0x1178] sm:$0xff]
        %v1274 = vld [vmem:[%s3 + $0x1180] sm:$0xff]
        %v1275 = vld [vmem:[%s3 + $0x1188] sm:$0xff]
        %v1276 = vld [vmem:[%s3 + $0x1190] sm:$0xff]
        %v1277 = vld [vmem:[%s3 + $0x1198] sm:$0xff]
        %v1278 = vld [vmem:[%s3 + $0x11a0] sm:$0xff]
        %v1279 = vld [vmem:[%s3 + $0x11a8] sm:$0xff]
        %v1280 = vld [vmem:[%s3 + $0x11b0] sm:$0xff]
        %v1281 = vld [vmem:[%s3 + $0x11b8] sm:$0xff]
        %v1282 = vld [vmem:[%s3 + $0x11c0] sm:$0xff]
        %v1283 = vld [vmem:[%s3 + $0x11c8] sm:$0xff]
        %v1284 = vld [vmem:[%s3 + $0x11d0] sm:$0xff]
        %v1285 = vld [vmem:[%s3 + $0x11d8] sm:$0xff]
        %v1286 = vld [vmem:[%s3 + $0x11e0] sm:$0xff]
        %v1287 = vld [vmem:[%s3 + $0x11e8] sm:$0xff]
        %v1288 = vld [vmem:[%s3 + $0x11f0] sm:$0xff]
        %v1289 = vld [vmem:[%s3 + $0x11f8] sm:$0xff]
        %v1290 = vld [vmem:[%s3 + $0x1200] sm:$0xff]
        %v1291 = vld [vmem:[%s3 + $0x1208] sm:$0xff]
        %v1292 = vld [vmem:[%s3 + $0x1210] sm:$0xff]
        %v1293 = vld [vmem:[%s3 + $0x1218] sm:$0xff]
        %v1294 = vld [vmem:[%s3 + $0x1220] sm:$0xff]
        %v1295 = vld [vmem:[%s3 + $0x1228] sm:$0xff]
        %v1296 = vld [vmem:[%s3 + $0x1230] sm:$0xff]
        %v1297 = vld [vmem:[%s3 + $0x1238] sm:$0xff]
        %v1298 = vld [vmem:[%s3 + $0x1240] sm:$0xff]
        %v1299 = vld [vmem:[%s3 + $0x1248] sm:$0xff]
        %v1300 = vld [vmem:[%s3 + $0x1250] sm:$0xff]
        %v1301 = vld [vmem:[%s3 + $0x1258] sm:$0xff]
        %v1302 = vld [vmem:[%s3 + $0x1260] sm:$0xff]
        %v1303 = vld [vmem:[%s3 + $0x1268] sm:$0xff]
        %v1304 = vld [vmem:[%s3 + $0x1270] sm:$0xff]
        %v1305 = vld [vmem:[%s3 + $0x1278] sm:$0xff]
        %v1306 = vld [vmem:[%s3 + $0x1280] sm:$0xff]
        %v1307 = vld [vmem:[%s3 + $0x1288] sm:$0xff]
        %v1308 = vld [vmem:[%s3 + $0x1290] sm:$0xff]
        %v1309 = vld [vmem:[%s3 + $0x1298] sm:$0xff]
        %v1310 = vld [vmem:[%s3 + $0x12a0] sm:$0xff]
        %v1311 = vld [vmem:[%s3 + $0x12a8] sm:$0xff]
        %v1312 = vld [vmem:[%s3 + $0x12b0] sm:$0xff]
        %v1313 = vld [vmem:[%s3 + $0x12b8] sm:$0xff]
        %v1314 = vld [vmem:[%s3 + $0x12c0] sm:$0xff]
        %v1315 = vld [vmem:[%s3 + $0x12c8] sm:$0xff]
        %v1316 = vld [vmem:[%s3 + $0x12d0] sm:$0xff]
        %v1317 = vld [vmem:[%s3 + $0x12d8] sm:$0xff]
        %v1318 = vld [vmem:[%s3 + $0x12e0] sm:$0xff]
        %v1319 = vld [vmem:[%s3 + $0x12e8] sm:$0xff]
        %v1320 = vld [vmem:[%s3 + $0x12f0] sm:$0xff]
        %v1321 = vld [vmem:[%s3 + $0x12f8] sm:$0xff]
        %v1322 = vld [vmem:[%s3 + $0x1300] sm:$0xff]
        %v1323 = vld [vmem:[%s3 + $0x1308] sm:$0xff]
        %v1324 = vld [vmem:[%s3 + $0x1310] sm:$0xff]
        %v1325 = vld [vmem:[%s3 + $0x1318] sm:$0xff]
        %v1326 = vld [vmem:[%s3 + $0x1320] sm:$0xff]
        %v1327 = vld [vmem:[%s3 + $0x1328] sm:$0xff]
        %v1328 = vld [vmem:[%s3 + $0x1330] sm:$0xff]
        %v1329 = vld [vmem:[%s3 + $0x1338] sm:$0xff]
        %v1330 = vld [vmem:[%s3 + $0x1340] sm:$0xff]
        %v1331 = vld [vmem:[%s3 + $0x1348] sm:$0xff]
        %v1332 = vld [vmem:[%s3 + $0x1350] sm:$0xff]
        %v1333 = vld [vmem:[%s3 + $0x1358] sm:$0xff]
        %v1334 = vld [vmem:[%s3 + $0x1360] sm:$0xff]
        %v1335 = vld [vmem:[%s3 + $0x1368] sm:$0xff]
        %v1336 = vld [vmem:[%s3 + $0x1370] sm:$0xff]
        %v1337 = vld [vmem:[%s3 + $0x1378] sm:$0xff]
        %v1338 = vld [vmem:[%s3 + $0x1380] sm:$0xff]
        %v1339 = vld [vmem:[%s3 + $0x1388] sm:$0xff]
        %v1340 = vld [vmem:[%s3 + $0x1390] sm:$0xff]
        %v1341 = vld [vmem:[%s3 + $0x1398] sm:$0xff]
        %v1342 = vld [vmem:[%s3 + $0x13a0] sm:$0xff]
        %v1343 = vld [vmem:[%s3 + $0x13a8] sm:$0xff]
        %v1344 = vld [vmem:[%s3 + $0x13b0] sm:$0xff]
        %v1345 = vld [vmem:[%s3 + $0x13b8] sm:$0xff]
        %v1346 = vld [vmem:[%s3 + $0x13c0] sm:$0xff]
        %v1347 = vld [vmem:[%s3 + $0x13c8] sm:$0xff]
        %v1348 = vld [vmem:[%s3 + $0x13d0] sm:$0xff]
        %v1349 = vld [vmem:[%s3 + $0x13d8] sm:$0xff]
        %v1350 = vld [vmem:[%s3 + $0x13e0] sm:$0xff]
        %v1351 = vld [vmem:[%s3 + $0x13e8] sm:$0xff]
        %v1352 = vld [vmem:[%s3 + $0x13f0] sm:$0xff]
        %v1353 = vld [vmem:[%s3 + $0x13f8] sm:$0xff]
        %v1354 = vld [vmem:[%s3 + $0x1400] sm:$0xff]
        %v1355 = vld [vmem:[%s3 + $0x1408] sm:$0xff]
        %v1356 = vld [vmem:[%s3 + $0x1410] sm:$0xff]
        %v1357 = vld [vmem:[%s3 + $0x1418] sm:$0xff]
        %v1358 = vld [vmem:[%s3 + $0x1420] sm:$0xff]
        %v1359 = vld [vmem:[%s3 + $0x1428] sm:$0xff]
        %v1360 = vld [vmem:[%s3 + $0x1430] sm:$0xff]
        %v1361 = vld [vmem:[%s3 + $0x1438] sm:$0xff]
        %v1362 = vld [vmem:[%s3 + $0x1440] sm:$0xff]
        %v1363 = vld [vmem:[%s3 + $0x1448] sm:$0xff]
        %v1364 = vld [vmem:[%s3 + $0x1450] sm:$0xff]
        %v1365 = vld [vmem:[%s3 + $0x1458] sm:$0xff]
        %v1366 = vld [vmem:[%s3 + $0x1460] sm:$0xff]
        %v1367 = vld [vmem:[%s3 + $0x1468] sm:$0xff]
        %v1368 = vld [vmem:[%s3 + $0x1470] sm:$0xff]
        %v1369 = vld [vmem:[%s3 + $0x1478] sm:$0xff]
        %v1370 = vld [vmem:[%s3 + $0x1480] sm:$0xff]
        %v1371 = vld [vmem:[%s3 + $0x1488] sm:$0xff]
        %v1372 = vld [vmem:[%s3 + $0x1490] sm:$0xff]
        %v1373 = vld [vmem:[%s3 + $0x1498] sm:$0xff]
        %v1374 = vld [vmem:[%s3 + $0x14a0] sm:$0xff]
        %v1375 = vld [vmem:[%s3 + $0x14a8] sm:$0xff]
        %v1376 = vld [vmem:[%s3 + $0x14b0] sm:$0xff]
        %v1377 = vld [vmem:[%s3 + $0x14b8] sm:$0xff]
        %v1378 = vld [vmem:[%s3 + $0x14c0] sm:$0xff]
        %v1379 = vld [vmem:[%s3 + $0x14c8] sm:$0xff]
        %v1380 = vld [vmem:[%s3 + $0x14d0] sm:$0xff]
        %v1381 = vld [vmem:[%s3 + $0x14d8] sm:$0xff]
        %v1382 = vld [vmem:[%s3 + $0x14e0] sm:$0xff]
        %v1383 = vld [vmem:[%s3 + $0x14e8] sm:$0xff]
        %v1384 = vld [vmem:[%s3 + $0x14f0] sm:$0xff]
        %v1385 = vld [vmem:[%s3 + $0x14f8] sm:$0xff]
        %v1386 = vld [vmem:[%s3 + $0x1500] sm:$0xff]
        %v1387 = vld [vmem:[%s3 + $0x1508] sm:$0xff]
        %v1388 = vld [vmem:[%s3 + $0x1510] sm:$0xff]
        %v1389 = vld [vmem:[%s3 + $0x1518] sm:$0xff]
        %v1390 = vld [vmem:[%s3 + $0x1520] sm:$0xff]
        %v1391 = vld [vmem:[%s3 + $0x1528] sm:$0xff]
        %v1392 = vld [vmem:[%s3 + $0x1530] sm:$0xff]
        %v1393 = vld [vmem:[%s3 + $0x1538] sm:$0xff]
        %v1394 = vld [vmem:[%s3 + $0x1540] sm:$0xff]
        %v1395 = vld [vmem:[%s3 + $0x1548] sm:$0xff]
        %v1396 = vld [vmem:[%s3 + $0x1550] sm:$0xff]
        %v1397 = vld [vmem:[%s3 + $0x1558] sm:$0xff]
        %v1398 = vld [vmem:[%s3 + $0x1560] sm:$0xff]
        %v1399 = vld [vmem:[%s3 + $0x1568] sm:$0xff]
        %v1400 = vld [vmem:[%s3 + $0x1570] sm:$0xff]
        %v1401 = vld [vmem:[%s3 + $0x1578] sm:$0xff]
        %v1402 = vld [vmem:[%s3 + $0x1580] sm:$0xff]
        %v1403 = vld [vmem:[%s3 + $0x1588] sm:$0xff]
        %v1404 = vld [vmem:[%s3 + $0x1590] sm:$0xff]
        %v1405 = vld [vmem:[%s3 + $0x1598] sm:$0xff]
        %v1406 = vld [vmem:[%s3 + $0x15a0] sm:$0xff]
        %v1407 = vld [vmem:[%s3 + $0x15a8] sm:$0xff]
        %v1408 = vld [vmem:[%s3 + $0x15b0] sm:$0xff]
        %v1409 = vld [vmem:[%s3 + $0x15b8] sm:$0xff]
        %v1410 = vld [vmem:[%s3 + $0x15c0] sm:$0xff]
        %v1411 = vld [vmem:[%s3 + $0x15c8] sm:$0xff]
        %v1412 = vld [vmem:[%s3 + $0x15d0] sm:$0xff]
        %v1413 = vld [vmem:[%s3 + $0x15d8] sm:$0xff]
        %v1414 = vld [vmem:[%s3 + $0x15e0] sm:$0xff]
        %v1415 = vld [vmem:[%s3 + $0x15e8] sm:$0xff]
        %v1416 = vld [vmem:[%s3 + $0x15f0] sm:$0xff]
        %v1417 = vld [vmem:[%s3 + $0x15f8] sm:$0xff]
        %v1418 = vld [vmem:[%s3 + $0x1600] sm:$0xff]
        %v1419 = vld [vmem:[%s3 + $0x1608] sm:$0xff]
        %v1420 = vld [vmem:[%s3 + $0x1610] sm:$0xff]
        %v1421 = vld [vmem:[%s3 + $0x1618] sm:$0xff]
        %v1422 = vld [vmem:[%s3 + $0x1620] sm:$0xff]
        %v1423 = vld [vmem:[%s3 + $0x1628] sm:$0xff]
        %v1424 = vld [vmem:[%s3 + $0x1630] sm:$0xff]
        %v1425 = vld [vmem:[%s3 + $0x1638] sm:$0xff]
        %v1426 = vld [vmem:[%s3 + $0x1640] sm:$0xff]
        %v1427 = vld [vmem:[%s3 + $0x1648] sm:$0xff]
        %v1428 = vld [vmem:[%s3 + $0x1650] sm:$0xff]
        %v1429 = vld [vmem:[%s3 + $0x1658] sm:$0xff]
        %v1430 = vld [vmem:[%s3 + $0x1660] sm:$0xff]
        %v1431 = vld [vmem:[%s3 + $0x1668] sm:$0xff]
        %v1432 = vld [vmem:[%s3 + $0x1670] sm:$0xff]
        %v1433 = vld [vmem:[%s3 + $0x1678] sm:$0xff]
        %v1434 = vld [vmem:[%s3 + $0x1680] sm:$0xff]
        %v1435 = vld [vmem:[%s3 + $0x1688] sm:$0xff]
        %v1436 = vld [vmem:[%s3 + $0x1690] sm:$0xff]
        %v1437 = vld [vmem:[%s3 + $0x1698] sm:$0xff]
        %v1438 = vld [vmem:[%s3 + $0x16a0] sm:$0xff]
        %v1439 = vld [vmem:[%s3 + $0x16a8] sm:$0xff]
        %v1440 = vld [vmem:[%s3 + $0x16b0] sm:$0xff]
        %v1441 = vld [vmem:[%s3 + $0x16b8] sm:$0xff]
        %v1442 = vld [vmem:[%s3 + $0x16c0] sm:$0xff]
        %v1443 = vld [vmem:[%s3 + $0x16c8] sm:$0xff]
        %v1444 = vld [vmem:[%s3 + $0x16d0] sm:$0xff]
        %v1445 = vld [vmem:[%s3 + $0x16d8] sm:$0xff]
        %v1446 = vld [vmem:[%s3 + $0x16e0] sm:$0xff]
        %v1447 = vld [vmem:[%s3 + $0x16e8] sm:$0xff]
        %v1448 = vld [vmem:[%s3 + $0x16f0] sm:$0xff]
        %v1449 = vld [vmem:[%s3 + $0x16f8] sm:$0xff]
        %v1450 = vld [vmem:[%s3 + $0x1700] sm:$0xff]
        %v1451 = vld [vmem:[%s3 + $0x1708] sm:$0xff]
        %v1452 = vld [vmem:[%s3 + $0x1710] sm:$0xff]
        %v1453 = vld [vmem:[%s3 + $0x1718] sm:$0xff]
        %v1454 = vld [vmem:[%s3 + $0x1720] sm:$0xff]
        %v1455 = vld [vmem:[%s3 + $0x1728] sm:$0xff]
        %v1456 = vld [vmem:[%s3 + $0x1730] sm:$0xff]
        %v1457 = vld [vmem:[%s3 + $0x1738] sm:$0xff]
        %v1458 = vld [vmem:[%s3 + $0x1740] sm:$0xff]
        %v1459 = vld [vmem:[%s3 + $0x1748] sm:$0xff]
        %v1460 = vld [vmem:[%s3 + $0x1750] sm:$0xff]
        %v1461 = vld [vmem:[%s3 + $0x1758] sm:$0xff]
        %v1462 = vld [vmem:[%s3 + $0x1760] sm:$0xff]
        %v1463 = vld [vmem:[%s3 + $0x1768] sm:$0xff]
        %v1464 = vld [vmem:[%s3 + $0x1770] sm:$0xff]
        %v1465 = vld [vmem:[%s3 + $0x1778] sm:$0xff]
        %v1466 = vld [vmem:[%s3 + $0x1780] sm:$0xff]
        %v1467 = vld [vmem:[%s3 + $0x1788] sm:$0xff]
        %v1468 = vld [vmem:[%s3 + $0x1790] sm:$0xff]
        %v1469 = vld [vmem:[%s3 + $0x1798] sm:$0xff]
        %v1470 = vld [vmem:[%s3 + $0x17a0] sm:$0xff]
        %v1471 = vld [vmem:[%s3 + $0x17a8] sm:$0xff]
        %v1472 = vld [vmem:[%s3 + $0x17b0] sm:$0xff]
        %v1473 = vld [vmem:[%s3 + $0x17b8] sm:$0xff]
        %v1474 = vld [vmem:[%s3 + $0x17c0] sm:$0xff]
        %v1475 = vld [vmem:[%s3 + $0x17c8] sm:$0xff]
        %v1476 = vld [vmem:[%s3 + $0x17d0] sm:$0xff]
        %v1477 = vld [vmem:[%s3 + $0x17d8] sm:$0xff]
        %v1478 = vld [vmem:[%s3 + $0x17e0] sm:$0xff]
        %v1479 = vld [vmem:[%s3 + $0x17e8] sm:$0xff]
        %v1480 = vld [vmem:[%s3 + $0x17f0] sm:$0xff]
        %v1481 = vld [vmem:[%s3 + $0x17f8] sm:$0xff]
        %v1482 = vld [vmem:[%s3 + $0x1800] sm:$0xff]
        %v1483 = vld [vmem:[%s3 + $0x1808] sm:$0xff]
        %v1484 = vld [vmem:[%s3 + $0x1810] sm:$0xff]
        %v1485 = vld [vmem:[%s3 + $0x1818] sm:$0xff]
        %v1486 = vld [vmem:[%s3 + $0x1820] sm:$0xff]
        %v1487 = vld [vmem:[%s3 + $0x1828] sm:$0xff]
        %v1488 = vld [vmem:[%s3 + $0x1830] sm:$0xff]
        %v1489 = vld [vmem:[%s3 + $0x1838] sm:$0xff]
        %v1490 = vld [vmem:[%s3 + $0x1840] sm:$0xff]
        %v1491 = vld [vmem:[%s3 + $0x1848] sm:$0xff]
        %v1492 = vld [vmem:[%s3 + $0x1850] sm:$0xff]
        %v1493 = vld [vmem:[%s3 + $0x1858] sm:$0xff]
        %v1494 = vld [vmem:[%s3 + $0x1860] sm:$0xff]
        %v1495 = vld [vmem:[%s3 + $0x1868] sm:$0xff]
        %v1496 = vld [vmem:[%s3 + $0x1870] sm:$0xff]
        %v1497 = vld [vmem:[%s3 + $0x1878] sm:$0xff]
        %v1498 = vld [vmem:[%s3 + $0x1880] sm:$0xff]
        %v1499 = vld [vmem:[%s3 + $0x1888] sm:$0xff]
        %v1500 = vld [vmem:[%s3 + $0x1890] sm:$0xff]
        %v1501 = vld [vmem:[%s3 + $0x1898] sm:$0xff]
        %v1502 = vld [vmem:[%s3 + $0x18a0] sm:$0xff]
        %v1503 = vld [vmem:[%s3 + $0x18a8] sm:$0xff]
        %v1504 = vld [vmem:[%s3 + $0x18b0] sm:$0xff]
        %v1505 = vld [vmem:[%s3 + $0x18b8] sm:$0xff]
        %v1506 = vld [vmem:[%s3 + $0x18c0] sm:$0xff]
        %v1507 = vld [vmem:[%s3 + $0x18c8] sm:$0xff]
        %v1508 = vld [vmem:[%s3 + $0x18d0] sm:$0xff]
        %v1509 = vld [vmem:[%s3 + $0x18d8] sm:$0xff]
        %v1510 = vld [vmem:[%s3 + $0x18e0] sm:$0xff]
        %v1511 = vld [vmem:[%s3 + $0x18e8] sm:$0xff]
        %v1512 = vld [vmem:[%s3 + $0x18f0] sm:$0xff]
        %v1513 = vld [vmem:[%s3 + $0x18f8] sm:$0xff]
        %v1514 = vld [vmem:[%s4] sm:$0x1f]
        %v1516 = vlaneseq
        %v1517 = vshrl.u32 %v1516, 7
        %v1518 = vsub.s32 0, %v1517
        %v1519 = vrot.slane %v1514, %v1518
        %v1520 = vlaneseq
        %v1521 = vshrl.u32 %v1520, 7
        %v1522 = vsub.s32 1, %v1521
        %v1523 = vrot.slane %v1514, %v1522
        %v1524 = vlaneseq
        %v1525 = vshrl.u32 %v1524, 7
        %v1526 = vsub.s32 2, %v1525
        %v1527 = vrot.slane %v1514, %v1526
        %v1528 = vlaneseq
        %v1529 = vshrl.u32 %v1528, 7
        %v1530 = vsub.s32 3, %v1529
        %v1531 = vrot.slane %v1514, %v1530
        %v1532 = vlaneseq
        %v1533 = vshrl.u32 %v1532, 7
        %v1534 = vsub.s32 4, %v1533
        %v1535 = vrot.slane %v1514, %v1534
        %1541 = vmatprep.subr.mxu0 %v715
        %1542 = vmatpush1.msra.mxu0 %v714
        %1543 = vmatprep.subr.mxu0 %v720
        %1544 = vmatpush1.msra.mxu0 %v719
        %1545 = vmatprep.subr.mxu0 %v725
        %1546 = vmatpush1.msra.mxu0 %v724
        %1547 = vmatprep.subr.mxu0 %v730
        %1548 = vmatpush1.msra.mxu0 %v729
        %1549 = vmatprep.subr.mxu0 %v735
        %1550 = vmatpush1.msra.mxu0 %v734
        %1551 = vmatprep.subr.mxu0 %v740
        %1552 = vmatpush1.msra.mxu0 %v739
        %1553 = vmatprep.subr.mxu0 %v745
        %1554 = vmatpush1.msra.mxu0 %v744
        %1555 = vmatprep.subr.mxu0 %v750
        %1556 = vmatpush1.msra.mxu0 %v749
        %1557 = vmatprep.subr.mxu0 %v755
        %1558 = vmatpush1.msra.mxu0 %v754
        %1559 = vmatprep.subr.mxu0 %v760
        %1560 = vmatpush1.msra.mxu0 %v759
        %1561 = vmatprep.subr.mxu0 %v765
        %1562 = vmatpush1.msra.mxu0 %v764
        %1563 = vmatprep.subr.mxu0 %v770
        %1564 = vmatpush1.msra.mxu0 %v769
        %1565 = vmatprep.subr.mxu0 %v775
        %1566 = vmatpush1.msra.mxu0 %v774
        %1567 = vmatprep.subr.mxu0 %v780
        %1568 = vmatpush1.msra.mxu0 %v779
        %1569 = vmatprep.subr.mxu0 %v785
        %1570 = vmatpush1.msra.mxu0 %v784
        %1571 = vmatprep.subr.mxu0 %v790
        %1572 = vmatpush1.msra.mxu0 %v789
        %1573 = vmatprep.subr.mxu0 %v795
        %1574 = vmatpush1.msra.mxu0 %v794
        %1575 = vmatprep.subr.mxu0 %v800
        %1576 = vmatpush1.msra.mxu0 %v799
        %1577 = vmatprep.subr.mxu0 %v805
        %1578 = vmatpush1.msra.mxu0 %v804
        %1579 = vmatprep.subr.mxu0 %v810
        %1580 = vmatpush1.msra.mxu0 %v809
        %1581 = vmatprep.subr.mxu0 %v815
        %1582 = vmatpush1.msra.mxu0 %v814
        %1583 = vmatprep.subr.mxu0 %v820
        %1584 = vmatpush1.msra.mxu0 %v819
        %1585 = vmatprep.subr.mxu0 %v825
        %1586 = vmatpush1.msra.mxu0 %v824
        %1587 = vmatprep.subr.mxu0 %v830
        %1588 = vmatpush1.msra.mxu0 %v829
        %1589 = vmatprep.subr.mxu0 %v835
        %1590 = vmatpush1.msra.mxu0 %v834
        %1591 = vmatprep.subr.mxu0 %v840
        %1592 = vmatpush1.msra.mxu0 %v839
        %1593 = vmatprep.subr.mxu0 %v845
        %1594 = vmatpush1.msra.mxu0 %v844
        %1595 = vmatprep.subr.mxu0 %v850
        %1596 = vmatpush1.msra.mxu0 %v849
        %1597 = vmatprep.subr.mxu0 %v855
        %1598 = vmatpush1.msra.mxu0 %v854
        %1599 = vmatprep.subr.mxu0 %v860
        %1600 = vmatpush1.msra.mxu0 %v859
        %1601 = vmatprep.subr.mxu0 %v865
        %1602 = vmatpush1.msra.mxu0 %v864
        %1603 = vmatprep.subr.mxu0 %v870
        %1604 = vmatpush1.msra.mxu0 %v869
        %1605 = vmatprep.mubr.f32.mxu0 %v687
        %1606 = vmatmul.mubr.f32.gmra.mrb[0].mxu0 %v686
        %v1607 = vpop.f32.mrb[0].mxu0
        %v1608 = vadd.f32 %v1519, %v1607
        %v1609 = vpop.f32.mrb[0].mxu0
        %v1610 = vadd.f32 %v1523, %v1609
        %1611 = vdwg.mxu0
        %1612 = vmatprep.subr.mxu0 %v875
        %1613 = vmatpush1.msra.mxu0 %v874
        %1614 = vmatprep.subr.mxu0 %v880
        %1615 = vmatpush1.msra.mxu0 %v879
        %1616 = vmatprep.subr.mxu0 %v885
        %1617 = vmatpush1.msra.mxu0 %v884
        %1618 = vmatprep.subr.mxu0 %v890
        %1619 = vmatpush1.msra.mxu0 %v889
        %1620 = vmatprep.subr.mxu0 %v895
        %1621 = vmatpush1.msra.mxu0 %v894
        %1622 = vmatprep.subr.mxu0 %v900
        %1623 = vmatpush1.msra.mxu0 %v899
        %1624 = vmatprep.subr.mxu0 %v905
        %1625 = vmatpush1.msra.mxu0 %v904
        %1626 = vmatprep.subr.mxu0 %v910
        %1627 = vmatpush1.msra.mxu0 %v909
        %1628 = vmatprep.subr.mxu0 %v915
        %1629 = vmatpush1.msra.mxu0 %v914
        %1630 = vmatprep.subr.mxu0 %v920
        %1631 = vmatpush1.msra.mxu0 %v919
        %1632 = vmatprep.subr.mxu0 %v925
        %1633 = vmatpush1.msra.mxu0 %v924
        %1634 = vmatprep.subr.mxu0 %v930
        %1635 = vmatpush1.msra.mxu0 %v929
        %1636 = vmatprep.subr.mxu0 %v935
        %1637 = vmatpush1.msra.mxu0 %v934
        %1638 = vmatprep.subr.mxu0 %v940
        %1639 = vmatpush1.msra.mxu0 %v939
        %1640 = vmatprep.subr.mxu0 %v945
        %1641 = vmatpush1.msra.mxu0 %v944
        %1642 = vmatprep.subr.mxu0 %v950
        %1643 = vmatpush1.msra.mxu0 %v949
        %1644 = vmatprep.subr.mxu0 %v955
        %1645 = vmatpush1.msra.mxu0 %v954
        %1646 = vmatprep.subr.mxu0 %v960
        %1647 = vmatpush1.msra.mxu0 %v959
        %1648 = vmatprep.subr.mxu0 %v965
        %1649 = vmatpush1.msra.mxu0 %v964
        %1650 = vmatprep.subr.mxu0 %v970
        %1651 = vmatpush1.msra.mxu0 %v969
        %1652 = vmatprep.subr.mxu0 %v975
        %1653 = vmatpush1.msra.mxu0 %v974
        %1654 = vmatprep.subr.mxu0 %v980
        %1655 = vmatpush1.msra.mxu0 %v979
        %1656 = vmatprep.subr.mxu0 %v985
        %1657 = vmatpush1.msra.mxu0 %v984
        %1658 = vmatprep.subr.mxu0 %v990
        %1659 = vmatpush1.msra.mxu0 %v989
        %1660 = vmatprep.subr.mxu0 %v995
        %1661 = vmatpush1.msra.mxu0 %v994
        %1662 = vmatprep.subr.mxu0 %v1000
        %1663 = vmatpush1.msra.mxu0 %v999
        %1664 = vmatprep.subr.mxu0 %v1005
        %1665 = vmatpush1.msra.mxu0 %v1004
        %1666 = vmatprep.subr.mxu0 %v1010
        %1667 = vmatpush1.msra.mxu0 %v1009
        %1668 = vmatprep.subr.mxu0 %v1015
        %1669 = vmatpush1.msra.mxu0 %v1014
        %1670 = vmatprep.subr.mxu0 %v1020
        %1671 = vmatpush1.msra.mxu0 %v1019
        %1672 = vmatprep.subr.mxu0 %v1025
        %1673 = vmatpush1.msra.mxu0 %v1024
        %1674 = vmatprep.subr.mxu0 %v1030
        %1675 = vmatpush1.msra.mxu0 %v1029
        %1676 = vmatprep.mubr.f32.mxu0 %v689
        %1677 = vmatmul.mubr.f32.gmra.mrb[0].mxu0 %v688
        %v1678 = vpop.f32.mrb[0].mxu0
        %v1679 = vadd.f32 %v1608, %v1678
        %v1680 = vpop.f32.mrb[0].mxu0
        %v1681 = vadd.f32 %v1610, %v1680
        %1682 = vdwg.mxu0
        %1683 = vmatprep.subr.mxu0 %v1035
        %1684 = vmatpush1.msra.mxu0 %v1034
        %1685 = vmatprep.subr.mxu0 %v1040
        %1686 = vmatpush1.msra.mxu0 %v1039
        %1687 = vmatprep.subr.mxu0 %v1045
        %1688 = vmatpush1.msra.mxu0 %v1044
        %1689 = vmatprep.subr.mxu0 %v1050
        %1690 = vmatpush1.msra.mxu0 %v1049
        %1691 = vmatprep.subr.mxu0 %v1055
        %1692 = vmatpush1.msra.mxu0 %v1054
        %1693 = vmatprep.subr.mxu0 %v1060
        %1694 = vmatpush1.msra.mxu0 %v1059
        %1695 = vmatprep.subr.mxu0 %v1065
        %1696 = vmatpush1.msra.mxu0 %v1064
        %1697 = vmatprep.subr.mxu0 %v1070
        %1698 = vmatpush1.msra.mxu0 %v1069
        %1699 = vmatprep.subr.mxu0 %v1075
        %1700 = vmatpush1.msra.mxu0 %v1074
        %1701 = vmatprep.subr.mxu0 %v1080
        %1702 = vmatpush1.msra.mxu0 %v1079
        %1703 = vmatprep.subr.mxu0 %v1085
        %1704 = vmatpush1.msra.mxu0 %v1084
        %1705 = vmatprep.subr.mxu0 %v1090
        %1706 = vmatpush1.msra.mxu0 %v1089
        %1707 = vmatprep.subr.mxu0 %v1095
        %1708 = vmatpush1.msra.mxu0 %v1094
        %1709 = vmatprep.subr.mxu0 %v1100
        %1710 = vmatpush1.msra.mxu0 %v1099
        %1711 = vmatprep.subr.mxu0 %v1105
        %1712 = vmatpush1.msra.mxu0 %v1104
        %1713 = vmatprep.subr.mxu0 %v1110
        %1714 = vmatpush1.msra.mxu0 %v1109
        %1715 = vmatprep.subr.mxu0 %v1115
        %1716 = vmatpush1.msra.mxu0 %v1114
        %1717 = vmatprep.subr.mxu0 %v1120
        %1718 = vmatpush1.msra.mxu0 %v1119
        %1719 = vmatprep.subr.mxu0 %v1125
        %1720 = vmatpush1.msra.mxu0 %v1124
        %1721 = vmatprep.subr.mxu0 %v1130
        %1722 = vmatpush1.msra.mxu0 %v1129
        %1723 = vmatprep.subr.mxu0 %v1135
        %1724 = vmatpush1.msra.mxu0 %v1134
        %1725 = vmatprep.subr.mxu0 %v1140
        %1726 = vmatpush1.msra.mxu0 %v1139
        %1727 = vmatprep.subr.mxu0 %v1145
        %1728 = vmatpush1.msra.mxu0 %v1144
        %1729 = vmatprep.subr.mxu0 %v1150
        %1730 = vmatpush1.msra.mxu0 %v1149
        %1731 = vmatprep.subr.mxu0 %v1155
        %1732 = vmatpush1.msra.mxu0 %v1154
        %1733 = vmatprep.subr.mxu0 %v1160
        %1734 = vmatpush1.msra.mxu0 %v1159
        %1735 = vmatprep.subr.mxu0 %v1165
        %1736 = vmatpush1.msra.mxu0 %v1164
        %1737 = vmatprep.subr.mxu0 %v1170
        %1738 = vmatpush1.msra.mxu0 %v1169
        %1739 = vmatprep.subr.mxu0 %v1175
        %1740 = vmatpush1.msra.mxu0 %v1174
        %1741 = vmatprep.subr.mxu0 %v1180
        %1742 = vmatpush1.msra.mxu0 %v1179
        %1743 = vmatprep.subr.mxu0 %v1185
        %1744 = vmatpush1.msra.mxu0 %v1184
        %1745 = vmatprep.subr.mxu0 %v1190
        %1746 = vmatpush1.msra.mxu0 %v1189
        %1747 = vmatprep.mubr.f32.mxu0 %v698
        %1748 = vmatmul.mubr.f32.gmra.mrb[0].mxu0 %v694
        %v1749 = vpop.f32.mrb[0].mxu0
        %v1750 = vadd.f32 %v1679, %v1749
        %v1751 = vpop.f32.mrb[0].mxu0
        %v1752 = vadd.f32 %v1681, %v1751
        %1753 = vdwg.mxu0
        %1754 = vmatprep.subr.mxu0 %v1195
        %1755 = vmatpush1.msra.mxu0 %v1194
        %1756 = vmatprep.subr.mxu0 %v1200
        %1757 = vmatpush1.msra.mxu0 %v1199
        %1758 = vmatprep.subr.mxu0 %v1205
        %1759 = vmatpush1.msra.mxu0 %v1204
        %1760 = vmatprep.subr.mxu0 %v1210
        %1761 = vmatpush1.msra.mxu0 %v1209
        %1762 = vmatprep.subr.mxu0 %v1215
        %1763 = vmatpush1.msra.mxu0 %v1214
        %1764 = vmatprep.subr.mxu0 %v1220
        %1765 = vmatpush1.msra.mxu0 %v1219
        %1766 = vmatprep.subr.mxu0 %v1225
        %1767 = vmatpush1.msra.mxu0 %v1224
        %1768 = vmatprep.subr.mxu0 %v1230
        %1769 = vmatpush1.msra.mxu0 %v1229
        %1770 = vmatprep.subr.mxu0 %v1235
        %1771 = vmatpush1.msra.mxu0 %v1234
        %1772 = vmatprep.subr.mxu0 %v1240
        %1773 = vmatpush1.msra.mxu0 %v1239
        %1774 = vmatprep.subr.mxu0 %v1245
        %1775 = vmatpush1.msra.mxu0 %v1244
        %1776 = vmatprep.subr.mxu0 %v1250
        %1777 = vmatpush1.msra.mxu0 %v1249
        %1778 = vmatprep.subr.mxu0 %v1255
        %1779 = vmatpush1.msra.mxu0 %v1254
        %1780 = vmatprep.subr.mxu0 %v1260
        %1781 = vmatpush1.msra.mxu0 %v1259
        %1782 = vmatprep.subr.mxu0 %v1265
        %1783 = vmatpush1.msra.mxu0 %v1264
        %1784 = vmatprep.subr.mxu0 %v1270
        %1785 = vmatpush1.msra.mxu0 %v1269
        %1786 = vmatprep.subr.mxu0 %v1275
        %1787 = vmatpush1.msra.mxu0 %v1274
        %1788 = vmatprep.subr.mxu0 %v1280
        %1789 = vmatpush1.msra.mxu0 %v1279
        %1790 = vmatprep.subr.mxu0 %v1285
        %1791 = vmatpush1.msra.mxu0 %v1284
        %1792 = vmatprep.subr.mxu0 %v1290
        %1793 = vmatpush1.msra.mxu0 %v1289
        %1794 = vmatprep.subr.mxu0 %v1295
        %1795 = vmatpush1.msra.mxu0 %v1294
        %1796 = vmatprep.subr.mxu0 %v1300
        %1797 = vmatpush1.msra.mxu0 %v1299
        %1798 = vmatprep.subr.mxu0 %v1305
        %1799 = vmatpush1.msra.mxu0 %v1304
        %1800 = vmatprep.subr.mxu0 %v1310
        %1801 = vmatpush1.msra.mxu0 %v1309
        %1802 = vmatprep.subr.mxu0 %v1315
        %1803 = vmatpush1.msra.mxu0 %v1314
        %1804 = vmatprep.subr.mxu0 %v1320
        %1805 = vmatpush1.msra.mxu0 %v1319
        %1806 = vmatprep.subr.mxu0 %v1325
        %1807 = vmatpush1.msra.mxu0 %v1324
        %1808 = vmatprep.subr.mxu0 %v1330
        %1809 = vmatpush1.msra.mxu0 %v1329
        %1810 = vmatprep.subr.mxu0 %v1335
        %1811 = vmatpush1.msra.mxu0 %v1334
        %1812 = vmatprep.subr.mxu0 %v1340
        %1813 = vmatpush1.msra.mxu0 %v1339
        %1814 = vmatprep.subr.mxu0 %v1345
        %1815 = vmatpush1.msra.mxu0 %v1344
        %1816 = vmatprep.subr.mxu0 %v1350
        %1817 = vmatpush1.msra.mxu0 %v1349
        %1818 = vmatprep.mubr.f32.mxu0 %v706
        %1819 = vmatmul.mubr.f32.gmra.mrb[0].mxu0 %v702
        %v1820 = vpop.f32.mrb[0].mxu0
        %v1821 = vadd.f32 %v1750, %v1820
        %v1822 = vpop.f32.mrb[0].mxu0
        %v1823 = vadd.f32 %v1752, %v1822
        %1824 = vdwg.mxu0
        %1825 = vmatprep.subr.mxu0 %v1355
        %1826 = vmatpush1.msra.mxu0 %v1354
        %1827 = vmatprep.subr.mxu0 %v1360
        %1828 = vmatpush1.msra.mxu0 %v1359
        %1829 = vmatprep.subr.mxu0 %v1365
        %1830 = vmatpush1.msra.mxu0 %v1364
        %1831 = vmatprep.subr.mxu0 %v1370
        %1832 = vmatpush1.msra.mxu0 %v1369
        %1833 = vmatprep.subr.mxu0 %v1375
        %1834 = vmatpush1.msra.mxu0 %v1374
        %1835 = vmatprep.subr.mxu0 %v1380
        %1836 = vmatpush1.msra.mxu0 %v1379
        %1837 = vmatprep.subr.mxu0 %v1385
        %1838 = vmatpush1.msra.mxu0 %v1384
        %1839 = vmatprep.subr.mxu0 %v1390
        %1840 = vmatpush1.msra.mxu0 %v1389
        %1841 = vmatprep.subr.mxu0 %v1395
        %1842 = vmatpush1.msra.mxu0 %v1394
        %1843 = vmatprep.subr.mxu0 %v1400
        %1844 = vmatpush1.msra.mxu0 %v1399
        %1845 = vmatprep.subr.mxu0 %v1405
        %1846 = vmatpush1.msra.mxu0 %v1404
        %1847 = vmatprep.subr.mxu0 %v1410
        %1848 = vmatpush1.msra.mxu0 %v1409
        %1849 = vmatprep.subr.mxu0 %v1415
        %1850 = vmatpush1.msra.mxu0 %v1414
        %1851 = vmatprep.subr.mxu0 %v1420
        %1852 = vmatpush1.msra.mxu0 %v1419
        %1853 = vmatprep.subr.mxu0 %v1425
        %1854 = vmatpush1.msra.mxu0 %v1424
        %1855 = vmatprep.subr.mxu0 %v1430
        %1856 = vmatpush1.msra.mxu0 %v1429
        %1857 = vmatprep.subr.mxu0 %v1435
        %1858 = vmatpush1.msra.mxu0 %v1434
        %1859 = vmatprep.subr.mxu0 %v1440
        %1860 = vmatpush1.msra.mxu0 %v1439
        %1861 = vmatprep.subr.mxu0 %v1445
        %1862 = vmatpush1.msra.mxu0 %v1444
        %1863 = vmatprep.subr.mxu0 %v1450
        %1864 = vmatpush1.msra.mxu0 %v1449
        %1865 = vmatprep.subr.mxu0 %v1455
        %1866 = vmatpush1.msra.mxu0 %v1454
        %1867 = vmatprep.subr.mxu0 %v1460
        %1868 = vmatpush1.msra.mxu0 %v1459
        %1869 = vmatprep.subr.mxu0 %v1465
        %1870 = vmatpush1.msra.mxu0 %v1464
        %1871 = vmatprep.subr.mxu0 %v1470
        %1872 = vmatpush1.msra.mxu0 %v1469
        %1873 = vmatprep.subr.mxu0 %v1475
        %1874 = vmatpush1.msra.mxu0 %v1474
        %1875 = vmatprep.subr.mxu0 %v1480
        %1876 = vmatpush1.msra.mxu0 %v1479
        %1877 = vmatprep.subr.mxu0 %v1485
        %1878 = vmatpush1.msra.mxu0 %v1484
        %1879 = vmatprep.subr.mxu0 %v1490
        %1880 = vmatpush1.msra.mxu0 %v1489
        %1881 = vmatprep.subr.mxu0 %v1495
        %1882 = vmatpush1.msra.mxu0 %v1494
        %1883 = vmatprep.subr.mxu0 %v1500
        %1884 = vmatpush1.msra.mxu0 %v1499
        %1885 = vmatprep.subr.mxu0 %v1505
        %1886 = vmatpush1.msra.mxu0 %v1504
        %1887 = vmatprep.subr.mxu0 %v1510
        %1888 = vmatpush1.msra.mxu0 %v1509
        %1889 = vmatprep.mubr.f32.mxu0 %v713
        %1890 = vmatmul.mubr.f32.gmra.mrb[0].mxu0 %v710
        %v1891 = vpop.f32.mrb[0].mxu0
        %v1892 = vadd.f32 %v1821, %v1891
        %v1893 = vpop.f32.mrb[0].mxu0
        %v1894 = vadd.f32 %v1823, %v1893
        %1895 = vdwg.mxu0
        %1896 = vmatprep.subr.mxu0 %v717
        %1897 = vmatpush1.msra.mxu0 %v716
        %1898 = vmatprep.subr.mxu0 %v722
        %1899 = vmatpush1.msra.mxu0 %v721
        %1900 = vmatprep.subr.mxu0 %v727
        %1901 = vmatpush1.msra.mxu0 %v726
        %1902 = vmatprep.subr.mxu0 %v732
        %1903 = vmatpush1.msra.mxu0 %v731
        %1904 = vmatprep.subr.mxu0 %v737
        %1905 = vmatpush1.msra.mxu0 %v736
        %1906 = vmatprep.subr.mxu0 %v742
        %1907 = vmatpush1.msra.mxu0 %v741
        %1908 = vmatprep.subr.mxu0 %v747
        %1909 = vmatpush1.msra.mxu0 %v746
        %1910 = vmatprep.subr.mxu0 %v752
        %1911 = vmatpush1.msra.mxu0 %v751
        %1912 = vmatprep.subr.mxu0 %v757
        %1913 = vmatpush1.msra.mxu0 %v756
        %1914 = vmatprep.subr.mxu0 %v762
        %1915 = vmatpush1.msra.mxu0 %v761
        %1916 = vmatprep.subr.mxu0 %v767
        %1917 = vmatpush1.msra.mxu0 %v766
        %1918 = vmatprep.subr.mxu0 %v772
        %1919 = vmatpush1.msra.mxu0 %v771
        %1920 = vmatprep.subr.mxu0 %v777
        %1921 = vmatpush1.msra.mxu0 %v776
        %1922 = vmatprep.subr.mxu0 %v782
        %1923 = vmatpush1.msra.mxu0 %v781
        %1924 = vmatprep.subr.mxu0 %v787
        %1925 = vmatpush1.msra.mxu0 %v786
        %1926 = vmatprep.subr.mxu0 %v792
        %1927 = vmatpush1.msra.mxu0 %v791
        %1928 = vmatprep.subr.mxu0 %v797
        %1929 = vmatpush1.msra.mxu0 %v796
        %1930 = vmatprep.subr.mxu0 %v802
        %1931 = vmatpush1.msra.mxu0 %v801
        %1932 = vmatprep.subr.mxu0 %v807
        %1933 = vmatpush1.msra.mxu0 %v806
        %1934 = vmatprep.subr.mxu0 %v812
        %1935 = vmatpush1.msra.mxu0 %v811
        %1936 = vmatprep.subr.mxu0 %v817
        %1937 = vmatpush1.msra.mxu0 %v816
        %1938 = vmatprep.subr.mxu0 %v822
        %1939 = vmatpush1.msra.mxu0 %v821
        %1940 = vmatprep.subr.mxu0 %v827
        %1941 = vmatpush1.msra.mxu0 %v826
        %1942 = vmatprep.subr.mxu0 %v832
        %1943 = vmatpush1.msra.mxu0 %v831
        %1944 = vmatprep.subr.mxu0 %v837
        %1945 = vmatpush1.msra.mxu0 %v836
        %1946 = vmatprep.subr.mxu0 %v842
        %1947 = vmatpush1.msra.mxu0 %v841
        %1948 = vmatprep.subr.mxu0 %v847
        %1949 = vmatpush1.msra.mxu0 %v846
        %1950 = vmatprep.subr.mxu0 %v852
        %1951 = vmatpush1.msra.mxu0 %v851
        %1952 = vmatprep.subr.mxu0 %v857
        %1953 = vmatpush1.msra.mxu0 %v856
        %1954 = vmatprep.subr.mxu0 %v862
        %1955 = vmatpush1.msra.mxu0 %v861
        %1956 = vmatprep.subr.mxu0 %v867
        %1957 = vmatpush1.msra.mxu0 %v866
        %1958 = vmatprep.subr.mxu0 %v872
        %1959 = vmatpush1.msra.mxu0 %v871
        %1960 = vmatprep.mubr.f32.mxu0 %v687
        %1961 = vmatmul.mubr.f32.gmra.mrb[0].mxu0 %v686
        %v1962 = vpop.f32.mrb[0].mxu0
        %v1963 = vadd.f32 %v1527, %v1962
        %v1964 = vpop.f32.mrb[0].mxu0
        %v1965 = vadd.f32 %v1531, %v1964
        %1966 = vdwg.mxu0
        %1967 = vmatprep.subr.mxu0 %v877
        %1968 = vmatpush1.msra.mxu0 %v876
        %1969 = vmatprep.subr.mxu0 %v882
        %1970 = vmatpush1.msra.mxu0 %v881
        %1971 = vmatprep.subr.mxu0 %v887
        %1972 = vmatpush1.msra.mxu0 %v886
        %1973 = vmatprep.subr.mxu0 %v892
        %1974 = vmatpush1.msra.mxu0 %v891
        %1975 = vmatprep.subr.mxu0 %v897
        %1976 = vmatpush1.msra.mxu0 %v896
        %1977 = vmatprep.subr.mxu0 %v902
        %1978 = vmatpush1.msra.mxu0 %v901
        %1979 = vmatprep.subr.mxu0 %v907
        %1980 = vmatpush1.msra.mxu0 %v906
        %1981 = vmatprep.subr.mxu0 %v912
        %1982 = vmatpush1.msra.mxu0 %v911
        %1983 = vmatprep.subr.mxu0 %v917
        %1984 = vmatpush1.msra.mxu0 %v916
        %1985 = vmatprep.subr.mxu0 %v922
        %1986 = vmatpush1.msra.mxu0 %v921
        %1987 = vmatprep.subr.mxu0 %v927
        %1988 = vmatpush1.msra.mxu0 %v926
        %1989 = vmatprep.subr.mxu0 %v932
        %1990 = vmatpush1.msra.mxu0 %v931
        %1991 = vmatprep.subr.mxu0 %v937
        %1992 = vmatpush1.msra.mxu0 %v936
        %1993 = vmatprep.subr.mxu0 %v942
        %1994 = vmatpush1.msra.mxu0 %v941
        %1995 = vmatprep.subr.mxu0 %v947
        %1996 = vmatpush1.msra.mxu0 %v946
        %1997 = vmatprep.subr.mxu0 %v952
        %1998 = vmatpush1.msra.mxu0 %v951
        %1999 = vmatprep.subr.mxu0 %v957
        %2000 = vmatpush1.msra.mxu0 %v956
        %2001 = vmatprep.subr.mxu0 %v962
        %2002 = vmatpush1.msra.mxu0 %v961
        %2003 = vmatprep.subr.mxu0 %v967
        %2004 = vmatpush1.msra.mxu0 %v966
        %2005 = vmatprep.subr.mxu0 %v972
        %2006 = vmatpush1.msra.mxu0 %v971
        %2007 = vmatprep.subr.mxu0 %v977
        %2008 = vmatpush1.msra.mxu0 %v976
        %2009 = vmatprep.subr.mxu0 %v982
        %2010 = vmatpush1.msra.mxu0 %v981
        %2011 = vmatprep.subr.mxu0 %v987
        %2012 = vmatpush1.msra.mxu0 %v986
        %2013 = vmatprep.subr.mxu0 %v992
        %2014 = vmatpush1.msra.mxu0 %v991
        %2015 = vmatprep.subr.mxu0 %v997
        %2016 = vmatpush1.msra.mxu0 %v996
        %2017 = vmatprep.subr.mxu0 %v1002
        %2018 = vmatpush1.msra.mxu0 %v1001
        %2019 = vmatprep.subr.mxu0 %v1007
        %2020 = vmatpush1.msra.mxu0 %v1006
        %2021 = vmatprep.subr.mxu0 %v1012
        %2022 = vmatpush1.msra.mxu0 %v1011
        %2023 = vmatprep.subr.mxu0 %v1017
        %2024 = vmatpush1.msra.mxu0 %v1016
        %2025 = vmatprep.subr.mxu0 %v1022
        %2026 = vmatpush1.msra.mxu0 %v1021
        %2027 = vmatprep.subr.mxu0 %v1027
        %2028 = vmatpush1.msra.mxu0 %v1026
        %2029 = vmatprep.subr.mxu0 %v1032
        %2030 = vmatpush1.msra.mxu0 %v1031
        %2031 = vmatprep.mubr.f32.mxu0 %v689
        %2032 = vmatmul.mubr.f32.gmra.mrb[0].mxu0 %v688
        %v2033 = vpop.f32.mrb[0].mxu0
        %v2034 = vadd.f32 %v1963, %v2033
        %v2035 = vpop.f32.mrb[0].mxu0
        %v2036 = vadd.f32 %v1965, %v2035
        %2037 = vdwg.mxu0
        %2038 = vmatprep.subr.mxu0 %v1037
        %2039 = vmatpush1.msra.mxu0 %v1036
        %2040 = vmatprep.subr.mxu0 %v1042
        %2041 = vmatpush1.msra.mxu0 %v1041
        %2042 = vmatprep.subr.mxu0 %v1047
        %2043 = vmatpush1.msra.mxu0 %v1046
        %2044 = vmatprep.subr.mxu0 %v1052
        %2045 = vmatpush1.msra.mxu0 %v1051
        %2046 = vmatprep.subr.mxu0 %v1057
        %2047 = vmatpush1.msra.mxu0 %v1056
        %2048 = vmatprep.subr.mxu0 %v1062
        %2049 = vmatpush1.msra.mxu0 %v1061
        %2050 = vmatprep.subr.mxu0 %v1067
        %2051 = vmatpush1.msra.mxu0 %v1066
        %2052 = vmatprep.subr.mxu0 %v1072
        %2053 = vmatpush1.msra.mxu0 %v1071
        %2054 = vmatprep.subr.mxu0 %v1077
        %2055 = vmatpush1.msra.mxu0 %v1076
        %2056 = vmatprep.subr.mxu0 %v1082
        %2057 = vmatpush1.msra.mxu0 %v1081
        %2058 = vmatprep.subr.mxu0 %v1087
        %2059 = vmatpush1.msra.mxu0 %v1086
        %2060 = vmatprep.subr.mxu0 %v1092
        %2061 = vmatpush1.msra.mxu0 %v1091
        %2062 = vmatprep.subr.mxu0 %v1097
        %2063 = vmatpush1.msra.mxu0 %v1096
        %2064 = vmatprep.subr.mxu0 %v1102
        %2065 = vmatpush1.msra.mxu0 %v1101
        %2066 = vmatprep.subr.mxu0 %v1107
        %2067 = vmatpush1.msra.mxu0 %v1106
        %2068 = vmatprep.subr.mxu0 %v1112
        %2069 = vmatpush1.msra.mxu0 %v1111
        %2070 = vmatprep.subr.mxu0 %v1117
        %2071 = vmatpush1.msra.mxu0 %v1116
        %2072 = vmatprep.subr.mxu0 %v1122
        %2073 = vmatpush1.msra.mxu0 %v1121
        %2074 = vmatprep.subr.mxu0 %v1127
        %2075 = vmatpush1.msra.mxu0 %v1126
        %2076 = vmatprep.subr.mxu0 %v1132
        %2077 = vmatpush1.msra.mxu0 %v1131
        %2078 = vmatprep.subr.mxu0 %v1137
        %2079 = vmatpush1.msra.mxu0 %v1136
        %2080 = vmatprep.subr.mxu0 %v1142
        %2081 = vmatpush1.msra.mxu0 %v1141
        %2082 = vmatprep.subr.mxu0 %v1147
        %2083 = vmatpush1.msra.mxu0 %v1146
        %2084 = vmatprep.subr.mxu0 %v1152
        %2085 = vmatpush1.msra.mxu0 %v1151
        %2086 = vmatprep.subr.mxu0 %v1157
        %2087 = vmatpush1.msra.mxu0 %v1156
        %2088 = vmatprep.subr.mxu0 %v1162
        %2089 = vmatpush1.msra.mxu0 %v1161
        %2090 = vmatprep.subr.mxu0 %v1167
        %2091 = vmatpush1.msra.mxu0 %v1166
        %2092 = vmatprep.subr.mxu0 %v1172
        %2093 = vmatpush1.msra.mxu0 %v1171
        %2094 = vmatprep.subr.mxu0 %v1177
        %2095 = vmatpush1.msra.mxu0 %v1176
        %2096 = vmatprep.subr.mxu0 %v1182
        %2097 = vmatpush1.msra.mxu0 %v1181
        %2098 = vmatprep.subr.mxu0 %v1187
        %2099 = vmatpush1.msra.mxu0 %v1186
        %2100 = vmatprep.subr.mxu0 %v1192
        %2101 = vmatpush1.msra.mxu0 %v1191
        %2102 = vmatprep.mubr.f32.mxu0 %v698
        %2103 = vmatmul.mubr.f32.gmra.mrb[0].mxu0 %v694
        %v2104 = vpop.f32.mrb[0].mxu0
        %v2105 = vadd.f32 %v2034, %v2104
        %v2106 = vpop.f32.mrb[0].mxu0
        %v2107 = vadd.f32 %v2036, %v2106
        %2108 = vdwg.mxu0
        %2109 = vmatprep.subr.mxu0 %v1197
        %2110 = vmatpush1.msra.mxu0 %v1196
        %2111 = vmatprep.subr.mxu0 %v1202
        %2112 = vmatpush1.msra.mxu0 %v1201
        %2113 = vmatprep.subr.mxu0 %v1207
        %2114 = vmatpush1.msra.mxu0 %v1206
        %2115 = vmatprep.subr.mxu0 %v1212
        %2116 = vmatpush1.msra.mxu0 %v1211
        %2117 = vmatprep.subr.mxu0 %v1217
        %2118 = vmatpush1.msra.mxu0 %v1216
        %2119 = vmatprep.subr.mxu0 %v1222
        %2120 = vmatpush1.msra.mxu0 %v1221
        %2121 = vmatprep.subr.mxu0 %v1227
        %2122 = vmatpush1.msra.mxu0 %v1226
        %2123 = vmatprep.subr.mxu0 %v1232
        %2124 = vmatpush1.msra.mxu0 %v1231
        %2125 = vmatprep.subr.mxu0 %v1237
        %2126 = vmatpush1.msra.mxu0 %v1236
        %2127 = vmatprep.subr.mxu0 %v1242
        %2128 = vmatpush1.msra.mxu0 %v1241
        %2129 = vmatprep.subr.mxu0 %v1247
        %2130 = vmatpush1.msra.mxu0 %v1246
        %2131 = vmatprep.subr.mxu0 %v1252
        %2132 = vmatpush1.msra.mxu0 %v1251
        %2133 = vmatprep.subr.mxu0 %v1257
        %2134 = vmatpush1.msra.mxu0 %v1256
        %2135 = vmatprep.subr.mxu0 %v1262
        %2136 = vmatpush1.msra.mxu0 %v1261
        %2137 = vmatprep.subr.mxu0 %v1267
        %2138 = vmatpush1.msra.mxu0 %v1266
        %2139 = vmatprep.subr.mxu0 %v1272
        %2140 = vmatpush1.msra.mxu0 %v1271
        %2141 = vmatprep.subr.mxu0 %v1277
        %2142 = vmatpush1.msra.mxu0 %v1276
        %2143 = vmatprep.subr.mxu0 %v1282
        %2144 = vmatpush1.msra.mxu0 %v1281
        %2145 = vmatprep.subr.mxu0 %v1287
        %2146 = vmatpush1.msra.mxu0 %v1286
        %2147 = vmatprep.subr.mxu0 %v1292
        %2148 = vmatpush1.msra.mxu0 %v1291
        %2149 = vmatprep.subr.mxu0 %v1297
        %2150 = vmatpush1.msra.mxu0 %v1296
        %2151 = vmatprep.subr.mxu0 %v1302
        %2152 = vmatpush1.msra.mxu0 %v1301
        %2153 = vmatprep.subr.mxu0 %v1307
        %2154 = vmatpush1.msra.mxu0 %v1306
        %2155 = vmatprep.subr.mxu0 %v1312
        %2156 = vmatpush1.msra.mxu0 %v1311
        %2157 = vmatprep.subr.mxu0 %v1317
        %2158 = vmatpush1.msra.mxu0 %v1316
        %2159 = vmatprep.subr.mxu0 %v1322
        %2160 = vmatpush1.msra.mxu0 %v1321
        %2161 = vmatprep.subr.mxu0 %v1327
        %2162 = vmatpush1.msra.mxu0 %v1326
        %2163 = vmatprep.subr.mxu0 %v1332
        %2164 = vmatpush1.msra.mxu0 %v1331
        %2165 = vmatprep.subr.mxu0 %v1337
        %2166 = vmatpush1.msra.mxu0 %v1336
        %2167 = vmatprep.subr.mxu0 %v1342
        %2168 = vmatpush1.msra.mxu0 %v1341
        %2169 = vmatprep.subr.mxu0 %v1347
        %2170 = vmatpush1.msra.mxu0 %v1346
        %2171 = vmatprep.subr.mxu0 %v1352
        %2172 = vmatpush1.msra.mxu0 %v1351
        %2173 = vmatprep.mubr.f32.mxu0 %v706
        %2174 = vmatmul.mubr.f32.gmra.mrb[0].mxu0 %v702
        %v2175 = vpop.f32.mrb[0].mxu0
        %v2176 = vadd.f32 %v2105, %v2175
        %v2177 = vpop.f32.mrb[0].mxu0
        %v2178 = vadd.f32 %v2107, %v2177
        %2179 = vdwg.mxu0
        %2180 = vmatprep.subr.mxu0 %v1357
        %2181 = vmatpush1.msra.mxu0 %v1356
        %2182 = vmatprep.subr.mxu0 %v1362
        %2183 = vmatpush1.msra.mxu0 %v1361
        %2184 = vmatprep.subr.mxu0 %v1367
        %2185 = vmatpush1.msra.mxu0 %v1366
        %2186 = vmatprep.subr.mxu0 %v1372
        %2187 = vmatpush1.msra.mxu0 %v1371
        %2188 = vmatprep.subr.mxu0 %v1377
        %2189 = vmatpush1.msra.mxu0 %v1376
        %2190 = vmatprep.subr.mxu0 %v1382
        %2191 = vmatpush1.msra.mxu0 %v1381
        %2192 = vmatprep.subr.mxu0 %v1387
        %2193 = vmatpush1.msra.mxu0 %v1386
        %2194 = vmatprep.subr.mxu0 %v1392
        %2195 = vmatpush1.msra.mxu0 %v1391
        %2196 = vmatprep.subr.mxu0 %v1397
        %2197 = vmatpush1.msra.mxu0 %v1396
        %2198 = vmatprep.subr.mxu0 %v1402
        %2199 = vmatpush1.msra.mxu0 %v1401
        %2200 = vmatprep.subr.mxu0 %v1407
        %2201 = vmatpush1.msra.mxu0 %v1406
        %2202 = vmatprep.subr.mxu0 %v1412
        %2203 = vmatpush1.msra.mxu0 %v1411
        %2204 = vmatprep.subr.mxu0 %v1417
        %2205 = vmatpush1.msra.mxu0 %v1416
        %2206 = vmatprep.subr.mxu0 %v1422
        %2207 = vmatpush1.msra.mxu0 %v1421
        %2208 = vmatprep.subr.mxu0 %v1427
        %2209 = vmatpush1.msra.mxu0 %v1426
        %2210 = vmatprep.subr.mxu0 %v1432
        %2211 = vmatpush1.msra.mxu0 %v1431
        %2212 = vmatprep.subr.mxu0 %v1437
        %2213 = vmatpush1.msra.mxu0 %v1436
        %2214 = vmatprep.subr.mxu0 %v1442
        %2215 = vmatpush1.msra.mxu0 %v1441
        %2216 = vmatprep.subr.mxu0 %v1447
        %2217 = vmatpush1.msra.mxu0 %v1446
        %2218 = vmatprep.subr.mxu0 %v1452
        %2219 = vmatpush1.msra.mxu0 %v1451
        %2220 = vmatprep.subr.mxu0 %v1457
        %2221 = vmatpush1.msra.mxu0 %v1456
        %2222 = vmatprep.subr.mxu0 %v1462
        %2223 = vmatpush1.msra.mxu0 %v1461
        %2224 = vmatprep.subr.mxu0 %v1467
        %2225 = vmatpush1.msra.mxu0 %v1466
        %2226 = vmatprep.subr.mxu0 %v1472
        %2227 = vmatpush1.msra.mxu0 %v1471
        %2228 = vmatprep.subr.mxu0 %v1477
        %2229 = vmatpush1.msra.mxu0 %v1476
        %2230 = vmatprep.subr.mxu0 %v1482
        %2231 = vmatpush1.msra.mxu0 %v1481
        %2232 = vmatprep.subr.mxu0 %v1487
        %2233 = vmatpush1.msra.mxu0 %v1486
        %2234 = vmatprep.subr.mxu0 %v1492
        %2235 = vmatpush1.msra.mxu0 %v1491
        %2236 = vmatprep.subr.mxu0 %v1497
        %2237 = vmatpush1.msra.mxu0 %v1496
        %2238 = vmatprep.subr.mxu0 %v1502
        %2239 = vmatpush1.msra.mxu0 %v1501
        %2240 = vmatprep.subr.mxu0 %v1507
        %2241 = vmatpush1.msra.mxu0 %v1506
        %2242 = vmatprep.subr.mxu0 %v1512
        %2243 = vmatpush1.msra.mxu0 %v1511
        %2244 = vmatprep.mubr.f32.mxu0 %v713
        %2245 = vmatmul.mubr.f32.gmra.mrb[0].mxu0 %v710
        %v2246 = vpop.f32.mrb[0].mxu0
        %v2247 = vadd.f32 %v2176, %v2246
        %v2248 = vpop.f32.mrb[0].mxu0
        %v2249 = vadd.f32 %v2178, %v2248
        %2250 = vdwg.mxu0
        %2251 = vmatprep.subr.mxu0 0.0
        %2252 = vmatpush1.msra.mxu0 %v718
        %2253 = vmatprep.subr.mxu0 0.0
        %2254 = vmatpush1.msra.mxu0 %v723
        %2255 = vmatprep.subr.mxu0 0.0
        %2256 = vmatpush1.msra.mxu0 %v728
        %2257 = vmatprep.subr.mxu0 0.0
        %2258 = vmatpush1.msra.mxu0 %v733
        %2259 = vmatprep.subr.mxu0 0.0
        %2260 = vmatpush1.msra.mxu0 %v738
        %2261 = vmatprep.subr.mxu0 0.0
        %2262 = vmatpush1.msra.mxu0 %v743
        %2263 = vmatprep.subr.mxu0 0.0
        %2264 = vmatpush1.msra.mxu0 %v748
        %2265 = vmatprep.subr.mxu0 0.0
        %2266 = vmatpush1.msra.mxu0 %v753
        %2267 = vmatprep.subr.mxu0 0.0
        %2268 = vmatpush1.msra.mxu0 %v758
        %2269 = vmatprep.subr.mxu0 0.0
        %2270 = vmatpush1.msra.mxu0 %v763
        %2271 = vmatprep.subr.mxu0 0.0
        %2272 = vmatpush1.msra.mxu0 %v768
        %2273 = vmatprep.subr.mxu0 0.0
        %2274 = vmatpush1.msra.mxu0 %v773
        %2275 = vmatprep.subr.mxu0 0.0
        %2276 = vmatpush1.msra.mxu0 %v778
        %2277 = vmatprep.subr.mxu0 0.0
        %2278 = vmatpush1.msra.mxu0 %v783
        %2279 = vmatprep.subr.mxu0 0.0
        %2280 = vmatpush1.msra.mxu0 %v788
        %2281 = vmatprep.subr.mxu0 0.0
        %2282 = vmatpush1.msra.mxu0 %v793
        %2283 = vmatprep.subr.mxu0 0.0
        %2284 = vmatpush1.msra.mxu0 %v798
        %2285 = vmatprep.subr.mxu0 0.0
        %2286 = vmatpush1.msra.mxu0 %v803
        %2287 = vmatprep.subr.mxu0 0.0
        %2288 = vmatpush1.msra.mxu0 %v808
        %2289 = vmatprep.subr.mxu0 0.0
        %2290 = vmatpush1.msra.mxu0 %v813
        %2291 = vmatprep.subr.mxu0 0.0
        %2292 = vmatpush1.msra.mxu0 %v818
        %2293 = vmatprep.subr.mxu0 0.0
        %2294 = vmatpush1.msra.mxu0 %v823
        %2295 = vmatprep.subr.mxu0 0.0
        %2296 = vmatpush1.msra.mxu0 %v828
        %2297 = vmatprep.subr.mxu0 0.0
        %2298 = vmatpush1.msra.mxu0 %v833
        %2299 = vmatprep.subr.mxu0 0.0
        %2300 = vmatpush1.msra.mxu0 %v838
        %2301 = vmatprep.subr.mxu0 0.0
        %2302 = vmatpush1.msra.mxu0 %v843
        %2303 = vmatprep.subr.mxu0 0.0
        %2304 = vmatpush1.msra.mxu0 %v848
        %2305 = vmatprep.subr.mxu0 0.0
        %2306 = vmatpush1.msra.mxu0 %v853
        %2307 = vmatprep.subr.mxu0 0.0
        %2308 = vmatpush1.msra.mxu0 %v858
        %2309 = vmatprep.subr.mxu0 0.0
        %2310 = vmatpush1.msra.mxu0 %v863
        %2311 = vmatprep.subr.mxu0 0.0
        %2312 = vmatpush1.msra.mxu0 %v868
        %2313 = vmatprep.subr.mxu0 0.0
        %2314 = vmatpush1.msra.mxu0 %v873
        %2315 = vmatprep.mubr.f32.mxu0 %v687
        %2316 = vmatmul.mubr.f32.gmra.mrb[0].mxu0 %v686
        %v2317 = vpop.f32.mrb[0].mxu0
        %v2318 = vadd.f32 %v1535, %v2317
        %v2319 = vpop.f32.mrb[0].mxu0
        %2320 = vdwg.mxu0
        %2321 = vmatprep.subr.mxu0 0.0
        %2322 = vmatpush1.msra.mxu0 %v878
        %2323 = vmatprep.subr.mxu0 0.0
        %2324 = vmatpush1.msra.mxu0 %v883
        %2325 = vmatprep.subr.mxu0 0.0
        %2326 = vmatpush1.msra.mxu0 %v888
        %2327 = vmatprep.subr.mxu0 0.0
        %2328 = vmatpush1.msra.mxu0 %v893
        %2329 = vmatprep.subr.mxu0 0.0
        %2330 = vmatpush1.msra.mxu0 %v898
        %2331 = vmatprep.subr.mxu0 0.0
        %2332 = vmatpush1.msra.mxu0 %v903
        %2333 = vmatprep.subr.mxu0 0.0
        %2334 = vmatpush1.msra.mxu0 %v908
        %2335 = vmatprep.subr.mxu0 0.0
        %2336 = vmatpush1.msra.mxu0 %v913
        %2337 = vmatprep.subr.mxu0 0.0
        %2338 = vmatpush1.msra.mxu0 %v918
        %2339 = vmatprep.subr.mxu0 0.0
        %2340 = vmatpush1.msra.mxu0 %v923
        %2341 = vmatprep.subr.mxu0 0.0
        %2342 = vmatpush1.msra.mxu0 %v928
        %2343 = vmatprep.subr.mxu0 0.0
        %2344 = vmatpush1.msra.mxu0 %v933
        %2345 = vmatprep.subr.mxu0 0.0
        %2346 = vmatpush1.msra.mxu0 %v938
        %2347 = vmatprep.subr.mxu0 0.0
        %2348 = vmatpush1.msra.mxu0 %v943
        %2349 = vmatprep.subr.mxu0 0.0
        %2350 = vmatpush1.msra.mxu0 %v948
        %2351 = vmatprep.subr.mxu0 0.0
        %2352 = vmatpush1.msra.mxu0 %v953
        %2353 = vmatprep.subr.mxu0 0.0
        %2354 = vmatpush1.msra.mxu0 %v958
        %2355 = vmatprep.subr.mxu0 0.0
        %2356 = vmatpush1.msra.mxu0 %v963
        %2357 = vmatprep.subr.mxu0 0.0
        %2358 = vmatpush1.msra.mxu0 %v968
        %2359 = vmatprep.subr.mxu0 0.0
        %2360 = vmatpush1.msra.mxu0 %v973
        %2361 = vmatprep.subr.mxu0 0.0
        %2362 = vmatpush1.msra.mxu0 %v978
        %2363 = vmatprep.subr.mxu0 0.0
        %2364 = vmatpush1.msra.mxu0 %v983
        %2365 = vmatprep.subr.mxu0 0.0
        %2366 = vmatpush1.msra.mxu0 %v988
        %2367 = vmatprep.subr.mxu0 0.0
        %2368 = vmatpush1.msra.mxu0 %v993
        %2369 = vmatprep.subr.mxu0 0.0
        %2370 = vmatpush1.msra.mxu0 %v998
        %2371 = vmatprep.subr.mxu0 0.0
        %2372 = vmatpush1.msra.mxu0 %v1003
        %2373 = vmatprep.subr.mxu0 0.0
        %2374 = vmatpush1.msra.mxu0 %v1008
        %2375 = vmatprep.subr.mxu0 0.0
        %2376 = vmatpush1.msra.mxu0 %v1013
        %2377 = vmatprep.subr.mxu0 0.0
        %2378 = vmatpush1.msra.mxu0 %v1018
        %2379 = vmatprep.subr.mxu0 0.0
        %2380 = vmatpush1.msra.mxu0 %v1023
        %2381 = vmatprep.subr.mxu0 0.0
        %2382 = vmatpush1.msra.mxu0 %v1028
        %2383 = vmatprep.subr.mxu0 0.0
        %2384 = vmatpush1.msra.mxu0 %v1033
        %2385 = vmatprep.mubr.f32.mxu0 %v689
        %2386 = vmatmul.mubr.f32.gmra.mrb[0].mxu0 %v688
        %v2387 = vpop.f32.mrb[0].mxu0
        %v2388 = vadd.f32 %v2318, %v2387
        %v2389 = vpop.f32.mrb[0].mxu0
        %2390 = vdwg.mxu0
        %2391 = vmatprep.subr.mxu0 0.0
        %2392 = vmatpush1.msra.mxu0 %v1038
        %2393 = vmatprep.subr.mxu0 0.0
        %2394 = vmatpush1.msra.mxu0 %v1043
        %2395 = vmatprep.subr.mxu0 0.0
        %2396 = vmatpush1.msra.mxu0 %v1048
        %2397 = vmatprep.subr.mxu0 0.0
        %2398 = vmatpush1.msra.mxu0 %v1053
        %2399 = vmatprep.subr.mxu0 0.0
        %2400 = vmatpush1.msra.mxu0 %v1058
        %2401 = vmatprep.subr.mxu0 0.0
        %2402 = vmatpush1.msra.mxu0 %v1063
        %2403 = vmatprep.subr.mxu0 0.0
        %2404 = vmatpush1.msra.mxu0 %v1068
        %2405 = vmatprep.subr.mxu0 0.0
        %2406 = vmatpush1.msra.mxu0 %v1073
        %2407 = vmatprep.subr.mxu0 0.0
        %2408 = vmatpush1.msra.mxu0 %v1078
        %2409 = vmatprep.subr.mxu0 0.0
        %2410 = vmatpush1.msra.mxu0 %v1083
        %2411 = vmatprep.subr.mxu0 0.0
        %2412 = vmatpush1.msra.mxu0 %v1088
        %2413 = vmatprep.subr.mxu0 0.0
        %2414 = vmatpush1.msra.mxu0 %v1093
        %2415 = vmatprep.subr.mxu0 0.0
        %2416 = vmatpush1.msra.mxu0 %v1098
        %2417 = vmatprep.subr.mxu0 0.0
        %2418 = vmatpush1.msra.mxu0 %v1103
        %2419 = vmatprep.subr.mxu0 0.0
        %2420 = vmatpush1.msra.mxu0 %v1108
        %2421 = vmatprep.subr.mxu0 0.0
        %2422 = vmatpush1.msra.mxu0 %v1113
        %2423 = vmatprep.subr.mxu0 0.0
        %2424 = vmatpush1.msra.mxu0 %v1118
        %2425 = vmatprep.subr.mxu0 0.0
        %2426 = vmatpush1.msra.mxu0 %v1123
        %2427 = vmatprep.subr.mxu0 0.0
        %2428 = vmatpush1.msra.mxu0 %v1128
        %2429 = vmatprep.subr.mxu0 0.0
        %2430 = vmatpush1.msra.mxu0 %v1133
        %2431 = vmatprep.subr.mxu0 0.0
        %2432 = vmatpush1.msra.mxu0 %v1138
        %2433 = vmatprep.subr.mxu0 0.0
        %2434 = vmatpush1.msra.mxu0 %v1143
        %2435 = vmatprep.subr.mxu0 0.0
        %2436 = vmatpush1.msra.mxu0 %v1148
        %2437 = vmatprep.subr.mxu0 0.0
        %2438 = vmatpush1.msra.mxu0 %v1153
        %2439 = vmatprep.subr.mxu0 0.0
        %2440 = vmatpush1.msra.mxu0 %v1158
        %2441 = vmatprep.subr.mxu0 0.0
        %2442 = vmatpush1.msra.mxu0 %v1163
        %2443 = vmatprep.subr.mxu0 0.0
        %2444 = vmatpush1.msra.mxu0 %v1168
        %2445 = vmatprep.subr.mxu0 0.0
        %2446 = vmatpush1.msra.mxu0 %v1173
        %2447 = vmatprep.subr.mxu0 0.0
        %2448 = vmatpush1.msra.mxu0 %v1178
        %2449 = vmatprep.subr.mxu0 0.0
        %2450 = vmatpush1.msra.mxu0 %v1183
        %2451 = vmatprep.subr.mxu0 0.0
        %2452 = vmatpush1.msra.mxu0 %v1188
        %2453 = vmatprep.subr.mxu0 0.0
        %2454 = vmatpush1.msra.mxu0 %v1193
        %2455 = vmatprep.mubr.f32.mxu0 %v698
        %2456 = vmatmul.mubr.f32.gmra.mrb[0].mxu0 %v694
        %v2457 = vpop.f32.mrb[0].mxu0
        %v2458 = vadd.f32 %v2388, %v2457
        %v2459 = vpop.f32.mrb[0].mxu0
        %2460 = vdwg.mxu0
        %2461 = vmatprep.subr.mxu0 0.0
        %2462 = vmatpush1.msra.mxu0 %v1198
        %2463 = vmatprep.subr.mxu0 0.0
        %2464 = vmatpush1.msra.mxu0 %v1203
        %2465 = vmatprep.subr.mxu0 0.0
        %2466 = vmatpush1.msra.mxu0 %v1208
        %2467 = vmatprep.subr.mxu0 0.0
        %2468 = vmatpush1.msra.mxu0 %v1213
        %2469 = vmatprep.subr.mxu0 0.0
        %2470 = vmatpush1.msra.mxu0 %v1218
        %2471 = vmatprep.subr.mxu0 0.0
        %2472 = vmatpush1.msra.mxu0 %v1223
        %2473 = vmatprep.subr.mxu0 0.0
        %2474 = vmatpush1.msra.mxu0 %v1228
        %2475 = vmatprep.subr.mxu0 0.0
        %2476 = vmatpush1.msra.mxu0 %v1233
        %2477 = vmatprep.subr.mxu0 0.0
        %2478 = vmatpush1.msra.mxu0 %v1238
        %2479 = vmatprep.subr.mxu0 0.0
        %2480 = vmatpush1.msra.mxu0 %v1243
        %2481 = vmatprep.subr.mxu0 0.0
        %2482 = vmatpush1.msra.mxu0 %v1248
        %2483 = vmatprep.subr.mxu0 0.0
        %2484 = vmatpush1.msra.mxu0 %v1253
        %2485 = vmatprep.subr.mxu0 0.0
        %2486 = vmatpush1.msra.mxu0 %v1258
        %2487 = vmatprep.subr.mxu0 0.0
        %2488 = vmatpush1.msra.mxu0 %v1263
        %2489 = vmatprep.subr.mxu0 0.0
        %2490 = vmatpush1.msra.mxu0 %v1268
        %2491 = vmatprep.subr.mxu0 0.0
        %2492 = vmatpush1.msra.mxu0 %v1273
        %2493 = vmatprep.subr.mxu0 0.0
        %2494 = vmatpush1.msra.mxu0 %v1278
        %2495 = vmatprep.subr.mxu0 0.0
        %2496 = vmatpush1.msra.mxu0 %v1283
        %2497 = vmatprep.subr.mxu0 0.0
        %2498 = vmatpush1.msra.mxu0 %v1288
        %2499 = vmatprep.subr.mxu0 0.0
        %2500 = vmatpush1.msra.mxu0 %v1293
        %2501 = vmatprep.subr.mxu0 0.0
        %2502 = vmatpush1.msra.mxu0 %v1298
        %2503 = vmatprep.subr.mxu0 0.0
        %2504 = vmatpush1.msra.mxu0 %v1303
        %2505 = vmatprep.subr.mxu0 0.0
        %2506 = vmatpush1.msra.mxu0 %v1308
        %2507 = vmatprep.subr.mxu0 0.0
        %2508 = vmatpush1.msra.mxu0 %v1313
        %2509 = vmatprep.subr.mxu0 0.0
        %2510 = vmatpush1.msra.mxu0 %v1318
        %2511 = vmatprep.subr.mxu0 0.0
        %2512 = vmatpush1.msra.mxu0 %v1323
        %2513 = vmatprep.subr.mxu0 0.0
        %2514 = vmatpush1.msra.mxu0 %v1328
        %2515 = vmatprep.subr.mxu0 0.0
        %2516 = vmatpush1.msra.mxu0 %v1333
        %2517 = vmatprep.subr.mxu0 0.0
        %2518 = vmatpush1.msra.mxu0 %v1338
        %2519 = vmatprep.subr.mxu0 0.0
        %2520 = vmatpush1.msra.mxu0 %v1343
        %2521 = vmatprep.subr.mxu0 0.0
        %2522 = vmatpush1.msra.mxu0 %v1348
        %2523 = vmatprep.subr.mxu0 0.0
        %2524 = vmatpush1.msra.mxu0 %v1353
        %2525 = vmatprep.mubr.f32.mxu0 %v706
        %2526 = vmatmul.mubr.f32.gmra.mrb[0].mxu0 %v702
        %v2527 = vpop.f32.mrb[0].mxu0
        %v2528 = vadd.f32 %v2458, %v2527
        %v2529 = vpop.f32.mrb[0].mxu0
        %2530 = vdwg.mxu0
        %2531 = vmatprep.subr.mxu0 0.0
        %2532 = vmatpush1.msra.mxu0 %v1358
        %2533 = vmatprep.subr.mxu0 0.0
        %2534 = vmatpush1.msra.mxu0 %v1363
        %2535 = vmatprep.subr.mxu0 0.0
        %2536 = vmatpush1.msra.mxu0 %v1368
        %2537 = vmatprep.subr.mxu0 0.0
        %2538 = vmatpush1.msra.mxu0 %v1373
        %2539 = vmatprep.subr.mxu0 0.0
        %2540 = vmatpush1.msra.mxu0 %v1378
        %2541 = vmatprep.subr.mxu0 0.0
        %2542 = vmatpush1.msra.mxu0 %v1383
        %2543 = vmatprep.subr.mxu0 0.0
        %2544 = vmatpush1.msra.mxu0 %v1388
        %2545 = vmatprep.subr.mxu0 0.0
        %2546 = vmatpush1.msra.mxu0 %v1393
        %2547 = vmatprep.subr.mxu0 0.0
        %2548 = vmatpush1.msra.mxu0 %v1398
        %2549 = vmatprep.subr.mxu0 0.0
        %2550 = vmatpush1.msra.mxu0 %v1403
        %2551 = vmatprep.subr.mxu0 0.0
        %2552 = vmatpush1.msra.mxu0 %v1408
        %2553 = vmatprep.subr.mxu0 0.0
        %2554 = vmatpush1.msra.mxu0 %v1413
        %2555 = vmatprep.subr.mxu0 0.0
        %2556 = vmatpush1.msra.mxu0 %v1418
        %2557 = vmatprep.subr.mxu0 0.0
        %2558 = vmatpush1.msra.mxu0 %v1423
        %2559 = vmatprep.subr.mxu0 0.0
        %2560 = vmatpush1.msra.mxu0 %v1428
        %2561 = vmatprep.subr.mxu0 0.0
        %2562 = vmatpush1.msra.mxu0 %v1433
        %2563 = vmatprep.subr.mxu0 0.0
        %2564 = vmatpush1.msra.mxu0 %v1438
        %2565 = vmatprep.subr.mxu0 0.0
        %2566 = vmatpush1.msra.mxu0 %v1443
        %2567 = vmatprep.subr.mxu0 0.0
        %2568 = vmatpush1.msra.mxu0 %v1448
        %2569 = vmatprep.subr.mxu0 0.0
        %2570 = vmatpush1.msra.mxu0 %v1453
        %2571 = vmatprep.subr.mxu0 0.0
        %2572 = vmatpush1.msra.mxu0 %v1458
        %2573 = vmatprep.subr.mxu0 0.0
        %2574 = vmatpush1.msra.mxu0 %v1463
        %2575 = vmatprep.subr.mxu0 0.0
        %2576 = vmatpush1.msra.mxu0 %v1468
        %2577 = vmatprep.subr.mxu0 0.0
        %2578 = vmatpush1.msra.mxu0 %v1473
        %2579 = vmatprep.subr.mxu0 0.0
        %2580 = vmatpush1.msra.mxu0 %v1478
        %2581 = vmatprep.subr.mxu0 0.0
        %2582 = vmatpush1.msra.mxu0 %v1483
        %2583 = vmatprep.subr.mxu0 0.0
        %2584 = vmatpush1.msra.mxu0 %v1488
        %2585 = vmatprep.subr.mxu0 0.0
        %2586 = vmatpush1.msra.mxu0 %v1493
        %2587 = vmatprep.subr.mxu0 0.0
        %2588 = vmatpush1.msra.mxu0 %v1498
        %2589 = vmatprep.subr.mxu0 0.0
        %2590 = vmatpush1.msra.mxu0 %v1503
        %2591 = vmatprep.subr.mxu0 0.0
        %2592 = vmatpush1.msra.mxu0 %v1508
        %2593 = vmatprep.subr.mxu0 0.0
        %2594 = vmatpush1.msra.mxu0 %v1513
        %2595 = vmatprep.mubr.f32.mxu0 %v713
        %2596 = vmatmul.mubr.f32.gmra.mrb[0].mxu0 %v710
        %v2597 = vpop.f32.mrb[0].mxu0
        %v2598 = vadd.f32 %v2528, %v2597
        %v2599 = vpop.f32.mrb[0].mxu0
        %2600 = vdwg.mxu0
        %v2601 = vmax.f32 %v1892, 0.0
        %v2602 = vmax.f32 %v1894, 0.0
        %v2603 = vmax.f32 %v2247, 0.0
        %v2604 = vmax.f32 %v2249, 0.0
        %v2605 = vmax.f32 %v2598, 0.0
        %2608 = vrot.lane.b32.xlu0 %v2602, 96
        %v2609 = vpop.permute.xlu0 %2608
        %2610 = vrot.lane.b32.xlu0 %v2603, 96
        %v2611 = vpop.permute.xlu0 %2610
        %vm2612 = vcmask 785408
        %v2613 = vsel %vm2612, %v2609, %v2611
        %v2616 = vadd.f32 %v2601, %v2613
        %v2617 = vadd.f32 %v2602, %v2611
        %2619 = vrot.lane.b32.xlu0 %v2603, 64
        %v2620 = vpop.permute.xlu0 %2619
        %2621 = vrot.lane.b32.xlu0 %v2604, 64
        %v2622 = vpop.permute.xlu0 %2621
        %vm2623 = vcmask 523264
        %v2624 = vsel %vm2623, %v2620, %v2622
        %v2627 = vadd.f32 %v2616, %v2624
        %v2628 = vadd.f32 %v2617, %v2622
        %2630 = vrot.lane.b32.xlu0 %v2604, 32
        %v2631 = vpop.permute.xlu0 %2630
        %2632 = vrot.lane.b32.xlu0 %v2605, 32
        %v2633 = vpop.permute.xlu0 %2632
        %v2634 = vsel %vm472, %v2631, %v2633
        %v2637 = vadd.f32 %v2627, %v2634
        %v2638 = vadd.f32 %v2628, %v2633
        %v2639 = vmul.f32 %v2637, 0.25
        %v2640 = vmul.f32 %v2638, 0.25
        %v2643 = vrot.slane %v2639, 1
        %v2644 = vrot.slane %v2640, 1
        %2645 = vrot.lane.b32.xlu0 %v2643, 32
        %v2646 = vpop.permute.xlu0 %2645
        %2647 = vrot.lane.b32.xlu0 %v2644, 32
        %v2648 = vpop.permute.xlu0 %2647
        %v2649 = vsel %vm472, %v2646, %v2648
        %v2652 = vrot.slane %v2639, 2
        %v2653 = vrot.slane %v2640, 2
        %2654 = vrot.lane.b32.xlu0 %v2652, 64
        %v2655 = vpop.permute.xlu0 %2654
        %2656 = vrot.lane.b32.xlu0 %v2653, 64
        %v2657 = vpop.permute.xlu0 %2656
        %v2658 = vsel %vm2623, %v2655, %v2657
        %v2661 = vrot.slane %v2639, 3
        %v2662 = vrot.slane %v2640, 3
        %2663 = vrot.lane.b32.xlu0 %v2661, 96
        %v2664 = vpop.permute.xlu0 %2663
        %2665 = vrot.lane.b32.xlu0 %v2662, 96
        %v2666 = vpop.permute.xlu0 %2665
        %v2667 = vsel %vm2612, %v2664, %v2666
        %v2670 = vrot.slane %v2639, 4
        %v2671 = vrot.slane %v2640, 4
        %v2673 = vsel %vm472, %v2640, %v2646
        %v2674 = vsel %vm2623, %v2649, %v2655
        %v2675 = vsel %vm2612, %v2658, %v2664
        %v2676 = vld [vmem:[%s5] sm:$0xff]
        %v2677 = vld [vmem:[%s5 + $0x8] sm:$0xff]
        %v2678 = vld [vmem:[%s5 + $0x10] sm:$0xff]
        %v2679 = vld [vmem:[%s5 + $0x18] sm:$0xff]
        %v2680 = vld [vmem:[%s5 + $0x20] sm:$0xff]
        %v2681 = vld [vmem:[%s5 + $0x28] sm:$0xff]
        %v2682 = vld [vmem:[%s5 + $0x30] sm:$0xff]
        %v2683 = vld [vmem:[%s5 + $0x38] sm:$0xff]
        %v2684 = vld [vmem:[%s5 + $0x40] sm:$0xff]
        %v2685 = vld [vmem:[%s5 + $0x48] sm:$0xff]
        %v2686 = vld [vmem:[%s5 + $0x50] sm:$0xff]
        %v2687 = vld [vmem:[%s5 + $0x58] sm:$0xff]
        %v2688 = vld [vmem:[%s5 + $0x60] sm:$0xff]
        %v2689 = vld [vmem:[%s5 + $0x68] sm:$0xff]
        %v2690 = vld [vmem:[%s5 + $0x70] sm:$0xff]
        %v2691 = vld [vmem:[%s5 + $0x78] sm:$0xff]
        %v2692 = vld [vmem:[%s5 + $0x80] sm:$0xff]
        %v2693 = vld [vmem:[%s5 + $0x88] sm:$0xff]
        %v2694 = vld [vmem:[%s5 + $0x90] sm:$0xff]
        %v2695 = vld [vmem:[%s5 + $0x98] sm:$0xff]
        %v2696 = vld [vmem:[%s5 + $0xa0] sm:$0xff]
        %v2697 = vld [vmem:[%s5 + $0xa8] sm:$0xff]
        %v2698 = vld [vmem:[%s5 + $0xb0] sm:$0xff]
        %v2699 = vld [vmem:[%s5 + $0xb8] sm:$0xff]
        %v2700 = vld [vmem:[%s5 + $0xc0] sm:$0xff]
        %v2701 = vld [vmem:[%s5 + $0xc8] sm:$0xff]
        %v2702 = vld [vmem:[%s5 + $0xd0] sm:$0xff]
        %v2703 = vld [vmem:[%s5 + $0xd8] sm:$0xff]
        %v2704 = vld [vmem:[%s5 + $0xe0] sm:$0xff]
        %v2705 = vld [vmem:[%s5 + $0xe8] sm:$0xff]
        %v2706 = vld [vmem:[%s5 + $0xf0] sm:$0xff]
        %v2707 = vld [vmem:[%s5 + $0xf8] sm:$0xff]
        %v2708 = vld [vmem:[%s5 + $0x100] sm:$0xff]
        %v2709 = vld [vmem:[%s5 + $0x108] sm:$0xff]
        %v2710 = vld [vmem:[%s5 + $0x110] sm:$0xff]
        %v2711 = vld [vmem:[%s5 + $0x118] sm:$0xff]
        %v2712 = vld [vmem:[%s5 + $0x120] sm:$0xff]
        %v2713 = vld [vmem:[%s5 + $0x128] sm:$0xff]
        %v2714 = vld [vmem:[%s5 + $0x130] sm:$0xff]
        %v2715 = vld [vmem:[%s5 + $0x138] sm:$0xff]
        %v2716 = vld [vmem:[%s5 + $0x140] sm:$0xff]
        %v2717 = vld [vmem:[%s5 + $0x148] sm:$0xff]
        %v2718 = vld [vmem:[%s5 + $0x150] sm:$0xff]
        %v2719 = vld [vmem:[%s5 + $0x158] sm:$0xff]
        %v2720 = vld [vmem:[%s5 + $0x160] sm:$0xff]
        %v2721 = vld [vmem:[%s5 + $0x168] sm:$0xff]
        %v2722 = vld [vmem:[%s5 + $0x170] sm:$0xff]
        %v2723 = vld [vmem:[%s5 + $0x178] sm:$0xff]
        %v2724 = vld [vmem:[%s5 + $0x180] sm:$0xff]
        %v2725 = vld [vmem:[%s5 + $0x188] sm:$0xff]
        %v2726 = vld [vmem:[%s5 + $0x190] sm:$0xff]
        %v2727 = vld [vmem:[%s5 + $0x198] sm:$0xff]
        %v2728 = vld [vmem:[%s5 + $0x1a0] sm:$0xff]
        %v2729 = vld [vmem:[%s5 + $0x1a8] sm:$0xff]
        %v2730 = vld [vmem:[%s5 + $0x1b0] sm:$0xff]
        %v2731 = vld [vmem:[%s5 + $0x1b8] sm:$0xff]
        %v2732 = vld [vmem:[%s5 + $0x1c0] sm:$0xff]
        %v2733 = vld [vmem:[%s5 + $0x1c8] sm:$0xff]
        %v2734 = vld [vmem:[%s5 + $0x1d0] sm:$0xff]
        %v2735 = vld [vmem:[%s5 + $0x1d8] sm:$0xff]
        %v2736 = vld [vmem:[%s5 + $0x1e0] sm:$0xff]
        %v2737 = vld [vmem:[%s5 + $0x1e8] sm:$0xff]
        %v2738 = vld [vmem:[%s5 + $0x1f0] sm:$0xff]
        %v2739 = vld [vmem:[%s5 + $0x1f8] sm:$0xff]
        %v2740 = vld [vmem:[%s5 + $0x200] sm:$0xff]
        %v2741 = vld [vmem:[%s5 + $0x208] sm:$0xff]
        %v2742 = vld [vmem:[%s5 + $0x210] sm:$0xff]
        %v2743 = vld [vmem:[%s5 + $0x218] sm:$0xff]
        %v2744 = vld [vmem:[%s5 + $0x220] sm:$0xff]
        %v2745 = vld [vmem:[%s5 + $0x228] sm:$0xff]
        %v2746 = vld [vmem:[%s5 + $0x230] sm:$0xff]
        %v2747 = vld [vmem:[%s5 + $0x238] sm:$0xff]
        %v2748 = vld [vmem:[%s5 + $0x240] sm:$0xff]
        %v2749 = vld [vmem:[%s5 + $0x248] sm:$0xff]
        %v2750 = vld [vmem:[%s5 + $0x250] sm:$0xff]
        %v2751 = vld [vmem:[%s5 + $0x258] sm:$0xff]
        %v2752 = vld [vmem:[%s5 + $0x260] sm:$0xff]
        %v2753 = vld [vmem:[%s5 + $0x268] sm:$0xff]
        %v2754 = vld [vmem:[%s5 + $0x270] sm:$0xff]
        %v2755 = vld [vmem:[%s5 + $0x278] sm:$0xff]
        %v2756 = vld [vmem:[%s5 + $0x280] sm:$0xff]
        %v2757 = vld [vmem:[%s5 + $0x288] sm:$0xff]
        %v2758 = vld [vmem:[%s5 + $0x290] sm:$0xff]
        %v2759 = vld [vmem:[%s5 + $0x298] sm:$0xff]
        %v2760 = vld [vmem:[%s5 + $0x2a0] sm:$0xff]
        %v2761 = vld [vmem:[%s5 + $0x2a8] sm:$0xff]
        %v2762 = vld [vmem:[%s5 + $0x2b0] sm:$0xff]
        %v2763 = vld [vmem:[%s5 + $0x2b8] sm:$0xff]
        %v2764 = vld [vmem:[%s5 + $0x2c0] sm:$0xff]
        %v2765 = vld [vmem:[%s5 + $0x2c8] sm:$0xff]
        %v2766 = vld [vmem:[%s5 + $0x2d0] sm:$0xff]
        %v2767 = vld [vmem:[%s5 + $0x2d8] sm:$0xff]
        %v2768 = vld [vmem:[%s5 + $0x2e0] sm:$0xff]
        %v2769 = vld [vmem:[%s5 + $0x2e8] sm:$0xff]
        %v2770 = vld [vmem:[%s5 + $0x2f0] sm:$0xff]
        %v2771 = vld [vmem:[%s5 + $0x2f8] sm:$0xff]
        %v2772 = vld [vmem:[%s5 + $0x300] sm:$0xff]
        %v2773 = vld [vmem:[%s5 + $0x308] sm:$0xff]
        %v2774 = vld [vmem:[%s5 + $0x310] sm:$0xff]
        %v2775 = vld [vmem:[%s5 + $0x318] sm:$0xff]
        %v2776 = vld [vmem:[%s6] sm:$0x1]
        %v2777 = vsel %vm472, %v2671, 0
        %2779 = vmatprep.subr.mxu0 0.0
        %2780 = vmatpush1.msra.mxu0 %v2676
        %2781 = vmatprep.subr.mxu0 0.0
        %2782 = vmatpush1.msra.mxu0 %v2677
        %2783 = vmatprep.subr.mxu0 0.0
        %2784 = vmatpush1.msra.mxu0 %v2678
        %2785 = vmatprep.subr.mxu0 0.0
        %2786 = vmatpush1.msra.mxu0 %v2679
        %2787 = vmatprep.subr.mxu0 0.0
        %2788 = vmatpush1.msra.mxu0 %v2680
        %2789 = vmatprep.subr.mxu0 0.0
        %2790 = vmatpush1.msra.mxu0 %v2681
        %2791 = vmatprep.subr.mxu0 0.0
        %2792 = vmatpush1.msra.mxu0 %v2682
        %2793 = vmatprep.subr.mxu0 0.0
        %2794 = vmatpush1.msra.mxu0 %v2683
        %2795 = vmatprep.subr.mxu0 0.0
        %2796 = vmatpush1.msra.mxu0 %v2684
        %2797 = vmatprep.subr.mxu0 0.0
        %2798 = vmatpush1.msra.mxu0 %v2685
        %2799 = vmatprep.subr.mxu0 0.0
        %2800 = vmatpush1.msra.mxu0 %v2686
        %2801 = vmatprep.subr.mxu0 0.0
        %2802 = vmatpush1.msra.mxu0 %v2687
        %2803 = vmatprep.subr.mxu0 0.0
        %2804 = vmatpush1.msra.mxu0 %v2688
        %2805 = vmatprep.subr.mxu0 0.0
        %2806 = vmatpush1.msra.mxu0 %v2689
        %2807 = vmatprep.subr.mxu0 0.0
        %2808 = vmatpush1.msra.mxu0 %v2690
        %2809 = vmatprep.subr.mxu0 0.0
        %2810 = vmatpush1.msra.mxu0 %v2691
        %2811 = vmatprep.subr.mxu0 0.0
        %2812 = vmatpush1.msra.mxu0 %v2692
        %2813 = vmatprep.subr.mxu0 0.0
        %2814 = vmatpush1.msra.mxu0 %v2693
        %2815 = vmatprep.subr.mxu0 0.0
        %2816 = vmatpush1.msra.mxu0 %v2694
        %2817 = vmatprep.subr.mxu0 0.0
        %2818 = vmatpush1.msra.mxu0 %v2695
        %2819 = vmatprep.subr.mxu0 0.0
        %2820 = vmatpush1.msra.mxu0 %v2696
        %2821 = vmatprep.subr.mxu0 0.0
        %2822 = vmatpush1.msra.mxu0 %v2697
        %2823 = vmatprep.subr.mxu0 0.0
        %2824 = vmatpush1.msra.mxu0 %v2698
        %2825 = vmatprep.subr.mxu0 0.0
        %2826 = vmatpush1.msra.mxu0 %v2699
        %2827 = vmatprep.subr.mxu0 0.0
        %2828 = vmatpush1.msra.mxu0 %v2700
        %2829 = vmatprep.subr.mxu0 0.0
        %2830 = vmatpush1.msra.mxu0 %v2701
        %2831 = vmatprep.subr.mxu0 0.0
        %2832 = vmatpush1.msra.mxu0 %v2702
        %2833 = vmatprep.subr.mxu0 0.0
        %2834 = vmatpush1.msra.mxu0 %v2703
        %2835 = vmatprep.subr.mxu0 0.0
        %2836 = vmatpush1.msra.mxu0 %v2704
        %2837 = vmatprep.subr.mxu0 0.0
        %2838 = vmatpush1.msra.mxu0 %v2705
        %2839 = vmatprep.subr.mxu0 0.0
        %2840 = vmatpush1.msra.mxu0 %v2706
        %2841 = vmatprep.subr.mxu0 0.0
        %2842 = vmatpush1.msra.mxu0 %v2707
        %2843 = vmatprep.mubr.f32.mxu0 %v2673
        %2844 = vmatmul.mubr.f32.gmra.mrb[0].mxu0 %v2639
        %v2845 = vpop.f32.mrb[0].mxu0
        %v2846 = vadd.f32 %v2776, %v2845
        %v2847 = vpop.f32.mrb[0].mxu0
        %2848 = vdwg.mxu0
        %2849 = vmatprep.subr.mxu0 0.0
        %2850 = vmatpush1.msra.mxu0 %v2708
        %2851 = vmatprep.subr.mxu0 0.0
        %2852 = vmatpush1.msra.mxu0 %v2709
        %2853 = vmatprep.subr.mxu0 0.0
        %2854 = vmatpush1.msra.mxu0 %v2710
        %2855 = vmatprep.subr.mxu0 0.0
        %2856 = vmatpush1.msra.mxu0 %v2711
        %2857 = vmatprep.subr.mxu0 0.0
        %2858 = vmatpush1.msra.mxu0 %v2712
        %2859 = vmatprep.subr.mxu0 0.0
        %2860 = vmatpush1.msra.mxu0 %v2713
        %2861 = vmatprep.subr.mxu0 0.0
        %2862 = vmatpush1.msra.mxu0 %v2714
        %2863 = vmatprep.subr.mxu0 0.0
        %2864 = vmatpush1.msra.mxu0 %v2715
        %2865 = vmatprep.subr.mxu0 0.0
        %2866 = vmatpush1.msra.mxu0 %v2716
        %2867 = vmatprep.subr.mxu0 0.0
        %2868 = vmatpush1.msra.mxu0 %v2717
        %2869 = vmatprep.subr.mxu0 0.0
        %2870 = vmatpush1.msra.mxu0 %v2718
        %2871 = vmatprep.subr.mxu0 0.0
        %2872 = vmatpush1.msra.mxu0 %v2719
        %2873 = vmatprep.subr.mxu0 0.0
        %2874 = vmatpush1.msra.mxu0 %v2720
        %2875 = vmatprep.subr.mxu0 0.0
        %2876 = vmatpush1.msra.mxu0 %v2721
        %2877 = vmatprep.subr.mxu0 0.0
        %2878 = vmatpush1.msra.mxu0 %v2722
        %2879 = vmatprep.subr.mxu0 0.0
        %2880 = vmatpush1.msra.mxu0 %v2723
        %2881 = vmatprep.subr.mxu0 0.0
        %2882 = vmatpush1.msra.mxu0 %v2724
        %2883 = vmatprep.subr.mxu0 0.0
        %2884 = vmatpush1.msra.mxu0 %v2725
        %2885 = vmatprep.subr.mxu0 0.0
        %2886 = vmatpush1.msra.mxu0 %v2726
        %2887 = vmatprep.subr.mxu0 0.0
        %2888 = vmatpush1.msra.mxu0 %v2727
        %2889 = vmatprep.subr.mxu0 0.0
        %2890 = vmatpush1.msra.mxu0 %v2728
        %2891 = vmatprep.subr.mxu0 0.0
        %2892 = vmatpush1.msra.mxu0 %v2729
        %2893 = vmatprep.subr.mxu0 0.0
        %2894 = vmatpush1.msra.mxu0 %v2730
        %2895 = vmatprep.subr.mxu0 0.0
        %2896 = vmatpush1.msra.mxu0 %v2731
        %2897 = vmatprep.subr.mxu0 0.0
        %2898 = vmatpush1.msra.mxu0 %v2732
        %2899 = vmatprep.subr.mxu0 0.0
        %2900 = vmatpush1.msra.mxu0 %v2733
        %2901 = vmatprep.subr.mxu0 0.0
        %2902 = vmatpush1.msra.mxu0 %v2734
        %2903 = vmatprep.subr.mxu0 0.0
        %2904 = vmatpush1.msra.mxu0 %v2735
        %2905 = vmatprep.subr.mxu0 0.0
        %2906 = vmatpush1.msra.mxu0 %v2736
        %2907 = vmatprep.subr.mxu0 0.0
        %2908 = vmatpush1.msra.mxu0 %v2737
        %2909 = vmatprep.subr.mxu0 0.0
        %2910 = vmatpush1.msra.mxu0 %v2738
        %2911 = vmatprep.subr.mxu0 0.0
        %2912 = vmatpush1.msra.mxu0 %v2739
        %2913 = vmatprep.mubr.f32.mxu0 %v2675
        %2914 = vmatmul.mubr.f32.gmra.mrb[0].mxu0 %v2674
        %v2915 = vpop.f32.mrb[0].mxu0
        %v2916 = vadd.f32 %v2846, %v2915
        %v2917 = vpop.f32.mrb[0].mxu0
        %2918 = vdwg.mxu0
        %2919 = vmatprep.subr.mxu0 0.0
        %2920 = vmatpush1.msra.mxu0 %v2740
        %2921 = vmatprep.subr.mxu0 0.0
        %2922 = vmatpush1.msra.mxu0 %v2741
        %2923 = vmatprep.subr.mxu0 0.0
        %2924 = vmatpush1.msra.mxu0 %v2742
        %2925 = vmatprep.subr.mxu0 0.0
        %2926 = vmatpush1.msra.mxu0 %v2743
        %2927 = vmatprep.subr.mxu0 0.0
        %2928 = vmatpush1.msra.mxu0 %v2744
        %2929 = vmatprep.subr.mxu0 0.0
        %2930 = vmatpush1.msra.mxu0 %v2745
        %2931 = vmatprep.subr.mxu0 0.0
        %2932 = vmatpush1.msra.mxu0 %v2746
        %2933 = vmatprep.subr.mxu0 0.0
        %2934 = vmatpush1.msra.mxu0 %v2747
        %2935 = vmatprep.subr.mxu0 0.0
        %2936 = vmatpush1.msra.mxu0 %v2748
        %2937 = vmatprep.subr.mxu0 0.0
        %2938 = vmatpush1.msra.mxu0 %v2749
        %2939 = vmatprep.subr.mxu0 0.0
        %2940 = vmatpush1.msra.mxu0 %v2750
        %2941 = vmatprep.subr.mxu0 0.0
        %2942 = vmatpush1.msra.mxu0 %v2751
        %2943 = vmatprep.subr.mxu0 0.0
        %2944 = vmatpush1.msra.mxu0 %v2752
        %2945 = vmatprep.subr.mxu0 0.0
        %2946 = vmatpush1.msra.mxu0 %v2753
        %2947 = vmatprep.subr.mxu0 0.0
        %2948 = vmatpush1.msra.mxu0 %v2754
        %2949 = vmatprep.subr.mxu0 0.0
        %2950 = vmatpush1.msra.mxu0 %v2755
        %2951 = vmatprep.subr.mxu0 0.0
        %2952 = vmatpush1.msra.mxu0 %v2756
        %2953 = vmatprep.subr.mxu0 0.0
        %2954 = vmatpush1.msra.mxu0 %v2757
        %2955 = vmatprep.subr.mxu0 0.0
        %2956 = vmatpush1.msra.mxu0 %v2758
        %2957 = vmatprep.subr.mxu0 0.0
        %2958 = vmatpush1.msra.mxu0 %v2759
        %2959 = vmatprep.subr.mxu0 0.0
        %2960 = vmatpush1.msra.mxu0 %v2760
        %2961 = vmatprep.subr.mxu0 0.0
        %2962 = vmatpush1.msra.mxu0 %v2761
        %2963 = vmatprep.subr.mxu0 0.0
        %2964 = vmatpush1.msra.mxu0 %v2762
        %2965 = vmatprep.subr.mxu0 0.0
        %2966 = vmatpush1.msra.mxu0 %v2763
        %2967 = vmatprep.subr.mxu0 0.0
        %2968 = vmatpush1.msra.mxu0 %v2764
        %2969 = vmatprep.subr.mxu0 0.0
        %2970 = vmatpush1.msra.mxu0 %v2765
        %2971 = vmatprep.subr.mxu0 0.0
        %2972 = vmatpush1.msra.mxu0 %v2766
        %2973 = vmatprep.subr.mxu0 0.0
        %2974 = vmatpush1.msra.mxu0 %v2767
        %2975 = vmatprep.subr.mxu0 0.0
        %2976 = vmatpush1.msra.mxu0 %v2768
        %2977 = vmatprep.subr.mxu0 0.0
        %2978 = vmatpush1.msra.mxu0 %v2769
        %2979 = vmatprep.subr.mxu0 0.0
        %2980 = vmatpush1.msra.mxu0 %v2770
        %2981 = vmatprep.subr.mxu0 0.0
        %2982 = vmatpush1.msra.mxu0 %v2771
        %2983 = vmatprep.mubr.f32.mxu0 %v2670
        %2984 = vmatmul.mubr.f32.gmra.mrb[0].mxu0 %v2667
        %v2985 = vpop.f32.mrb[0].mxu0
        %v2986 = vadd.f32 %v2916, %v2985
        %v2987 = vpop.f32.mrb[0].mxu0
        %2988 = vdwg.mxu0
        %2989 = vmatprep.subr.mxu0 0.0
        %2990 = vmatpush1.msra.mxu0 %v2772
        %2991 = vmatprep.subr.mxu0 0.0
        %2992 = vmatpush1.msra.mxu0 %v2773
        %2993 = vmatprep.subr.mxu0 0.0
        %2994 = vmatpush1.msra.mxu0 %v2774
        %2995 = vmatprep.subr.mxu0 0.0
        %2996 = vmatpush1.msra.mxu0 %v2775
        %2997 = vmatprep.subr.mxu0 0.0
        %2998 = vmatpush1.msra.mxu0 0.0
        %2999 = vmatprep.subr.mxu0 0.0
        %3000 = vmatpush1.msra.mxu0 0.0
        %3001 = vmatprep.subr.mxu0 0.0
        %3002 = vmatpush1.msra.mxu0 0.0
        %3003 = vmatprep.subr.mxu0 0.0
        %3004 = vmatpush1.msra.mxu0 0.0
        %3005 = vmatprep.subr.mxu0 0.0
        %3006 = vmatpush1.msra.mxu0 0.0
        %3007 = vmatprep.subr.mxu0 0.0
        %3008 = vmatpush1.msra.mxu0 0.0
        %3009 = vmatprep.subr.mxu0 0.0
        %3010 = vmatpush1.msra.mxu0 0.0
        %3011 = vmatprep.subr.mxu0 0.0
        %3012 = vmatpush1.msra.mxu0 0.0
        %3013 = vmatprep.subr.mxu0 0.0
        %3014 = vmatpush1.msra.mxu0 0.0
        %3015 = vmatprep.subr.mxu0 0.0
        %3016 = vmatpush1.msra.mxu0 0.0
        %3017 = vmatprep.subr.mxu0 0.0
        %3018 = vmatpush1.msra.mxu0 0.0
        %3019 = vmatprep.subr.mxu0 0.0
        %3020 = vmatpush1.msra.mxu0 0.0
        %3021 = vmatprep.subr.mxu0 0.0
        %3022 = vmatpush1.msra.mxu0 0.0
        %3023 = vmatprep.subr.mxu0 0.0
        %3024 = vmatpush1.msra.mxu0 0.0
        %3025 = vmatprep.subr.mxu0 0.0
        %3026 = vmatpush1.msra.mxu0 0.0
        %3027 = vmatprep.subr.mxu0 0.0
        %3028 = vmatpush1.msra.mxu0 0.0
        %3029 = vmatprep.subr.mxu0 0.0
        %3030 = vmatpush1.msra.mxu0 0.0
        %3031 = vmatprep.subr.mxu0 0.0
        %3032 = vmatpush1.msra.mxu0 0.0
        %3033 = vmatprep.subr.mxu0 0.0
        %3034 = vmatpush1.msra.mxu0 0.0
        %3035 = vmatprep.subr.mxu0 0.0
        %3036 = vmatpush1.msra.mxu0 0.0
        %3037 = vmatprep.subr.mxu0 0.0
        %3038 = vmatpush1.msra.mxu0 0.0
        %3039 = vmatprep.subr.mxu0 0.0
        %3040 = vmatpush1.msra.mxu0 0.0
        %3041 = vmatprep.subr.mxu0 0.0
        %3042 = vmatpush1.msra.mxu0 0.0
        %3043 = vmatprep.subr.mxu0 0.0
        %3044 = vmatpush1.msra.mxu0 0.0
        %3045 = vmatprep.subr.mxu0 0.0
        %3046 = vmatpush1.msra.mxu0 0.0
        %3047 = vmatprep.subr.mxu0 0.0
        %3048 = vmatpush1.msra.mxu0 0.0
        %3049 = vmatprep.subr.mxu0 0.0
        %3050 = vmatpush1.msra.mxu0 0.0
        %3051 = vmatprep.subr.mxu0 0.0
        %3052 = vmatpush1.msra.mxu0 0.0
        %3053 = vmatprep.mubr.f32.mxu0 0.0
        %3054 = vmatmul.mubr.f32.gmra.mrb[0].mxu0 %v2777
        %v3055 = vpop.f32.mrb[0].mxu0
        %v3056 = vadd.f32 %v2986, %v3055
        %v3057 = vpop.f32.mrb[0].mxu0
        %3058 = vdwg.mxu0
        %v3059 = vmax.f32 %v3056, 0.0
        %v3060 = vld [vmem:[%s7] sm:$0xff]
        %v3061 = vld [vmem:[%s7 + $0x8] sm:$0xff]
        %v3062 = vld [vmem:[%s7 + $0x10] sm:$0xff]
        %v3063 = vld [vmem:[%s7 + $0x18] sm:$0xff]
        %v3064 = vld [vmem:[%s7 + $0x20] sm:$0xff]
        %v3065 = vld [vmem:[%s7 + $0x28] sm:$0xff]
        %v3066 = vld [vmem:[%s7 + $0x30] sm:$0xff]
        %v3067 = vld [vmem:[%s7 + $0x38] sm:$0xff]
        %v3068 = vld [vmem:[%s8] sm:$0x1]
        %v3070 = vsel %vm2623, %v3059, 0
        %3072 = vmatprep.subr.mxu0 0.0
        %3073 = vmatpush1.msra.mxu0 %v3060
        %3074 = vmatprep.subr.mxu0 0.0
        %3075 = vmatpush1.msra.mxu0 %v3061
        %3076 = vmatprep.subr.mxu0 0.0
        %3077 = vmatpush1.msra.mxu0 %v3062
        %3078 = vmatprep.subr.mxu0 0.0
        %3079 = vmatpush1.msra.mxu0 %v3063
        %3080 = vmatprep.subr.mxu0 0.0
        %3081 = vmatpush1.msra.mxu0 %v3064
        %3082 = vmatprep.subr.mxu0 0.0
        %3083 = vmatpush1.msra.mxu0 %v3065
        %3084 = vmatprep.subr.mxu0 0.0
        %3085 = vmatpush1.msra.mxu0 %v3066
        %3086 = vmatprep.subr.mxu0 0.0
        %3087 = vmatpush1.msra.mxu0 %v3067
        %3088 = vmatprep.subr.mxu0 0.0
        %3089 = vmatpush1.msra.mxu0 0.0
        %3090 = vmatprep.subr.mxu0 0.0
        %3091 = vmatpush1.msra.mxu0 0.0
        %3092 = vmatprep.subr.mxu0 0.0
        %3093 = vmatpush1.msra.mxu0 0.0
        %3094 = vmatprep.subr.mxu0 0.0
        %3095 = vmatpush1.msra.mxu0 0.0
        %3096 = vmatprep.subr.mxu0 0.0
        %3097 = vmatpush1.msra.mxu0 0.0
        %3098 = vmatprep.subr.mxu0 0.0
        %3099 = vmatpush1.msra.mxu0 0.0
        %3100 = vmatprep.subr.mxu0 0.0
        %3101 = vmatpush1.msra.mxu0 0.0
        %3102 = vmatprep.subr.mxu0 0.0
        %3103 = vmatpush1.msra.mxu0 0.0
        %3104 = vmatprep.subr.mxu0 0.0
        %3105 = vmatpush1.msra.mxu0 0.0
        %3106 = vmatprep.subr.mxu0 0.0
        %3107 = vmatpush1.msra.mxu0 0.0
        %3108 = vmatprep.subr.mxu0 0.0
        %3109 = vmatpush1.msra.mxu0 0.0
        %3110 = vmatprep.subr.mxu0 0.0
        %3111 = vmatpush1.msra.mxu0 0.0
        %3112 = vmatprep.subr.mxu0 0.0
        %3113 = vmatpush1.msra.mxu0 0.0
        %3114 = vmatprep.subr.mxu0 0.0
        %3115 = vmatpush1.msra.mxu0 0.0
        %3116 = vmatprep.subr.mxu0 0.0
        %3117 = vmatpush1.msra.mxu0 0.0
        %3118 = vmatprep.subr.mxu0 0.0
        %3119 = vmatpush1.msra.mxu0 0.0
        %3120 = vmatprep.subr.mxu0 0.0
        %3121 = vmatpush1.msra.mxu0 0.0
        %3122 = vmatprep.subr.mxu0 0.0
        %3123 = vmatpush1.msra.mxu0 0.0
        %3124 = vmatprep.subr.mxu0 0.0
        %3125 = vmatpush1.msra.mxu0 0.0
        %3126 = vmatprep.subr.mxu0 0.0
        %3127 = vmatpush1.msra.mxu0 0.0
        %3128 = vmatprep.subr.mxu0 0.0
        %3129 = vmatpush1.msra.mxu0 0.0
        %3130 = vmatprep.subr.mxu0 0.0
        %3131 = vmatpush1.msra.mxu0 0.0
        %3132 = vmatprep.subr.mxu0 0.0
        %3133 = vmatpush1.msra.mxu0 0.0
        %3134 = vmatprep.subr.mxu0 0.0
        %3135 = vmatpush1.msra.mxu0 0.0
        %3136 = vmatprep.mubr.f32.mxu0 0.0
        %3137 = vmatmul.mubr.f32.gmra.mrb[0].mxu0 %v3070
        %v3138 = vpop.f32.mrb[0].mxu0
        %v3139 = vadd.f32 %v3068, %v3138
        %v3140 = vpop.f32.mrb[0].mxu0
        %3141 = vdwg.mxu0
        %v3142 = vtanh.pop %v3139
        %v3143 = vld [vmem:[%s9] sm:$0xff]
        %v3144 = vld [vmem:[%s9 + $0x8] sm:$0xff]
        %v3145 = vld [vmem:[%s9 + $0x10] sm:$0xff]
        %v3146 = vld [vmem:[%s9 + $0x18] sm:$0xff]
        %v3147 = vld [vmem:[%s10] sm:$0x1]
        %v3149 = vsel %vm472, %v3142, 0
        %3151 = vmatprep.subr.mxu0 0.0
        %3152 = vmatpush1.msra.mxu0 %v3143
        %3153 = vmatprep.subr.mxu0 0.0
        %3154 = vmatpush1.msra.mxu0 %v3144
        %3155 = vmatprep.subr.mxu0 0.0
        %3156 = vmatpush1.msra.mxu0 %v3145
        %3157 = vmatprep.subr.mxu0 0.0
        %3158 = vmatpush1.msra.mxu0 %v3146
        %3159 = vmatprep.subr.mxu0 0.0
        %3160 = vmatpush1.msra.mxu0 0.0
        %3161 = vmatprep.subr.mxu0 0.0
        %3162 = vmatpush1.msra.mxu0 0.0
        %3163 = vmatprep.subr.mxu0 0.0
        %3164 = vmatpush1.msra.mxu0 0.0
        %3165 = vmatprep.subr.mxu0 0.0
        %3166 = vmatpush1.msra.mxu0 0.0
        %3167 = vmatprep.subr.mxu0 0.0
        %3168 = vmatpush1.msra.mxu0 0.0
        %3169 = vmatprep.subr.mxu0 0.0
        %3170 = vmatpush1.msra.mxu0 0.0
        %3171 = vmatprep.subr.mxu0 0.0
        %3172 = vmatpush1.msra.mxu0 0.0
        %3173 = vmatprep.subr.mxu0 0.0
        %3174 = vmatpush1.msra.mxu0 0.0
        %3175 = vmatprep.subr.mxu0 0.0
        %3176 = vmatpush1.msra.mxu0 0.0
        %3177 = vmatprep.subr.mxu0 0.0
        %3178 = vmatpush1.msra.mxu0 0.0
        %3179 = vmatprep.subr.mxu0 0.0
        %3180 = vmatpush1.msra.mxu0 0.0
        %3181 = vmatprep.subr.mxu0 0.0
        %3182 = vmatpush1.msra.mxu0 0.0
        %3183 = vmatprep.subr.mxu0 0.0
        %3184 = vmatpush1.msra.mxu0 0.0
        %3185 = vmatprep.subr.mxu0 0.0
        %3186 = vmatpush1.msra.mxu0 0.0
        %3187 = vmatprep.subr.mxu0 0.0
        %3188 = vmatpush1.msra.mxu0 0.0
        %3189 = vmatprep.subr.mxu0 0.0
        %3190 = vmatpush1.msra.mxu0 0.0
        %3191 = vmatprep.subr.mxu0 0.0
        %3192 = vmatpush1.msra.mxu0 0.0
        %3193 = vmatprep.subr.mxu0 0.0
        %3194 = vmatpush1.msra.mxu0 0.0
        %3195 = vmatprep.subr.mxu0 0.0
        %3196 = vmatpush1.msra.mxu0 0.0
        %3197 = vmatprep.subr.mxu0 0.0
        %3198 = vmatpush1.msra.mxu0 0.0
        %3199 = vmatprep.subr.mxu0 0.0
        %3200 = vmatpush1.msra.mxu0 0.0
        %3201 = vmatprep.subr.mxu0 0.0
        %3202 = vmatpush1.msra.mxu0 0.0
        %3203 = vmatprep.subr.mxu0 0.0
        %3204 = vmatpush1.msra.mxu0 0.0
        %3205 = vmatprep.subr.mxu0 0.0
        %3206 = vmatpush1.msra.mxu0 0.0
        %3207 = vmatprep.subr.mxu0 0.0
        %3208 = vmatpush1.msra.mxu0 0.0
        %3209 = vmatprep.subr.mxu0 0.0
        %3210 = vmatpush1.msra.mxu0 0.0
        %3211 = vmatprep.subr.mxu0 0.0
        %3212 = vmatpush1.msra.mxu0 0.0
        %3213 = vmatprep.subr.mxu0 0.0
        %3214 = vmatpush1.msra.mxu0 0.0
        %3215 = vmatprep.mubr.f32.mxu0 0.0
        %3216 = vmatmul.mubr.f32.gmra.mrb[0].mxu0 %v3149
        %v3217 = vpop.f32.mrb[0].mxu0
        %v3218 = vadd.f32 %v3147, %v3217
        %v3219 = vpop.f32.mrb[0].mxu0
        %3220 = vdwg.mxu0
        %vm3221 = vcmask 1040384
        %v3222 = vsel %vm3221, %v3218, -inf
        %3223 = vmax.xlane.f32.xlu0 %v3222
        %v3224 = vpop.xlane.xlu0 %3223
        %v3225 = vsub.f32 %v3218, %v3224
        %v3226 = vmul.f32 %v3225, 1.442695
        %v3227 = vpow.pop %v3226
        %v3228 = vsel %vm3221, %v3227, 0.0
        %3229 = vadd.xlane.f32.xlu0 %v3228
        %v3230 = vpop.xlane.xlu0 %3229
        %v3231 = vrcp.pop %v3230
        %v3232 = vmul.f32 %v3227, %v3231
        %3233 = vst [vmem:[%s378] sm:$0x1] %v3232
        %s3234 = sand.u32 %s269, 1
        %s3235 = scalar_lea.sflag [#allocation3], %s3234
        %s3236 = sand.u32 %s269, 1
        %s3237 = scalar_lea.vmem [#allocation2], %s3236
        // Predicated region
        $region65: #{net1_forward.1} parent=63 // pred_check
          %p3238 = pneg %p279
        $region66: #{net1_forward.1} parent=63 // pred_check_branch
          %3240 = sbr.rel (%p3238) target = $region68
        $region67: #{net1_forward.1} parent=63 // pred_region
          %s3242 = ssub.s32 16, 16
          %3243 = vsyncadd %s3235, %s3242
          %s3244 = smul.addr %s25, 16
          %s3245 = scalar_lea.hbm %s11, %s3244
          %s3247 = sshll.u32 %s3237, 4
          %s3248 = int_to_ptr.vmem [resolvable:$true] %s3247
          %3250 = dma.vmem_to_hbm [thread:$0]  %s3248, 16, %s3245, %s3235
        $region68: #{net1_forward.1} parent=63 // pred_fallthru
          _
      $region64: #{net1_forward.1} parent=5 // pred_fallthru
        _
      %p3251 = scmp.le.s32.totalorder 2, %s20
      // Predicated region
      $region69: #{net1_forward.1} parent=5 // pred_check
        %p3252 = pneg %p3251
      $region70: #{net1_forward.1} parent=5 // pred_check_branch
        %3254 = sbr.rel (%p3252) target = $region72
      $region71: #{net1_forward.1} parent=5 // pred_region
        %s3255 = ssub.s32 %s20, 2
        // Predicated region
        $region73: #{net1_forward.1} parent=71 // pred_check
          %p3256 = pneg %p285
        $region74: #{net1_forward.1} parent=71 // pred_check_branch
          %3258 = sbr.rel (%p3256) target = $region76
        $region75: #{net1_forward.1} parent=71 // pred_region
          %s3259 = sand.u32 %s270, 1
          %s3260 = scalar_lea.sflag [#allocation3], %s3259
          %s3261 = sand.u32 %s270, 1
          %s3262 = scalar_lea.vmem [#allocation2], %s3261
          %3263 = dma.done %s3260, 16
        $region76: #{net1_forward.1} parent=71 // pred_fallthru
          _
      $region72: #{net1_forward.1} parent=5 // pred_fallthru
        _
    $region6: #{net1_forward.1} parent=1 // loop_footer
      %s24 = sadd.s32 1, %s20
    $region7: #{net1_forward.1} parent=1 // loop_footer_branch
      %19 = sbr.rel target = $region3
    $region8: #{net1_forward.1} parent=1 // loop_exit
      _
    %3264 = vsyncpa [#allocation3], 1
    %s3265 = scalar_lea.sflag [#allocation3], 1
    %3266 = vsyncpa %s3265, 1

</llo_original>
